<compile_context>
chip_gen: v7x
topology: tpu7x:2x2x1
jax: 0.10.0
libtpu: 0.0.40
codegen_flags: <defaults>
</compile_context>

<pallas_src>
import functools

import jax
import jax.numpy as jnp
from jax.experimental import pallas as pl
from jax.experimental.pallas import tpu as pltpu

LN_EPS = 1e-5
BN_EPS = 1e-5


# ----------------------------------------------------------------------------
# small helpers
# ----------------------------------------------------------------------------
@functools.lru_cache(maxsize=None)
def _vmem_limit_bytes():
    """Generation-aware VMEM request: ~75% of physical, capped at 100 MiB.

    v7x has only 64 MiB physical VMEM, so requesting 64 MiB (the old constant)
    leaves zero headroom; v5e/v6e (128 MiB) can go higher.
    """
    cap = 64 * 1024 * 1024  # safe fallback (v7x physical VMEM)
    try:
        cap = int(pltpu.get_tpu_info().vmem_capacity_bytes)
    except Exception:
        pass
    return int(min(cap * 3 // 4, 100 * 1024 * 1024))


def _params(n_grid_axes):
    return pltpu.CompilerParams(
        dimension_semantics=("parallel",) * n_grid_axes,  # shards across v7x's 2 TCs
        vmem_limit_bytes=_vmem_limit_bytes(),
    )


def _pick_spatial_tile(s, lane_bytes, max_tile=8192):
    """Largest lane-dense spatial tile whose VMEM footprint fits ~1/2 the budget.

    lane_bytes = VMEM bytes needed per spatial lane, incl. double buffering.
    Large tiles amortize the ~0.35us per-grid-step overhead; the channel-aware
    cap keeps later CvT stages (big C) from overflowing v7x's 64 MiB VMEM.
    """
    budget = _vmem_limit_bytes() // 2
    cap = max(128, min(max_tile, budget // max(lane_bytes, 1)))
    cap = (cap // 128) * 128
    if s <= 128 or s <= cap:
        return s
    t = cap
    while t >= 128:
        if s % t == 0:
            return t
        t -= 128
    # TODO(synk): S has no mult-of-128 divisor <= cap; full-S block (correct, but
    # may exceed the VMEM budget for very large, awkwardly sized spatial extents).
    return s


def _pick_seq_tile(n, max_tile=512):
    """Query-row tile for the attention kernel (keeps the (tq, M) score tile small)."""
    if n <= max_tile:
        return n
    t = (max_tile // 128) * 128
    while t >= 128:
        if n % t == 0:
            return t
        t -= 128
    return n


def _gelu(x):
    # tanh-approximation GELU (EUP tanh); nn.GELU default is exact erf.
    # TODO(synk): exact erf GELU not used in-kernel (erf lowering not relied on).
    c = jnp.float32(0.7978845608028654)  # sqrt(2/pi)
    return 0.5 * x * (1.0 + jnp.tanh(c * (x + 0.044715 * x * x * x)))


def _depthwise_conv(x, w, *, stride):
    # TODO(synk): depthwise 3x3 grouped conv stays in XLA (2-D halo access in the
    # flattened (C, S) layout has no clean Pallas win at these sizes).
    pad = w.shape[-1] // 2
    return jax.lax.conv_general_dilated(
        x, w, window_strides=(stride, stride),
        padding=[(pad, pad), (pad, pad)],
        dimension_numbers=("NCHW", "OIHW", "NCHW"),
        feature_group_count=x.shape[1])


def _fold_bn_into_pointwise(w_pw, bn_g, bn_b, bn_mean, bn_var, eps=BN_EPS):
    # eval-mode BN:  z_c = (u_c - mean_c)/sqrt(var_c+eps)*g_c + b_c = u_c*s_c + t_c
    # 1x1 conv(W, no bias) after BN  ==  conv with W*s plus bias W@t.
    s = bn_g / jnp.sqrt(bn_var + eps)
    t = bn_b - bn_mean * s
    return w_pw * s[None, :], w_pw @ t


# ----------------------------------------------------------------------------
# Pallas kernels (all tiles are (channels on sublanes, spatial on lanes))
# ----------------------------------------------------------------------------
def _layernorm_kernel(x_ref, g_ref, b_ref, o_ref):
    x = x_ref[0].astype(jnp.float32)                             # (C, S_TILE)
    mean = jnp.mean(x, axis=0, keepdims=True)
    var = jnp.mean(jnp.square(x - mean), axis=0, keepdims=True)  # biased, like torch
    xh = (x - mean) * jax.lax.rsqrt(var + LN_EPS)
    y = xh * g_ref[...].astype(jnp.float32) + b_ref[...].astype(jnp.float32)
    o_ref[0] = y.astype(o_ref.dtype)


def _pointwise_kernel(x_ref, w_ref, b_ref, o_ref, *, activation):
    x = x_ref[0].astype(jnp.float32)                             # (C_in, S_TILE)
    w = w_ref[...].astype(jnp.float32)                           # (C_out, C_in)
    y = jnp.dot(w, x, preferred_element_type=jnp.float32)        # MXU
    y = y + b_ref[...].astype(jnp.float32)                       # (C_out, 1) bcast
    if activation == "gelu":
        y = _gelu(y)
    o_ref[0] = y.astype(o_ref.dtype)


def _pointwise_residual_kernel(x_ref, w_ref, b_ref, r_ref, o_ref):
    # 1x1 conv + bias + fused residual add (saves one full HBM round trip of the
    # branch output vs. a separate XLA add).
    x = x_ref[0].astype(jnp.float32)                             # (C_in, S_TILE)
    w = w_ref[...].astype(jnp.float32)                           # (C_out, C_in)
    y = jnp.dot(w, x, preferred_element_type=jnp.float32)
    y = y + b_ref[...].astype(jnp.float32)
    y = y + r_ref[0].astype(jnp.float32)                         # residual
    o_ref[0] = y.astype(o_ref.dtype)


def _ln_pointwise_kernel(x_ref, w_ref, b_ref, o_ref, *, activation):
    # Fused PreNorm LayerNorm + 1x1 conv (+ GELU). The LN affine (gamma/beta) is
    # folded into w/b at trace time, so the kernel only normalizes and matmuls.
    x = x_ref[0].astype(jnp.float32)                             # (C, S_TILE)
    mean = jnp.mean(x, axis=0, keepdims=True)
    var = jnp.mean(jnp.square(x - mean), axis=0, keepdims=True)
    xh = (x - mean) * jax.lax.rsqrt(var + LN_EPS)
    y = jnp.dot(w_ref[...].astype(jnp.float32), xh, preferred_element_type=jnp.float32)
    y = y + b_ref[...].astype(jnp.float32)
    if activation == "gelu":
        y = _gelu(y)
    o_ref[0] = y.astype(o_ref.dtype)


def _attention_kernel(q_ref, k_ref, v_ref, o_ref):
    # q: (d, tq), k/v: (d, M) -- all in the same channel-on-sublane layout, so no
    # host-side transposes are needed on either side of the kernel. The attention
    # scale is folded into the q projection weights.
    q = q_ref[0].astype(jnp.float32)                             # (d, tq)
    k = k_ref[0].astype(jnp.float32)                             # (d, M)
    v = v_ref[0].astype(jnp.float32)                             # (d, M)
    dots = jax.lax.dot_general(q, k, (((0,), (0,)), ((), ())),
                               preferred_element_type=jnp.float32)   # (tq, M)
    dots = dots - jnp.max(dots, axis=-1, keepdims=True)
    p = jnp.exp(dots)
    denom = jnp.sum(p, axis=-1, keepdims=True)
    p = p * pl.reciprocal(denom, approx=True)                    # EUP, not VPU divide
    # contract last dims (transpose_rhs form) -> output already (d, tq).
    out = jax.lax.dot_general(v, p, (((1,), (1,)), ((), ())),
                              preferred_element_type=jnp.float32)    # (d, tq)
    o_ref[0] = out.astype(o_ref.dtype)


# ----------------------------------------------------------------------------
# pallas_call wrappers
# ----------------------------------------------------------------------------
def layernorm_nchw(x_bcs, gamma, beta):
    """LayerNorm over the channel axis of an NCHW tensor flattened to (B, C, S)."""
    B, C, S = x_bcs.shape
    st = _pick_spatial_tile(S, 8 * (C + C))
    return pl.pallas_call(
        _layernorm_kernel,
        out_shape=jax.ShapeDtypeStruct((B, C, S), x_bcs.dtype),
        grid_spec=pltpu.PrefetchScalarGridSpec(
            num_scalar_prefetch=0,
            grid=(B, S // st),
            in_specs=[
                pl.BlockSpec((1, C, st), lambda b, s: (b, 0, s)),
                pl.BlockSpec((C, 1), lambda b, s: (0, 0)),   # gamma stays resident
                pl.BlockSpec((C, 1), lambda b, s: (0, 0)),   # beta stays resident
            ],
            out_specs=pl.BlockSpec((1, C, st), lambda b, s: (b, 0, s)),
        ),
        compiler_params=_params(2),
    )(x_bcs, gamma.reshape(C, 1), beta.reshape(C, 1))


def pointwise_conv(x_bcs, w, b, *, activation=None, residual=None):
    """1x1 conv (NCHW, flattened spatial) on the MXU: out = act(W @ x + b) [+ residual]."""
    B, Cin, S = x_bcs.shape
    Cout = w.shape[0]
    extra = Cout if residual is not None else 0
    st = _pick_spatial_tile(S, 8 * (Cin + Cout + extra))
    in_specs = [
        pl.BlockSpec((1, Cin, st), lambda bb, ss: (bb, 0, ss)),
        pl.BlockSpec((Cout, Cin), lambda bb, ss: (0, 0)),     # weights resident
        pl.BlockSpec((Cout, 1), lambda bb, ss: (0, 0)),       # bias resident
    ]
    args = [x_bcs, w, b.reshape(Cout, 1)]
    if residual is not None:
        kernel = _pointwise_residual_kernel
        in_specs.append(pl.BlockSpec((1, Cout, st), lambda bb, ss: (bb, 0, ss)))
        args.append(residual)
    else:
        kernel = functools.partial(_pointwise_kernel, activation=activation)
    return pl.pallas_call(
        kernel,
        out_shape=jax.ShapeDtypeStruct((B, Cout, S), x_bcs.dtype),
        grid_spec=pltpu.PrefetchScalarGridSpec(
            num_scalar_prefetch=0,
            grid=(B, S // st),
            in_specs=in_specs,
            out_specs=pl.BlockSpec((1, Cout, st), lambda bb, ss: (bb, 0, ss)),
        ),
        compiler_params=_params(2),
    )(*args)


def ln_pointwise_conv(x_bcs, w_folded, b_folded, *, activation=None):
    """Fused PreNorm LayerNorm (affine pre-folded into w/b) + 1x1 conv (+ activation)."""
    B, C, S = x_bcs.shape
    Cout = w_folded.shape[0]
    st = _pick_spatial_tile(S, 8 * (C + Cout))
    kernel = functools.partial(_ln_pointwise_kernel, activation=activation)
    return pl.pallas_call(
        kernel,
        out_shape=jax.ShapeDtypeStruct((B, Cout, S), x_bcs.dtype),
        grid_spec=pltpu.PrefetchScalarGridSpec(
            num_scalar_prefetch=0,
            grid=(B, S // st),
            in_specs=[
                pl.BlockSpec((1, C, st), lambda bb, ss: (bb, 0, ss)),
                pl.BlockSpec((Cout, C), lambda bb, ss: (0, 0)),
                pl.BlockSpec((Cout, 1), lambda bb, ss: (0, 0)),
            ],
            out_specs=pl.BlockSpec((1, Cout, st), lambda bb, ss: (bb, 0, ss)),
        ),
        compiler_params=_params(2),
    )(x_bcs, w_folded, b_folded.reshape(Cout, 1))


def attention_core(qh, kh, vh):
    """softmax(q k^T) v, one (batch*head, query-tile) per grid step.

    qh: (BH, d, N)   kh, vh: (BH, d, M)   ->   out: (BH, d, N)
    (scale is pre-folded into the q projection weights)
    """
    BH, d, N = qh.shape
    M = kh.shape[2]
    tq = _pick_seq_tile(N)
    return pl.pallas_call(
        _attention_kernel,
        out_shape=jax.ShapeDtypeStruct((BH, d, N), qh.dtype),
        grid_spec=pltpu.PrefetchScalarGridSpec(
            num_scalar_prefetch=0,
            grid=(BH, N // tq),
            in_specs=[
                pl.BlockSpec((1, d, tq), lambda i, j: (i, 0, j)),
                pl.BlockSpec((1, d, M), lambda i, j: (i, 0, 0)),   # k resident over tq
                pl.BlockSpec((1, d, M), lambda i, j: (i, 0, 0)),   # v resident over tq
            ],
            out_specs=pl.BlockSpec((1, d, tq), lambda i, j: (i, 0, j)),
        ),
        compiler_params=_params(2),
    )(qh, kh, vh)


# ----------------------------------------------------------------------------
# Transformer forward (Pallas path)
# ----------------------------------------------------------------------------
def _attention_branch(x, p, heads, kv_stride):
    """Returns x + Attention(LN(x)) -- residual fused into the final conv."""
    B, C, H, W = x.shape
    S = H * W
    inner = p["q_pw_w"].shape[0]
    d = inner // heads
    x2 = x.reshape(B, C, S)

    # PreNorm: LayerNorm over channels, directly in NCHW (no layout transposes).
    xn = layernorm_nchw(x2, p["ln1_g"], p["ln1_b"])
    xn4 = xn.reshape(B, C, H, W)

    # to_q: depthwise 3x3 (XLA) -> BN folded into the Pallas 1x1 conv; the
    # attention scale d**-0.5 is also folded into these weights (free, exact).
    wq, bq = _fold_bn_into_pointwise(p["q_pw_w"], p["q_bn_g"], p["q_bn_b"],
                                     p["q_bn_m"], p["q_bn_v"])
    scale = d ** -0.5
    wq = wq * scale
    bq = bq * scale
    qd = _depthwise_conv(xn4, p["q_dw_w"], stride=1)
    q = pointwise_conv(qd.reshape(B, C, S), wq, bq)               # (B, inner, S)

    # to_kv: depthwise 3x3 stride kv_stride -> folded BN -> 1x1 conv -> chunk.
    wkv, bkv = _fold_bn_into_pointwise(p["kv_pw_w"], p["kv_bn_g"], p["kv_bn_b"],
                                       p["kv_bn_m"], p["kv_bn_v"])
    kvd = _depthwise_conv(xn4, p["kv_dw_w"], stride=kv_stride)
    Hk, Wk = kvd.shape[2], kvd.shape[3]
    Sk = Hk * Wk
    kv = pointwise_conv(kvd.reshape(B, C, Sk), wkv, bkv)          # (B, 2*inner, Sk)
    k, v = kv[:, :inner], kv[:, inner:]

    # 'b (h d) s -> (b h) d s' is a pure reshape for q, k and v alike; q stays in
    # the same channel-on-sublane layout as k/v (no host transpose, lane-dense).
    qh = q.reshape(B * heads, d, S)
    kh = k.reshape(B * heads, d, Sk)
    vh = v.reshape(B * heads, d, Sk)
    oh = attention_core(qh, kh, vh)                               # (BH, d, S)
    o = oh.reshape(B, inner, S)

    # to_out 1x1 conv (+bias) with the residual fused; Dropout(p=0) is identity.
    out = pointwise_conv(o, p["out_w"], p["out_b"], residual=x2)  # (B, C, S)
    return out.reshape(B, C, H, W)


def _feedforward_branch(x, p):
    """Returns x + FF(LN(x)) -- LN affine folded into conv1, residual fused into conv2."""
    B, C, H, W = x.shape
    S = H * W
    x2 = x.reshape(B, C, S)
    # Fold the LN affine into the first FF conv:  W' = W*gamma, b' = W@beta + b.
    w1 = p["ff_w1"] * p["ln2_g"][None, :]
    b1 = p["ff_w1"] @ p["ln2_b"] + p["ff_b1"]
    # Fused PreNorm-LN + conv1(1x1) + GELU, then conv2(1x1)+residual. Dropouts identity.
    h = ln_pointwise_conv(x2, w1, b1, activation="gelu")          # (B, hidden, S)
    out = pointwise_conv(h, p["ff_w2"], p["ff_b2"], residual=x2)  # (B, C, S)
    return out.reshape(B, C, H, W)


def transformer_forward(x, params, *, heads, kv_stride):
    for p in params:
        x = _attention_branch(x, p, heads, kv_stride)   # includes +x
        x = _feedforward_branch(x, p)                   # includes +x
    return x


# ----------------------------------------------------------------------------
# Pure-JAX reference (mirrors the PyTorch module, eval mode)
# ----------------------------------------------------------------------------
def _ref_layernorm(x, g, b):
    mean = jnp.mean(x, axis=1, keepdims=True)
    var = jnp.mean(jnp.square(x - mean), axis=1, keepdims=True)
    xh = (x - mean) / jnp.sqrt(var + LN_EPS)
    return xh * g[None, :, None, None] + b[None, :, None, None]


def _ref_bn(x, g, b, m, v):
    xh = (x - m[None, :, None, None]) / jnp.sqrt(v[None, :, None, None] + BN_EPS)
    return xh * g[None, :, None, None] + b[None, :, None, None]


def _ref_pointwise(x, w, b=None):
    y = jnp.einsum("oc,bchw->bohw", w, x)
    if b is not None:
        y = y + b[None, :, None, None]
    return y


def _ref_attention_branch(x, p, heads, kv_stride):
    B, C, H, W = x.shape
    xn = _ref_layernorm(x, p["ln1_g"], p["ln1_b"])
    q = _ref_pointwise(_ref_bn(_depthwise_conv(xn, p["q_dw_w"], stride=1),
                               p["q_bn_g"], p["q_bn_b"], p["q_bn_m"], p["q_bn_v"]),
                       p["q_pw_w"])
    kv = _ref_pointwise(_ref_bn(_depthwise_conv(xn, p["kv_dw_w"], stride=kv_stride),
                                p["kv_bn_g"], p["kv_bn_b"], p["kv_bn_m"], p["kv_bn_v"]),
                        p["kv_pw_w"])
    inner = q.shape[1]
    k, v = kv[:, :inner], kv[:, inner:]
    d = inner // heads

    def to_heads(t):
        b_, _, h_, w_ = t.shape
        return (t.reshape(b_, heads, d, h_ * w_)
                 .transpose(0, 1, 3, 2)
                 .reshape(b_ * heads, h_ * w_, d))

    qh, kh, vh = to_heads(q), to_heads(k), to_heads(v)
    dots = jnp.einsum("bid,bjd->bij", qh, kh) * (d ** -0.5)
    attn = jax.nn.softmax(dots, axis=-1)
    out = jnp.einsum("bij,bjd->bid", attn, vh)                    # (BH, N, d)
    out = (out.reshape(B, heads, H * W, d)
              .transpose(0, 1, 3, 2)
              .reshape(B, inner, H, W))
    return _ref_pointwise(out, p["out_w"], p["out_b"])


def _ref_feedforward_branch(x, p):
    xn = _ref_layernorm(x, p["ln2_g"], p["ln2_b"])
    h = _ref_pointwise(xn, p["ff_w1"], p["ff_b1"])
    h = jax.nn.gelu(h, approximate=True)   # matches the in-kernel tanh-approx GELU
    return _ref_pointwise(h, p["ff_w2"], p["ff_b2"])


def ref_transformer(x, params, *, heads, kv_stride):
    for p in params:
        x = x + _ref_attention_branch(x, p, heads, kv_stride)
        x = x + _ref_feedforward_branch(x, p)
    return x


# ----------------------------------------------------------------------------
# deterministic parameter construction
# ----------------------------------------------------------------------------
def init_params(key, dim, heads, dim_head, mlp_mult, depth):
    inner = heads * dim_head
    hidden = dim * mlp_mult

    def dense(k, shape, fan_in):
        return jax.random.normal(k, shape, jnp.float32) / jnp.sqrt(float(fan_in))

    params = []
    for _ in range(depth):
        key, *ks = jax.random.split(key, 23)
        ks = iter(ks)
        nk = lambda: next(ks)  # noqa: E731
        p = {
            "ln1_g": 1.0 + 0.1 * jax.random.normal(nk(), (dim,), jnp.float32),
            "ln1_b": 0.1 * jax.random.normal(nk(), (dim,), jnp.float32),
            "q_dw_w": 0.2 * jax.random.normal(nk(), (dim, 1, 3, 3), jnp.float32),
            "q_bn_g": 1.0 + 0.1 * jax.random.normal(nk(), (dim,), jnp.float32),
            "q_bn_b": 0.1 * jax.random.normal(nk(), (dim,), jnp.float32),
            "q_bn_m": 0.1 * jax.random.normal(nk(), (dim,), jnp.float32),
            "q_bn_v": 0.5 + jax.random.uniform(nk(), (dim,), jnp.float32),
            "q_pw_w": dense(nk(), (inner, dim), dim),
            "kv_dw_w": 0.2 * jax.random.normal(nk(), (dim, 1, 3, 3), jnp.float32),
            "kv_bn_g": 1.0 + 0.1 * jax.random.normal(nk(), (dim,), jnp.float32),
            "kv_bn_b": 0.1 * jax.random.normal(nk(), (dim,), jnp.float32),
            "kv_bn_m": 0.1 * jax.random.normal(nk(), (dim,), jnp.float32),
            "kv_bn_v": 0.5 + jax.random.uniform(nk(), (dim,), jnp.float32),
            "kv_pw_w": dense(nk(), (2 * inner, dim), dim),
            "out_w": dense(nk(), (dim, inner), inner),
            "out_b": 0.1 * jax.random.normal(nk(), (dim,), jnp.float32),
            "ln2_g": 1.0 + 0.1 * jax.random.normal(nk(), (dim,), jnp.float32),
            "ln2_b": 0.1 * jax.random.normal(nk(), (dim,), jnp.float32),
            "ff_w1": dense(nk(), (hidden, dim), dim),
            "ff_b1": 0.1 * jax.random.normal(nk(), (hidden,), jnp.float32),
            "ff_w2": dense(nk(), (dim, hidden), hidden),
            "ff_b2": 0.1 * jax.random.normal(nk(), (dim,), jnp.float32),
        }
        params.append(p)
    return params


# ----------------------------------------------------------------------------
# main
# ----------------------------------------------------------------------------
if __name__ == "__main__":
    B, DIM, H, W = 2, 32, 16, 16
    HEADS, DIM_HEAD, MLP_MULT, DEPTH = 2, 32, 2, 2
    PROJ_KERNEL, KV_STRIDE = 3, 2   # proj_kernel=3 -> padding=1 (derived from weights)

    key = jax.random.PRNGKey(0)
    key, kx = jax.random.split(key)
    x = jax.random.normal(kx, (B, DIM, H, W), dtype=jnp.float32)
    params = init_params(key, DIM, HEADS, DIM_HEAD, MLP_MULT, DEPTH)

    fwd = jax.jit(functools.partial(transformer_forward, heads=HEADS, kv_stride=KV_STRIDE))
    out = jax.block_until_ready(fwd(x, params))

    ref = jax.block_until_ready(
        ref_transformer(x, params, heads=HEADS, kv_stride=KV_STRIDE))

    assert out.shape == ref.shape
    max_abs = float(jnp.max(jnp.abs(out - ref)))
    ok = bool(jnp.allclose(out, ref, rtol=1e-2, atol=1e-2))
    assert ok, f"elementwise mismatch vs reference: max_abs_err={max_abs}"

    print("KERNEL_OK")
</pallas_src>

<mosaic_0001>
module attributes {stable_mosaic.version = 11 : i64} {
  func.func @_layernorm_kernel(%arg0: i32, %arg1: i32, %arg2: memref<1x32x256xf32, #tpu.memory_space<vmem>>, %arg3: memref<32x1xf32, #tpu.memory_space<vmem>>, %arg4: memref<32x1xf32, #tpu.memory_space<vmem>>, %arg5: memref<1x32x256xf32, #tpu.memory_space<vmem>>) attributes {dimension_semantics = [#tpu.dimension_semantics<parallel>, #tpu.dimension_semantics<parallel>], iteration_bounds = array<i64: 2, 1>, scalar_prefetch = 0 : i64, scratch_operands = 0 : i64, tpu.core_type = #tpu.core_type<tc>, window_params = [{transform_indices = @transform_0, window_bounds = array<i64: 1, 32, 256>}, {pipeline_mode = #tpu.pipeline_mode<synchronous>, transform_indices = @transform_1, window_bounds = array<i64: 32, 1>}, {pipeline_mode = #tpu.pipeline_mode<synchronous>, transform_indices = @transform_2, window_bounds = array<i64: 32, 1>}, {transform_indices = @transform_3, window_bounds = array<i64: 1, 32, 256>}]} {
    %c0 = arith.constant 0 : index
    %c0_0 = arith.constant 0 : index
    %c0_1 = arith.constant 0 : index
    %0 = vector.load %arg2[%c0, %c0_0, %c0_1] : memref<1x32x256xf32, #tpu.memory_space<vmem>>, vector<1x32x256xf32>
    %1 = vector.shape_cast %0 : vector<1x32x256xf32> to vector<32x256xf32>
    %cst = arith.constant dense<0.000000e+00> : vector<256xf32>
    %2 = vector.multi_reduction <add>, %1, %cst [0] : vector<32x256xf32> to vector<256xf32>
    %3 = vector.shape_cast %2 : vector<256xf32> to vector<1x256xf32>
    %cst_2 = arith.constant 3.200000e+01 : f32
    %4 = vector.broadcast %cst_2 : f32 to vector<1x256xf32>
    %5 = arith.divf %3, %4 : vector<1x256xf32>
    %6 = vector.broadcast %5 : vector<1x256xf32> to vector<32x256xf32>
    %7 = arith.subf %1, %6 : vector<32x256xf32>
    %8 = arith.mulf %7, %7 : vector<32x256xf32>
    %cst_3 = arith.constant dense<0.000000e+00> : vector<256xf32>
    %9 = vector.multi_reduction <add>, %8, %cst_3 [0] : vector<32x256xf32> to vector<256xf32>
    %10 = vector.shape_cast %9 : vector<256xf32> to vector<1x256xf32>
    %cst_4 = arith.constant 3.200000e+01 : f32
    %11 = vector.broadcast %cst_4 : f32 to vector<1x256xf32>
    %12 = arith.divf %10, %11 : vector<1x256xf32>
    %13 = vector.broadcast %5 : vector<1x256xf32> to vector<32x256xf32>
    %14 = arith.subf %1, %13 : vector<32x256xf32>
    %cst_5 = arith.constant 9.99999974E-6 : f32
    %15 = vector.broadcast %cst_5 : f32 to vector<1x256xf32>
    %16 = arith.addf %12, %15 : vector<1x256xf32>
    %17 = math.rsqrt %16 : vector<1x256xf32>
    %18 = vector.broadcast %17 : vector<1x256xf32> to vector<32x256xf32>
    %19 = arith.mulf %14, %18 : vector<32x256xf32>
    %c0_6 = arith.constant 0 : index
    %c0_7 = arith.constant 0 : index
    %20 = vector.load %arg3[%c0_6, %c0_7] : memref<32x1xf32, #tpu.memory_space<vmem>>, vector<32x1xf32>
    %21 = vector.broadcast %20 : vector<32x1xf32> to vector<32x256xf32>
    %22 = arith.mulf %19, %21 : vector<32x256xf32>
    %c0_8 = arith.constant 0 : index
    %c0_9 = arith.constant 0 : index
    %23 = vector.load %arg4[%c0_8, %c0_9] : memref<32x1xf32, #tpu.memory_space<vmem>>, vector<32x1xf32>
    %24 = vector.broadcast %23 : vector<32x1xf32> to vector<32x256xf32>
    %25 = arith.addf %22, %24 : vector<32x256xf32>
    %c0_10 = arith.constant 0 : index
    %c0_11 = arith.constant 0 : index
    %c0_12 = arith.constant 0 : index
    %26 = vector.load %arg5[%c0_10, %c0_11, %c0_12] : memref<1x32x256xf32, #tpu.memory_space<vmem>>, vector<1x32x256xf32>
    %27 = vector.shape_cast %26 : vector<1x32x256xf32> to vector<32x256xf32>
    %28 = vector.shape_cast %25 : vector<32x256xf32> to vector<1x32x256xf32>
    tpu.vector_store %arg5[%c0_10, %c0_11, %c0_12], %28 {strides = array<i32>} : memref<1x32x256xf32, #tpu.memory_space<vmem>>, vector<1x32x256xf32>,
    return
  }
  func.func @transform_0(%arg0: i32, %arg1: i32) -> (i32, i32, i32) {
    %c0_i32 = arith.constant 0 : i32
    %c0_i32_0 = arith.constant 0 : i32
    return %arg0, %c0_i32, %arg1 : i32, i32, i32
  }
  func.func @transform_1(%arg0: i32, %arg1: i32) -> (i32, i32) {
    %c0_i32 = arith.constant 0 : i32
    %c0_i32_0 = arith.constant 0 : i32
    %c0_i32_1 = arith.constant 0 : i32
    return %c0_i32, %c0_i32_0 : i32, i32
  }
  func.func @transform_2(%arg0: i32, %arg1: i32) -> (i32, i32) {
    %c0_i32 = arith.constant 0 : i32
    %c0_i32_0 = arith.constant 0 : i32
    %c0_i32_1 = arith.constant 0 : i32
    return %c0_i32, %c0_i32_0 : i32, i32
  }
  func.func @transform_3(%arg0: i32, %arg1: i32) -> (i32, i32, i32) {
    %c0_i32 = arith.constant 0 : i32
    %c0_i32_0 = arith.constant 0 : i32
    return %arg0, %c0_i32, %arg1 : i32, i32, i32
  }
}

module attributes {stable_mosaic.version = 11 : i64} {
  func.func @_pointwise_kernel(%arg0: i32, %arg1: i32, %arg2: memref<1x32x256xf32, #tpu.memory_space<vmem>>, %arg3: memref<64x32xf32, #tpu.memory_space<vmem>>, %arg4: memref<64x1xf32, #tpu.memory_space<vmem>>, %arg5: memref<1x64x256xf32, #tpu.memory_space<vmem>>) attributes {dimension_semantics = [#tpu.dimension_semantics<parallel>, #tpu.dimension_semantics<parallel>], iteration_bounds = array<i64: 2, 1>, scalar_prefetch = 0 : i64, scratch_operands = 0 : i64, tpu.core_type = #tpu.core_type<tc>, window_params = [{transform_indices = @transform_0, window_bounds = array<i64: 1, 32, 256>}, {pipeline_mode = #tpu.pipeline_mode<synchronous>, transform_indices = @transform_1, window_bounds = array<i64: 64, 32>}, {pipeline_mode = #tpu.pipeline_mode<synchronous>, transform_indices = @transform_2, window_bounds = array<i64: 64, 1>}, {transform_indices = @transform_3, window_bounds = array<i64: 1, 64, 256>}]} {
    %c0 = arith.constant 0 : index
    %c0_0 = arith.constant 0 : index
    %c0_1 = arith.constant 0 : index
    %0 = vector.load %arg2[%c0, %c0_0, %c0_1] : memref<1x32x256xf32, #tpu.memory_space<vmem>>, vector<1x32x256xf32>
    %1 = vector.shape_cast %0 : vector<1x32x256xf32> to vector<32x256xf32>
    %c0_2 = arith.constant 0 : index
    %c0_3 = arith.constant 0 : index
    %2 = vector.load %arg3[%c0_2, %c0_3] : memref<64x32xf32, #tpu.memory_space<vmem>>, vector<64x32xf32>
    %cst = arith.constant dense<0.000000e+00> : vector<64x256xf32>
    %3 = tpu.matmul %2, %1, %cst {dimension_numbers = #tpu.dot_dimension_numbers<[1], [0], [0], [1], [0, 0, 1, 1], [], []>} : vector<64x32xf32>, vector<32x256xf32>, vector<64x256xf32> -> vector<64x256xf32>
    %c0_4 = arith.constant 0 : index
    %c0_5 = arith.constant 0 : index
    %4 = vector.load %arg4[%c0_4, %c0_5] : memref<64x1xf32, #tpu.memory_space<vmem>>, vector<64x1xf32>
    %5 = vector.broadcast %4 : vector<64x1xf32> to vector<64x256xf32>
    %6 = arith.addf %3, %5 : vector<64x256xf32>
    %c0_6 = arith.constant 0 : index
    %c0_7 = arith.constant 0 : index
    %c0_8 = arith.constant 0 : index
    %7 = vector.load %arg5[%c0_6, %c0_7, %c0_8] : memref<1x64x256xf32, #tpu.memory_space<vmem>>, vector<1x64x256xf32>
    %8 = vector.shape_cast %7 : vector<1x64x256xf32> to vector<64x256xf32>
    %9 = vector.shape_cast %6 : vector<64x256xf32> to vector<1x64x256xf32>
    tpu.vector_store %arg5[%c0_6, %c0_7, %c0_8], %9 {strides = array<i32>} : memref<1x64x256xf32, #tpu.memory_space<vmem>>, vector<1x64x256xf32>,
    return
  }
  func.func @transform_0(%arg0: i32, %arg1: i32) -> (i32, i32, i32) {
    %c0_i32 = arith.constant 0 : i32
    %c0_i32_0 = arith.constant 0 : i32
    return %arg0, %c0_i32, %arg1 : i32, i32, i32
  }
  func.func @transform_1(%arg0: i32, %arg1: i32) -> (i32, i32) {
    %c0_i32 = arith.constant 0 : i32
    %c0_i32_0 = arith.constant 0 : i32
    %c0_i32_1 = arith.constant 0 : i32
    return %c0_i32, %c0_i32_0 : i32, i32
  }
  func.func @transform_2(%arg0: i32, %arg1: i32) -> (i32, i32) {
    %c0_i32 = arith.constant 0 : i32
    %c0_i32_0 = arith.constant 0 : i32
    %c0_i32_1 = arith.constant 0 : i32
    return %c0_i32, %c0_i32_0 : i32, i32
  }
  func.func @transform_3(%arg0: i32, %arg1: i32) -> (i32, i32, i32) {
    %c0_i32 = arith.constant 0 : i32
    %c0_i32_0 = arith.constant 0 : i32
    return %arg0, %c0_i32, %arg1 : i32, i32, i32
  }
}

module attributes {stable_mosaic.version = 11 : i64} {
  func.func @_pointwise_kernel(%arg0: i32, %arg1: i32, %arg2: memref<1x32x64xf32, #tpu.memory_space<vmem>>, %arg3: memref<128x32xf32, #tpu.memory_space<vmem>>, %arg4: memref<128x1xf32, #tpu.memory_space<vmem>>, %arg5: memref<1x128x64xf32, #tpu.memory_space<vmem>>) attributes {dimension_semantics = [#tpu.dimension_semantics<parallel>, #tpu.dimension_semantics<parallel>], iteration_bounds = array<i64: 2, 1>, scalar_prefetch = 0 : i64, scratch_operands = 0 : i64, tpu.core_type = #tpu.core_type<tc>, window_params = [{transform_indices = @transform_0, window_bounds = array<i64: 1, 32, 64>}, {pipeline_mode = #tpu.pipeline_mode<synchronous>, transform_indices = @transform_1, window_bounds = array<i64: 128, 32>}, {pipeline_mode = #tpu.pipeline_mode<synchronous>, transform_indices = @transform_2, window_bounds = array<i64: 128, 1>}, {transform_indices = @transform_3, window_bounds = array<i64: 1, 128, 64>}]} {
    %c0 = arith.constant 0 : index
    %c0_0 = arith.constant 0 : index
    %c0_1 = arith.constant 0 : index
    %0 = vector.load %arg2[%c0, %c0_0, %c0_1] : memref<1x32x64xf32, #tpu.memory_space<vmem>>, vector<1x32x64xf32>
    %1 = vector.shape_cast %0 : vector<1x32x64xf32> to vector<32x64xf32>
    %c0_2 = arith.constant 0 : index
    %c0_3 = arith.constant 0 : index
    %2 = vector.load %arg3[%c0_2, %c0_3] : memref<128x32xf32, #tpu.memory_space<vmem>>, vector<128x32xf32>
    %cst = arith.constant dense<0.000000e+00> : vector<128x64xf32>
    %3 = tpu.matmul %2, %1, %cst {dimension_numbers = #tpu.dot_dimension_numbers<[1], [0], [0], [1], [0, 0, 1, 1], [], []>} : vector<128x32xf32>, vector<32x64xf32>, vector<128x64xf32> -> vector<128x64xf32>
    %c0_4 = arith.constant 0 : index
    %c0_5 = arith.constant 0 : index
    %4 = vector.load %arg4[%c0_4, %c0_5] : memref<128x1xf32, #tpu.memory_space<vmem>>, vector<128x1xf32>
    %5 = vector.broadcast %4 : vector<128x1xf32> to vector<128x64xf32>
    %6 = arith.addf %3, %5 : vector<128x64xf32>
    %c0_6 = arith.constant 0 : index
    %c0_7 = arith.constant 0 : index
    %c0_8 = arith.constant 0 : index
    %7 = vector.load %arg5[%c0_6, %c0_7, %c0_8] : memref<1x128x64xf32, #tpu.memory_space<vmem>>, vector<1x128x64xf32>
    %8 = vector.shape_cast %7 : vector<1x128x64xf32> to vector<128x64xf32>
    %9 = vector.shape_cast %6 : vector<128x64xf32> to vector<1x128x64xf32>
    tpu.vector_store %arg5[%c0_6, %c0_7, %c0_8], %9 {strides = array<i32>} : memref<1x128x64xf32, #tpu.memory_space<vmem>>, vector<1x128x64xf32>,
    return
  }
  func.func @transform_0(%arg0: i32, %arg1: i32) -> (i32, i32, i32) {
    %c0_i32 = arith.constant 0 : i32
    %c0_i32_0 = arith.constant 0 : i32
    return %arg0, %c0_i32, %arg1 : i32, i32, i32
  }
  func.func @transform_1(%arg0: i32, %arg1: i32) -> (i32, i32) {
    %c0_i32 = arith.constant 0 : i32
    %c0_i32_0 = arith.constant 0 : i32
    %c0_i32_1 = arith.constant 0 : i32
    return %c0_i32, %c0_i32_0 : i32, i32
  }
  func.func @transform_2(%arg0: i32, %arg1: i32) -> (i32, i32) {
    %c0_i32 = arith.constant 0 : i32
    %c0_i32_0 = arith.constant 0 : i32
    %c0_i32_1 = arith.constant 0 : i32
    return %c0_i32, %c0_i32_0 : i32, i32
  }
  func.func @transform_3(%arg0: i32, %arg1: i32) -> (i32, i32, i32) {
    %c0_i32 = arith.constant 0 : i32
    %c0_i32_0 = arith.constant 0 : i32
    return %arg0, %c0_i32, %arg1 : i32, i32, i32
  }
}

module attributes {stable_mosaic.version = 11 : i64} {
  func.func @_attention_kernel(%arg0: i32, %arg1: i32, %arg2: memref<1x32x256xf32, #tpu.memory_space<vmem>>, %arg3: memref<1x32x64xf32, #tpu.memory_space<vmem>>, %arg4: memref<1x32x64xf32, #tpu.memory_space<vmem>>, %arg5: memref<1x32x256xf32, #tpu.memory_space<vmem>>) attributes {dimension_semantics = [#tpu.dimension_semantics<parallel>, #tpu.dimension_semantics<parallel>], iteration_bounds = array<i64: 4, 1>, scalar_prefetch = 0 : i64, scratch_operands = 0 : i64, tpu.core_type = #tpu.core_type<tc>, window_params = [{transform_indices = @transform_0, window_bounds = array<i64: 1, 32, 256>}, {transform_indices = @transform_1, window_bounds = array<i64: 1, 32, 64>}, {transform_indices = @transform_2, window_bounds = array<i64: 1, 32, 64>}, {transform_indices = @transform_3, window_bounds = array<i64: 1, 32, 256>}]} {
    %c0 = arith.constant 0 : index
    %c0_0 = arith.constant 0 : index
    %c0_1 = arith.constant 0 : index
    %0 = vector.load %arg2[%c0, %c0_0, %c0_1] : memref<1x32x256xf32, #tpu.memory_space<vmem>>, vector<1x32x256xf32>
    %1 = vector.shape_cast %0 : vector<1x32x256xf32> to vector<32x256xf32>
    %c0_2 = arith.constant 0 : index
    %c0_3 = arith.constant 0 : index
    %c0_4 = arith.constant 0 : index
    %2 = vector.load %arg3[%c0_2, %c0_3, %c0_4] : memref<1x32x64xf32, #tpu.memory_space<vmem>>, vector<1x32x64xf32>
    %3 = vector.shape_cast %2 : vector<1x32x64xf32> to vector<32x64xf32>
    %c0_5 = arith.constant 0 : index
    %c0_6 = arith.constant 0 : index
    %c0_7 = arith.constant 0 : index
    %4 = vector.load %arg4[%c0_5, %c0_6, %c0_7] : memref<1x32x64xf32, #tpu.memory_space<vmem>>, vector<1x32x64xf32>
    %5 = vector.shape_cast %4 : vector<1x32x64xf32> to vector<32x64xf32>
    %cst = arith.constant dense<0.000000e+00> : vector<256x64xf32>
    %6 = tpu.matmul %1, %3, %cst {dimension_numbers = #tpu.dot_dimension_numbers<[0], [0], [1], [1], [0, 1, 1, 1], [], []>} : vector<32x256xf32>, vector<32x64xf32>, vector<256x64xf32> -> vector<256x64xf32>
    %cst_8 = arith.constant dense<0xFF800000> : vector<256xf32>
    %7 = vector.multi_reduction <maximumf>, %6, %cst_8 [1] : vector<256x64xf32> to vector<256xf32>
    %8 = vector.shape_cast %7 : vector<256xf32> to vector<256x1xf32>
    %9 = vector.broadcast %8 : vector<256x1xf32> to vector<256x64xf32>
    %10 = arith.subf %6, %9 : vector<256x64xf32>
    %11 = math.exp %10 : vector<256x64xf32>
    %cst_9 = arith.constant dense<0.000000e+00> : vector<256xf32>
    %12 = vector.multi_reduction <add>, %11, %cst_9 [1] : vector<256x64xf32> to vector<256xf32>
    %13 = vector.shape_cast %12 : vector<256xf32> to vector<256x1xf32>
    %14 = tpu.reciprocal %13 {approx = true} : vector<256x1xf32> -> vector<256x1xf32>
    %15 = vector.broadcast %14 : vector<256x1xf32> to vector<256x64xf32>
    %16 = arith.mulf %11, %15 : vector<256x64xf32>
    %cst_10 = arith.constant dense<0.000000e+00> : vector<32x256xf32>
    %17 = tpu.matmul %5, %16, %cst_10 {dimension_numbers = #tpu.dot_dimension_numbers<[1], [1], [0], [0], [0, 0, 1, 0], [], []>} : vector<32x64xf32>, vector<256x64xf32>, vector<32x256xf32> -> vector<32x256xf32>
    %c0_11 = arith.constant 0 : index
    %c0_12 = arith.constant 0 : index
    %c0_13 = arith.constant 0 : index
    %18 = vector.load %arg5[%c0_11, %c0_12, %c0_13] : memref<1x32x256xf32, #tpu.memory_space<vmem>>, vector<1x32x256xf32>
    %19 = vector.shape_cast %18 : vector<1x32x256xf32> to vector<32x256xf32>
    %20 = vector.shape_cast %17 : vector<32x256xf32> to vector<1x32x256xf32>
    tpu.vector_store %arg5[%c0_11, %c0_12, %c0_13], %20 {strides = array<i32>} : memref<1x32x256xf32, #tpu.memory_space<vmem>>, vector<1x32x256xf32>,
    return
  }
  func.func @transform_0(%arg0: i32, %arg1: i32) -> (i32, i32, i32) {
    %c0_i32 = arith.constant 0 : i32
    %c0_i32_0 = arith.constant 0 : i32
    return %arg0, %c0_i32, %arg1 : i32, i32, i32
  }
  func.func @transform_1(%arg0: i32, %arg1: i32) -> (i32, i32, i32) {
    %c0_i32 = arith.constant 0 : i32
    %c0_i32_0 = arith.constant 0 : i32
    %c0_i32_1 = arith.constant 0 : i32
    return %arg0, %c0_i32, %c0_i32_0 : i32, i32, i32
  }
  func.func @transform_2(%arg0: i32, %arg1: i32) -> (i32, i32, i32) {
    %c0_i32 = arith.constant 0 : i32
    %c0_i32_0 = arith.constant 0 : i32
    %c0_i32_1 = arith.constant 0 : i32
    return %arg0, %c0_i32, %c0_i32_0 : i32, i32, i32
  }
  func.func @transform_3(%arg0: i32, %arg1: i32) -> (i32, i32, i32) {
    %c0_i32 = arith.constant 0 : i32
    %c0_i32_0 = arith.constant 0 : i32
    return %arg0, %c0_i32, %arg1 : i32, i32, i32
  }
}

module attributes {stable_mosaic.version = 11 : i64} {
  func.func @_pointwise_residual_kernel(%arg0: i32, %arg1: i32, %arg2: memref<1x64x256xf32, #tpu.memory_space<vmem>>, %arg3: memref<32x64xf32, #tpu.memory_space<vmem>>, %arg4: memref<32x1xf32, #tpu.memory_space<vmem>>, %arg5: memref<1x32x256xf32, #tpu.memory_space<vmem>>, %arg6: memref<1x32x256xf32, #tpu.memory_space<vmem>>) attributes {dimension_semantics = [#tpu.dimension_semantics<parallel>, #tpu.dimension_semantics<parallel>], iteration_bounds = array<i64: 2, 1>, scalar_prefetch = 0 : i64, scratch_operands = 0 : i64, tpu.core_type = #tpu.core_type<tc>, window_params = [{transform_indices = @transform_0, window_bounds = array<i64: 1, 64, 256>}, {pipeline_mode = #tpu.pipeline_mode<synchronous>, transform_indices = @transform_1, window_bounds = array<i64: 32, 64>}, {pipeline_mode = #tpu.pipeline_mode<synchronous>, transform_indices = @transform_2, window_bounds = array<i64: 32, 1>}, {transform_indices = @transform_3, window_bounds = array<i64: 1, 32, 256>}, {transform_indices = @transform_4, window_bounds = array<i64: 1, 32, 256>}]} {
    %c0 = arith.constant 0 : index
    %c0_0 = arith.constant 0 : index
    %c0_1 = arith.constant 0 : index
    %0 = vector.load %arg2[%c0, %c0_0, %c0_1] : memref<1x64x256xf32, #tpu.memory_space<vmem>>, vector<1x64x256xf32>
    %1 = vector.shape_cast %0 : vector<1x64x256xf32> to vector<64x256xf32>
    %c0_2 = arith.constant 0 : index
    %c0_3 = arith.constant 0 : index
    %2 = vector.load %arg3[%c0_2, %c0_3] : memref<32x64xf32, #tpu.memory_space<vmem>>, vector<32x64xf32>
    %cst = arith.constant dense<0.000000e+00> : vector<32x256xf32>
    %3 = tpu.matmul %2, %1, %cst {dimension_numbers = #tpu.dot_dimension_numbers<[1], [0], [0], [1], [0, 0, 1, 1], [], []>} : vector<32x64xf32>, vector<64x256xf32>, vector<32x256xf32> -> vector<32x256xf32>
    %c0_4 = arith.constant 0 : index
    %c0_5 = arith.constant 0 : index
    %4 = vector.load %arg4[%c0_4, %c0_5] : memref<32x1xf32, #tpu.memory_space<vmem>>, vector<32x1xf32>
    %5 = vector.broadcast %4 : vector<32x1xf32> to vector<32x256xf32>
    %6 = arith.addf %3, %5 : vector<32x256xf32>
    %c0_6 = arith.constant 0 : index
    %c0_7 = arith.constant 0 : index
    %c0_8 = arith.constant 0 : index
    %7 = vector.load %arg5[%c0_6, %c0_7, %c0_8] : memref<1x32x256xf32, #tpu.memory_space<vmem>>, vector<1x32x256xf32>
    %8 = vector.shape_cast %7 : vector<1x32x256xf32> to vector<32x256xf32>
    %9 = arith.addf %6, %8 : vector<32x256xf32>
    %c0_9 = arith.constant 0 : index
    %c0_10 = arith.constant 0 : index
    %c0_11 = arith.constant 0 : index
    %10 = vector.load %arg6[%c0_9, %c0_10, %c0_11] : memref<1x32x256xf32, #tpu.memory_space<vmem>>, vector<1x32x256xf32>
    %11 = vector.shape_cast %10 : vector<1x32x256xf32> to vector<32x256xf32>
    %12 = vector.shape_cast %9 : vector<32x256xf32> to vector<1x32x256xf32>
    tpu.vector_store %arg6[%c0_9, %c0_10, %c0_11], %12 {strides = array<i32>} : memref<1x32x256xf32, #tpu.memory_space<vmem>>, vector<1x32x256xf32>,
    return
  }
  func.func @transform_0(%arg0: i32, %arg1: i32) -> (i32, i32, i32) {
    %c0_i32 = arith.constant 0 : i32
    %c0_i32_0 = arith.constant 0 : i32
    return %arg0, %c0_i32, %arg1 : i32, i32, i32
  }
  func.func @transform_1(%arg0: i32, %arg1: i32) -> (i32, i32) {
    %c0_i32 = arith.constant 0 : i32
    %c0_i32_0 = arith.constant 0 : i32
    %c0_i32_1 = arith.constant 0 : i32
    return %c0_i32, %c0_i32_0 : i32, i32
  }
  func.func @transform_2(%arg0: i32, %arg1: i32) -> (i32, i32) {
    %c0_i32 = arith.constant 0 : i32
    %c0_i32_0 = arith.constant 0 : i32
    %c0_i32_1 = arith.constant 0 : i32
    return %c0_i32, %c0_i32_0 : i32, i32
  }
  func.func @transform_3(%arg0: i32, %arg1: i32) -> (i32, i32, i32) {
    %c0_i32 = arith.constant 0 : i32
    %c0_i32_0 = arith.constant 0 : i32
    return %arg0, %c0_i32, %arg1 : i32, i32, i32
  }
  func.func @transform_4(%arg0: i32, %arg1: i32) -> (i32, i32, i32) {
    %c0_i32 = arith.constant 0 : i32
    %c0_i32_0 = arith.constant 0 : i32
    return %arg0, %c0_i32, %arg1 : i32, i32, i32
  }
}

module attributes {stable_mosaic.version = 11 : i64} {
  func.func @_ln_pointwise_kernel(%arg0: i32, %arg1: i32, %arg2: memref<1x32x256xf32, #tpu.memory_space<vmem>>, %arg3: memref<64x32xf32, #tpu.memory_space<vmem>>, %arg4: memref<64x1xf32, #tpu.memory_space<vmem>>, %arg5: memref<1x64x256xf32, #tpu.memory_space<vmem>>) attributes {dimension_semantics = [#tpu.dimension_semantics<parallel>, #tpu.dimension_semantics<parallel>], iteration_bounds = array<i64: 2, 1>, scalar_prefetch = 0 : i64, scratch_operands = 0 : i64, tpu.core_type = #tpu.core_type<tc>, window_params = [{transform_indices = @transform_0, window_bounds = array<i64: 1, 32, 256>}, {pipeline_mode = #tpu.pipeline_mode<synchronous>, transform_indices = @transform_1, window_bounds = array<i64: 64, 32>}, {pipeline_mode = #tpu.pipeline_mode<synchronous>, transform_indices = @transform_2, window_bounds = array<i64: 64, 1>}, {transform_indices = @transform_3, window_bounds = array<i64: 1, 64, 256>}]} {
    %c0 = arith.constant 0 : index
    %c0_0 = arith.constant 0 : index
    %c0_1 = arith.constant 0 : index
    %0 = vector.load %arg2[%c0, %c0_0, %c0_1] : memref<1x32x256xf32, #tpu.memory_space<vmem>>, vector<1x32x256xf32>
    %1 = vector.shape_cast %0 : vector<1x32x256xf32> to vector<32x256xf32>
    %cst = arith.constant dense<0.000000e+00> : vector<256xf32>
    %2 = vector.multi_reduction <add>, %1, %cst [0] : vector<32x256xf32> to vector<256xf32>
    %3 = vector.shape_cast %2 : vector<256xf32> to vector<1x256xf32>
    %cst_2 = arith.constant 3.200000e+01 : f32
    %4 = vector.broadcast %cst_2 : f32 to vector<1x256xf32>
    %5 = arith.divf %3, %4 : vector<1x256xf32>
    %6 = vector.broadcast %5 : vector<1x256xf32> to vector<32x256xf32>
    %7 = arith.subf %1, %6 : vector<32x256xf32>
    %8 = arith.mulf %7, %7 : vector<32x256xf32>
    %cst_3 = arith.constant dense<0.000000e+00> : vector<256xf32>
    %9 = vector.multi_reduction <add>, %8, %cst_3 [0] : vector<32x256xf32> to vector<256xf32>
    %10 = vector.shape_cast %9 : vector<256xf32> to vector<1x256xf32>
    %cst_4 = arith.constant 3.200000e+01 : f32
    %11 = vector.broadcast %cst_4 : f32 to vector<1x256xf32>
    %12 = arith.divf %10, %11 : vector<1x256xf32>
    %13 = vector.broadcast %5 : vector<1x256xf32> to vector<32x256xf32>
    %14 = arith.subf %1, %13 : vector<32x256xf32>
    %cst_5 = arith.constant 9.99999974E-6 : f32
    %15 = vector.broadcast %cst_5 : f32 to vector<1x256xf32>
    %16 = arith.addf %12, %15 : vector<1x256xf32>
    %17 = math.rsqrt %16 : vector<1x256xf32>
    %18 = vector.broadcast %17 : vector<1x256xf32> to vector<32x256xf32>
    %19 = arith.mulf %14, %18 : vector<32x256xf32>
    %c0_6 = arith.constant 0 : index
    %c0_7 = arith.constant 0 : index
    %20 = vector.load %arg3[%c0_6, %c0_7] : memref<64x32xf32, #tpu.memory_space<vmem>>, vector<64x32xf32>
    %cst_8 = arith.constant dense<0.000000e+00> : vector<64x256xf32>
    %21 = tpu.matmul %20, %19, %cst_8 {dimension_numbers = #tpu.dot_dimension_numbers<[1], [0], [0], [1], [0, 0, 1, 1], [], []>} : vector<64x32xf32>, vector<32x256xf32>, vector<64x256xf32> -> vector<64x256xf32>
    %c0_9 = arith.constant 0 : index
    %c0_10 = arith.constant 0 : index
    %22 = vector.load %arg4[%c0_9, %c0_10] : memref<64x1xf32, #tpu.memory_space<vmem>>, vector<64x1xf32>
    %23 = vector.broadcast %22 : vector<64x1xf32> to vector<64x256xf32>
    %24 = arith.addf %21, %23 : vector<64x256xf32>
    %cst_11 = arith.constant 5.000000e-01 : f32
    %25 = vector.broadcast %cst_11 : f32 to vector<64x256xf32>
    %26 = arith.mulf %25, %24 : vector<64x256xf32>
    %cst_12 = arith.constant 4.471500e-02 : f32
    %27 = vector.broadcast %cst_12 : f32 to vector<64x256xf32>
    %28 = arith.mulf %27, %24 : vector<64x256xf32>
    %29 = arith.mulf %28, %24 : vector<64x256xf32>
    %30 = arith.mulf %29, %24 : vector<64x256xf32>
    %31 = arith.addf %24, %30 : vector<64x256xf32>
    %cst_13 = arith.constant 0.797884583 : f32
    %32 = vector.broadcast %cst_13 : f32 to vector<64x256xf32>
    %33 = arith.mulf %32, %31 : vector<64x256xf32>
    %34 = math.tanh %33 : vector<64x256xf32>
    %cst_14 = arith.constant 1.000000e+00 : f32
    %35 = vector.broadcast %cst_14 : f32 to vector<64x256xf32>
    %36 = arith.addf %35, %34 : vector<64x256xf32>
    %37 = arith.mulf %26, %36 : vector<64x256xf32>
    %c0_15 = arith.constant 0 : index
    %c0_16 = arith.constant 0 : index
    %c0_17 = arith.constant 0 : index
    %38 = vector.load %arg5[%c0_15, %c0_16, %c0_17] : memref<1x64x256xf32, #tpu.memory_space<vmem>>, vector<1x64x256xf32>
    %39 = vector.shape_cast %38 : vector<1x64x256xf32> to vector<64x256xf32>
    %40 = vector.shape_cast %37 : vector<64x256xf32> to vector<1x64x256xf32>
    tpu.vector_store %arg5[%c0_15, %c0_16, %c0_17], %40 {strides = array<i32>} : memref<1x64x256xf32, #tpu.memory_space<vmem>>, vector<1x64x256xf32>,
    return
  }
  func.func @transform_0(%arg0: i32, %arg1: i32) -> (i32, i32, i32) {
    %c0_i32 = arith.constant 0 : i32
    %c0_i32_0 = arith.constant 0 : i32
    return %arg0, %c0_i32, %arg1 : i32, i32, i32
  }
  func.func @transform_1(%arg0: i32, %arg1: i32) -> (i32, i32) {
    %c0_i32 = arith.constant 0 : i32
    %c0_i32_0 = arith.constant 0 : i32
    %c0_i32_1 = arith.constant 0 : i32
    return %c0_i32, %c0_i32_0 : i32, i32
  }
  func.func @transform_2(%arg0: i32, %arg1: i32) -> (i32, i32) {
    %c0_i32 = arith.constant 0 : i32
    %c0_i32_0 = arith.constant 0 : i32
    %c0_i32_1 = arith.constant 0 : i32
    return %c0_i32, %c0_i32_0 : i32, i32
  }
  func.func @transform_3(%arg0: i32, %arg1: i32) -> (i32, i32, i32) {
    %c0_i32 = arith.constant 0 : i32
    %c0_i32_0 = arith.constant 0 : i32
    return %arg0, %c0_i32, %arg1 : i32, i32, i32
  }
}

</mosaic_0001>

<llo_original>
// kernel: transformer_forward.14
$region0: #{transformer_forward.14}
  #allocation0 [shape = 'u32[]', space=smem, size = 0x4, offset = 0x4, fixed_abs, tag = 'smem constant byte address 0x4 - core index']
  #allocation1 [shape = 'u32[144,128]{1,0:T(1,128)}', space=vmem, size = 0x12000, scoped, tag = 'internal scratch']
  %s0 = inlined_call_operand.vmem [shape: f32[2,32,256], index: 0, kind: input, shape index: {}]
  %s1 = inlined_call_operand.vmem [shape: f32[32,1], index: 1, kind: input, shape index: {}]
  %s2 = inlined_call_operand.vmem [shape: f32[32,1], index: 2, kind: input, shape index: {}]
  %s3 = inlined_call_operand.vmem [shape: f32[2,32,256], index: 3, kind: output, shape index: {}]
  %s4 = sld [smem:[#allocation0]]
  $region45: #{transformer_forward.14} parent=0
    _
  %s6 = ssub.s32 1, %s4
  %s7 = scalar_select 0, %s6, %s4
  loop: start=0, step=1, limit=4
  $region2: #{transformer_forward.14} parent=0 // loop_pre_header
    _
  $region3: #{transformer_forward.14} parent=0 // loop_header
    %s9 = sphi 0, %s13
    %p10 = scmp.ge.s32.totalorder %s9, 4
    %s16 = sphi 0, %s28
    %s17 = sphi 0, %s24
    %s18 = sphi 0, %s16
    %s19 = sphi 0, %s17
    %s20 = sphi 0, %s18
    %s21 = sphi 0, %s19
    %s33 = sphi 0, %s35
    %s36 = sphi 0, %s33
    %s37 = sphi 0, %s36
    %s53 = sphi 0, %s37
    %s57 = sphi 0, %s57
    %s59 = sphi 0, %s57
    %s60 = sphi 0, %s59
    %s74 = sphi 0, %s60
    %s78 = sphi 0, %s78
    %s80 = sphi 0, %s78
    %s81 = sphi 0, %s80
    %s95 = sphi 0, %s81
    %s103 = sphi 0, %s105
    %s106 = sphi 0, %s103
    %s107 = sphi 0, %s106
    %s123 = sphi 0, %s107
  $region4: #{transformer_forward.14} parent=0 // loop_header_branch
    %12 = sbr.rel (%p10) target = $region8
  $region5: #{transformer_forward.14} parent=0 // loop_body
    %s14 = ssub.s32 %s9, 1
    %s15 = ssub.s32 %s9, 2
    %s22 = sadd.s32 1, %s17
    %p23 = scmp.ge.s32.totalorder %s22, 1
    %s24 = scalar_select %p23, 0, %s22
    %s25 = sadd.s32 1, %s16
    %s26 = scalar_select %p23, %s25, %s16
    %p27 = scmp.ge.s32.totalorder %s26, 2
    %s28 = scalar_select %p27, 0, %s26
    %s29 = ssub.s32 %s16, %s28
    %s30 = ssub.s32 %s17, %s24
    %s31 = sor.u32 %s29, %s30
    %p32 = scmp.eq.s32.totalorder %s31, 0
    %s34 = sadd.s32 %s33, 1
    %s35 = scalar_select %p32, %s33, %s34
    %p38 = pneg %p32
    %p39 = scmp.eq.s32.totalorder %s9, 1
    %p40 = por %p38, %p39
    %p41 = scmp.ne.s32.totalorder %s33, %s36
    %p42 = scmp.eq.s32.totalorder %s9, 0
    %p43 = por %p41, %p42
    %p44 = scmp.ne.s32.totalorder %s33, %s36
    %p45 = scmp.eq.s32.totalorder %s14, 1
    %p46 = por %p44, %p45
    %p47 = scmp.ne.s32.totalorder %s36, %s37
    %p48 = scmp.eq.s32.totalorder %s14, 0
    %p49 = por %p47, %p48
    %p50 = scmp.ne.s32.totalorder %s36, %s37
    %p51 = scmp.eq.s32.totalorder %s15, 1
    %p52 = por %p50, %p51
    %p54 = scmp.ne.s32.totalorder %s37, %s53
    %p55 = scmp.eq.s32.totalorder %s15, 0
    %p56 = por %p54, %p55
    %s58 = sadd.s32 %s57, 1
    %p61 = scmp.eq.s32.totalorder %s9, 1
    %p62 = scmp.ne.s32.totalorder %s57, %s59
    %p63 = scmp.eq.s32.totalorder %s9, 0
    %p64 = por %p62, %p63
    %p65 = scmp.ne.s32.totalorder %s57, %s59
    %p66 = scmp.eq.s32.totalorder %s14, 1
    %p67 = por %p65, %p66
    %p68 = scmp.ne.s32.totalorder %s59, %s60
    %p69 = scmp.eq.s32.totalorder %s14, 0
    %p70 = por %p68, %p69
    %p71 = scmp.ne.s32.totalorder %s59, %s60
    %p72 = scmp.eq.s32.totalorder %s15, 1
    %p73 = por %p71, %p72
    %p75 = scmp.ne.s32.totalorder %s60, %s74
    %p76 = scmp.eq.s32.totalorder %s15, 0
    %p77 = por %p75, %p76
    %s79 = sadd.s32 %s78, 1
    %p82 = scmp.eq.s32.totalorder %s9, 1
    %p83 = scmp.ne.s32.totalorder %s78, %s80
    %p84 = scmp.eq.s32.totalorder %s9, 0
    %p85 = por %p83, %p84
    %p86 = scmp.ne.s32.totalorder %s78, %s80
    %p87 = scmp.eq.s32.totalorder %s14, 1
    %p88 = por %p86, %p87
    %p89 = scmp.ne.s32.totalorder %s80, %s81
    %p90 = scmp.eq.s32.totalorder %s14, 0
    %p91 = por %p89, %p90
    %p92 = scmp.ne.s32.totalorder %s80, %s81
    %p93 = scmp.eq.s32.totalorder %s15, 1
    %p94 = por %p92, %p93
    %p96 = scmp.ne.s32.totalorder %s81, %s95
    %p97 = scmp.eq.s32.totalorder %s15, 0
    %p98 = por %p96, %p97
    %s99 = ssub.s32 %s16, %s28
    %s100 = ssub.s32 %s17, %s24
    %s101 = sor.u32 %s99, %s100
    %p102 = scmp.eq.s32.totalorder %s101, 0
    %s104 = sadd.s32 %s103, 1
    %s105 = scalar_select %p102, %s103, %s104
    %p108 = pneg %p102
    %p109 = scmp.eq.s32.totalorder %s9, 1
    %p110 = por %p108, %p109
    %p111 = scmp.ne.s32.totalorder %s103, %s106
    %p112 = scmp.eq.s32.totalorder %s9, 0
    %p113 = por %p111, %p112
    %p114 = scmp.ne.s32.totalorder %s103, %s106
    %p115 = scmp.eq.s32.totalorder %s14, 1
    %p116 = por %p114, %p115
    %p117 = scmp.ne.s32.totalorder %s106, %s107
    %p118 = scmp.eq.s32.totalorder %s14, 0
    %p119 = por %p117, %p118
    %p120 = scmp.ne.s32.totalorder %s106, %s107
    %p121 = scmp.eq.s32.totalorder %s15, 1
    %p122 = por %p120, %p121
    %p124 = scmp.ne.s32.totalorder %s107, %s123
    %p125 = scmp.eq.s32.totalorder %s15, 0
    %p126 = por %p124, %p125
    %p127 = scmp.le.s32.totalorder 1, %s9
    %p128 = scmp.lt.s32.totalorder %s9, 3
    %p129 = pnand %p127, %p128
    %p130 = pneg %p129
    // Predicated region
    $region9: #{transformer_forward.14} parent=5 // pred_check
      _
    $region10: #{transformer_forward.14} parent=5 // pred_check_branch
      %132 = sbr.rel (%p129) target = $region12
    $region11: #{transformer_forward.14} parent=5 // pred_region
      %s133 = ssub.s32 %s9, 1
      // Predicated region
      $region13: #{transformer_forward.14} parent=11 // pred_check
        %p134 = pneg %p70
      $region14: #{transformer_forward.14} parent=11 // pred_check_branch
        %136 = sbr.rel (%p134) target = $region16
      $region15: #{transformer_forward.14} parent=11 // pred_region
        _
      $region16: #{transformer_forward.14} parent=11 // pred_fallthru
        _
      // Predicated region
      $region17: #{transformer_forward.14} parent=11 // pred_check
        %p137 = pneg %p91
      $region18: #{transformer_forward.14} parent=11 // pred_check_branch
        %139 = sbr.rel (%p137) target = $region20
      $region19: #{transformer_forward.14} parent=11 // pred_region
        _
      $region20: #{transformer_forward.14} parent=11 // pred_fallthru
        _
    $region12: #{transformer_forward.14} parent=5 // pred_fallthru
      _
    %p140 = scmp.lt.s32.totalorder %s9, 2
    // Predicated region
    $region21: #{transformer_forward.14} parent=5 // pred_check
      %p141 = pneg %p140
    $region22: #{transformer_forward.14} parent=5 // pred_check_branch
      %143 = sbr.rel (%p141) target = $region24
    $region23: #{transformer_forward.14} parent=5 // pred_region
      // Predicated region
      $region25: #{transformer_forward.14} parent=23 // pred_check
        %p144 = pneg %p43
      $region26: #{transformer_forward.14} parent=23 // pred_check_branch
        %146 = sbr.rel (%p144) target = $region28
      $region27: #{transformer_forward.14} parent=23 // pred_region
        %s147 = smul.u32 2, %s17
        %p148 = scmp.lt.s32.totalorder %s16, 1
        %s149 = scalar_select %p148, %s16, 1
        %p150 = scmp.lt.s32.totalorder %s147, 1
        %s151 = scalar_select %p150, %s147, 1
        %s152 = smul.addr %s149, 8
        %s153 = sadd.s32 %s151, %s152
        %s154 = smul.addr %s153, 8
        %s155 = scalar_lea.vmem %s0, %s154
        %s156 = smul.u32 2, %s17
      $region28: #{transformer_forward.14} parent=23 // pred_fallthru
        _
    $region24: #{transformer_forward.14} parent=5 // pred_fallthru
      _
    %p157 = scmp.le.s32.totalorder 1, %s9
    %p158 = scmp.lt.s32.totalorder %s9, 3
    %p159 = pnand %p157, %p158
    %p160 = pneg %p159
    // Predicated region
    $region29: #{transformer_forward.14} parent=5 // pred_check
      _
    $region30: #{transformer_forward.14} parent=5 // pred_check_branch
      %162 = sbr.rel (%p159) target = $region32
    $region31: #{transformer_forward.14} parent=5 // pred_region
      %s163 = ssub.s32 %s9, 1
      %s164 = smul.u32 2, %s19
      %p165 = scmp.lt.s32.totalorder %s18, 1
      %s166 = scalar_select %p165, %s18, 1
      %p167 = scmp.lt.s32.totalorder %s164, 1
      %s168 = scalar_select %p167, %s164, 1
      %s169 = smul.addr %s166, 8
      %s170 = sadd.s32 %s168, %s169
      %s171 = smul.addr %s170, 8
      %s172 = scalar_lea.vmem %s0, %s171
      %p173 = pneg %p49
      %p174 = pneg %p46
      %p175 = pneg %p70
      %p176 = pneg %p67
      %p177 = pneg %p91
      %p178 = pneg %p88
      %p179 = pneg %p119
      %p180 = pneg %p116
      %s181 = smul.u32 2, %s19
      %p182 = scmp.lt.s32.totalorder %s18, 1
      %s183 = scalar_select %p182, %s18, 1
      %p184 = scmp.lt.s32.totalorder %s181, 1
      %s185 = scalar_select %p184, %s181, 1
      %s186 = smul.addr %s183, 8
      %s187 = sadd.s32 %s185, %s186
      %s188 = smul.addr %s187, 8
      %s189 = scalar_lea.vmem %s3, %s188
      %s190 = smul.u32 2, %s19
      %p191 = scmp.lt.s32.totalorder %s18, 1
      %s192 = scalar_select %p191, %s18, 1
      %p193 = scmp.lt.s32.totalorder %s190, 1
      %s194 = scalar_select %p193, %s190, 1
      %s195 = smul.addr %s192, 8
      %s196 = sadd.s32 %s194, %s195
      %s197 = smul.addr %s196, 8
      %s198 = scalar_lea.vmem %s0, %s197
      %s199 = smul.u32 2, %s19
      %s200 = smul.u32 2, %s19
      %p201 = scmp.lt.s32.totalorder %s18, 1
      %s202 = scalar_select %p201, %s18, 1
      %p203 = scmp.lt.s32.totalorder %s200, 1
      %s204 = scalar_select %p203, %s200, 1
      %s205 = smul.addr %s202, 8
      %s206 = sadd.s32 %s204, %s205
      %s207 = smul.addr %s206, 8
      %s208 = scalar_lea.vmem %s3, %s207
      %s209 = smul.u32 2, %s19
      %v210 = vld [vmem:[%s198] sm:$0xff]
      %v211 = vld [vmem:[%s198 + $0x8] sm:$0xff]
      %v212 = vld [vmem:[%s198 + $0x10] sm:$0xff]
      %v213 = vld [vmem:[%s198 + $0x18] sm:$0xff]
      %v214 = vld [vmem:[%s198 + $0x20] sm:$0xff]
      %v215 = vld [vmem:[%s198 + $0x28] sm:$0xff]
      %v216 = vld [vmem:[%s198 + $0x30] sm:$0xff]
      %v217 = vld [vmem:[%s198 + $0x38] sm:$0xff]
      %v218 = vadd.f32 %v210, %v212
      %v219 = vadd.f32 %v218, %v214
      %v220 = vadd.f32 %v219, %v216
      %v221 = vrot.slane %v220, 4
      %v222 = vadd.f32 %v220, %v221
      %v223 = vrot.slane %v222, 2
      %v224 = vadd.f32 %v222, %v223
      %v225 = vrot.slane %v224, 1
      %v226 = vadd.f32 %v224, %v225
      %v227 = vadd.f32 %v211, %v213
      %v228 = vadd.f32 %v227, %v215
      %v229 = vadd.f32 %v228, %v217
      %v230 = vrot.slane %v229, 4
      %v231 = vadd.f32 %v229, %v230
      %v232 = vrot.slane %v231, 2
      %v233 = vadd.f32 %v231, %v232
      %v234 = vrot.slane %v233, 1
      %v235 = vadd.f32 %v233, %v234
      %v236 = vrcp.pop 32.0
      %v237 = vmul.f32 %v226, %v236
      %v238 = vmul.f32 %v235, %v236
      %v239 = vsub.f32 %v210, %v237
      %v240 = vsub.f32 %v211, %v238
      %v241 = vsub.f32 %v212, %v237
      %v242 = vsub.f32 %v213, %v238
      %v243 = vsub.f32 %v214, %v237
      %v244 = vsub.f32 %v215, %v238
      %v245 = vsub.f32 %v216, %v237
      %v246 = vsub.f32 %v217, %v238
      %v247 = vmul.f32 %v239, %v239
      %v248 = vmul.f32 %v240, %v240
      %v249 = vmul.f32 %v241, %v241
      %v250 = vmul.f32 %v242, %v242
      %v251 = vmul.f32 %v243, %v243
      %v252 = vmul.f32 %v244, %v244
      %v253 = vmul.f32 %v245, %v245
      %v254 = vmul.f32 %v246, %v246
      %v255 = vadd.f32 %v247, %v249
      %v256 = vadd.f32 %v255, %v251
      %v257 = vadd.f32 %v256, %v253
      %v258 = vrot.slane %v257, 4
      %v259 = vadd.f32 %v257, %v258
      %v260 = vrot.slane %v259, 2
      %v261 = vadd.f32 %v259, %v260
      %v262 = vrot.slane %v261, 1
      %v263 = vadd.f32 %v261, %v262
      %v264 = vadd.f32 %v248, %v250
      %v265 = vadd.f32 %v264, %v252
      %v266 = vadd.f32 %v265, %v254
      %v267 = vrot.slane %v266, 4
      %v268 = vadd.f32 %v266, %v267
      %v269 = vrot.slane %v268, 2
      %v270 = vadd.f32 %v268, %v269
      %v271 = vrot.slane %v270, 1
      %v272 = vadd.f32 %v270, %v271
      %v273 = vmul.f32 %v263, %v236
      %v274 = vmul.f32 %v272, %v236
      %v275 = vadd.f32 %v273, 1e-05
      %v276 = vadd.f32 %v274, 1e-05
      %v277 = vrsqrt.pop %v275
      %v278 = vrsqrt.pop %v276
      %v279 = vmul.f32 %v239, %v277
      %v280 = vmul.f32 %v240, %v278
      %v281 = vmul.f32 %v241, %v277
      %v282 = vmul.f32 %v242, %v278
      %v283 = vmul.f32 %v243, %v277
      %v284 = vmul.f32 %v244, %v278
      %v285 = vmul.f32 %v245, %v277
      %v286 = vmul.f32 %v246, %v278
      %v287 = vld [vmem:[%s1] sm:$0xff]
      %v288 = vld [vmem:[%s1 + $0x8] sm:$0xff]
      %v289 = vld [vmem:[%s1 + $0x10] sm:$0xff]
      %v290 = vld [vmem:[%s1 + $0x18] sm:$0xff]
      %292 = vset.pattern.permute.xlu0 0
      %293 = vperm.xlu0 %292, %v287
      %v294 = vpop.permute.xlu0 %293
      %297 = vset.pattern.permute.xlu0 0
      %298 = vperm.xlu0 %297, %v288
      %v299 = vpop.permute.xlu0 %298
      %302 = vset.pattern.permute.xlu0 0
      %303 = vperm.xlu0 %302, %v289
      %v304 = vpop.permute.xlu0 %303
      %307 = vset.pattern.permute.xlu0 0
      %308 = vperm.xlu0 %307, %v290
      %v309 = vpop.permute.xlu0 %308
      %v311 = vmul.f32 %v279, %v294
      %v312 = vmul.f32 %v280, %v294
      %v313 = vmul.f32 %v281, %v299
      %v314 = vmul.f32 %v282, %v299
      %v315 = vmul.f32 %v283, %v304
      %v316 = vmul.f32 %v284, %v304
      %v317 = vmul.f32 %v285, %v309
      %v318 = vmul.f32 %v286, %v309
      %v319 = vld [vmem:[%s2] sm:$0xff]
      %v320 = vld [vmem:[%s2 + $0x8] sm:$0xff]
      %v321 = vld [vmem:[%s2 + $0x10] sm:$0xff]
      %v322 = vld [vmem:[%s2 + $0x18] sm:$0xff]
      %324 = vset.pattern.permute.xlu0 0
      %325 = vperm.xlu0 %324, %v319
      %v326 = vpop.permute.xlu0 %325
      %329 = vset.pattern.permute.xlu0 0
      %330 = vperm.xlu0 %329, %v320
      %v331 = vpop.permute.xlu0 %330
      %334 = vset.pattern.permute.xlu0 0
      %335 = vperm.xlu0 %334, %v321
      %v336 = vpop.permute.xlu0 %335
      %339 = vset.pattern.permute.xlu0 0
      %340 = vperm.xlu0 %339, %v322
      %v341 = vpop.permute.xlu0 %340
      %v343 = vadd.f32 %v311, %v326
      %v344 = vadd.f32 %v312, %v326
      %v345 = vadd.f32 %v313, %v331
      %v346 = vadd.f32 %v314, %v331
      %v347 = vadd.f32 %v315, %v336
      %v348 = vadd.f32 %v316, %v336
      %v349 = vadd.f32 %v317, %v341
      %v350 = vadd.f32 %v318, %v341
      %351 = vst [vmem:[%s208] sm:$0xff] %v343
      %352 = vst [vmem:[%s208 + $0x8] sm:$0xff] %v344
      %353 = vst [vmem:[%s208 + $0x10] sm:$0xff] %v345
      %354 = vst [vmem:[%s208 + $0x18] sm:$0xff] %v346
      %355 = vst [vmem:[%s208 + $0x20] sm:$0xff] %v347
      %356 = vst [vmem:[%s208 + $0x28] sm:$0xff] %v348
      %357 = vst [vmem:[%s208 + $0x30] sm:$0xff] %v349
      %358 = vst [vmem:[%s208 + $0x38] sm:$0xff] %v350
      %s359 = smul.u32 2, %s19
      %p360 = scmp.lt.s32.totalorder %s18, 1
      %s361 = scalar_select %p360, %s18, 1
      %p362 = scmp.lt.s32.totalorder %s359, 1
      %s363 = scalar_select %p362, %s359, 1
      %s364 = smul.addr %s361, 8
      %s365 = sadd.s32 %s363, %s364
      %s366 = smul.addr %s365, 8
      %s367 = scalar_lea.vmem %s3, %s366
      // Predicated region
      $region33: #{transformer_forward.14} parent=31 // pred_check
        %p368 = pneg %p116
      $region34: #{transformer_forward.14} parent=31 // pred_check_branch
        %370 = sbr.rel (%p368) target = $region36
      $region35: #{transformer_forward.14} parent=31 // pred_region
        %s371 = smul.u32 2, %s19
      $region36: #{transformer_forward.14} parent=31 // pred_fallthru
        _
    $region32: #{transformer_forward.14} parent=5 // pred_fallthru
      _
    %p372 = scmp.le.s32.totalorder 2, %s9
    // Predicated region
    $region37: #{transformer_forward.14} parent=5 // pred_check
      %p373 = pneg %p372
    $region38: #{transformer_forward.14} parent=5 // pred_check_branch
      %375 = sbr.rel (%p373) target = $region40
    $region39: #{transformer_forward.14} parent=5 // pred_region
      %s376 = ssub.s32 %s9, 2
      // Predicated region
      $region41: #{transformer_forward.14} parent=39 // pred_check
        %p377 = pneg %p122
      $region42: #{transformer_forward.14} parent=39 // pred_check_branch
        %379 = sbr.rel (%p377) target = $region44
      $region43: #{transformer_forward.14} parent=39 // pred_region
        %s380 = smul.u32 2, %s21
        %p381 = scmp.lt.s32.totalorder %s20, 1
        %s382 = scalar_select %p381, %s20, 1
        %p383 = scmp.lt.s32.totalorder %s380, 1
        %s384 = scalar_select %p383, %s380, 1
        %s385 = smul.addr %s382, 8
        %s386 = sadd.s32 %s384, %s385
        %s387 = smul.addr %s386, 8
        %s388 = scalar_lea.vmem %s3, %s387
      $region44: #{transformer_forward.14} parent=39 // pred_fallthru
        _
    $region40: #{transformer_forward.14} parent=5 // pred_fallthru
      _
  $region6: #{transformer_forward.14} parent=0 // loop_footer
    %s13 = sadd.s32 1, %s9
  $region7: #{transformer_forward.14} parent=0 // loop_footer_branch
    %8 = sbr.rel target = $region3
  $region8: #{transformer_forward.14} parent=0 // loop_exit
    _

// kernel: transformer_forward.15
$region0: #{transformer_forward.15}
  #allocation0 [shape = 'u32[]', space=smem, size = 0x4, offset = 0x4, fixed_abs, tag = 'smem constant byte address 0x4 - core index']
  #allocation1 [shape = 'u32[144,128]{1,0:T(1,128)}', space=vmem, size = 0x12000, scoped, tag = 'internal scratch']
  %s0 = inlined_call_operand.vmem [shape: f32[2,32,256], index: 0, kind: input, shape index: {}]
  %s1 = inlined_call_operand.vmem [shape: f32[64,32], index: 1, kind: input, shape index: {}]
  %s2 = inlined_call_operand.vmem [shape: f32[64,1], index: 2, kind: input, shape index: {}]
  %s3 = inlined_call_operand.vmem [shape: f32[2,64,256], index: 3, kind: output, shape index: {}]
  %s4 = sld [smem:[#allocation0]]
  $region45: #{transformer_forward.15} parent=0
    _
  %s6 = ssub.s32 1, %s4
  %s7 = scalar_select 0, %s6, %s4
  loop: start=0, step=1, limit=4
  $region2: #{transformer_forward.15} parent=0 // loop_pre_header
    _
  $region3: #{transformer_forward.15} parent=0 // loop_header
    %s9 = sphi 0, %s13
    %p10 = scmp.ge.s32.totalorder %s9, 4
    %s16 = sphi 0, %s28
    %s17 = sphi 0, %s24
    %s18 = sphi 0, %s16
    %s19 = sphi 0, %s17
    %s20 = sphi 0, %s18
    %s21 = sphi 0, %s19
    %s33 = sphi 0, %s35
    %s36 = sphi 0, %s33
    %s37 = sphi 0, %s36
    %s53 = sphi 0, %s37
    %s57 = sphi 0, %s57
    %s59 = sphi 0, %s57
    %s60 = sphi 0, %s59
    %s74 = sphi 0, %s60
    %s78 = sphi 0, %s78
    %s80 = sphi 0, %s78
    %s81 = sphi 0, %s80
    %s95 = sphi 0, %s81
    %s103 = sphi 0, %s105
    %s106 = sphi 0, %s103
    %s107 = sphi 0, %s106
    %s123 = sphi 0, %s107
  $region4: #{transformer_forward.15} parent=0 // loop_header_branch
    %12 = sbr.rel (%p10) target = $region8
  $region5: #{transformer_forward.15} parent=0 // loop_body
    %s14 = ssub.s32 %s9, 1
    %s15 = ssub.s32 %s9, 2
    %s22 = sadd.s32 1, %s17
    %p23 = scmp.ge.s32.totalorder %s22, 1
    %s24 = scalar_select %p23, 0, %s22
    %s25 = sadd.s32 1, %s16
    %s26 = scalar_select %p23, %s25, %s16
    %p27 = scmp.ge.s32.totalorder %s26, 2
    %s28 = scalar_select %p27, 0, %s26
    %s29 = ssub.s32 %s16, %s28
    %s30 = ssub.s32 %s17, %s24
    %s31 = sor.u32 %s29, %s30
    %p32 = scmp.eq.s32.totalorder %s31, 0
    %s34 = sadd.s32 %s33, 1
    %s35 = scalar_select %p32, %s33, %s34
    %p38 = pneg %p32
    %p39 = scmp.eq.s32.totalorder %s9, 1
    %p40 = por %p38, %p39
    %p41 = scmp.ne.s32.totalorder %s33, %s36
    %p42 = scmp.eq.s32.totalorder %s9, 0
    %p43 = por %p41, %p42
    %p44 = scmp.ne.s32.totalorder %s33, %s36
    %p45 = scmp.eq.s32.totalorder %s14, 1
    %p46 = por %p44, %p45
    %p47 = scmp.ne.s32.totalorder %s36, %s37
    %p48 = scmp.eq.s32.totalorder %s14, 0
    %p49 = por %p47, %p48
    %p50 = scmp.ne.s32.totalorder %s36, %s37
    %p51 = scmp.eq.s32.totalorder %s15, 1
    %p52 = por %p50, %p51
    %p54 = scmp.ne.s32.totalorder %s37, %s53
    %p55 = scmp.eq.s32.totalorder %s15, 0
    %p56 = por %p54, %p55
    %s58 = sadd.s32 %s57, 1
    %p61 = scmp.eq.s32.totalorder %s9, 1
    %p62 = scmp.ne.s32.totalorder %s57, %s59
    %p63 = scmp.eq.s32.totalorder %s9, 0
    %p64 = por %p62, %p63
    %p65 = scmp.ne.s32.totalorder %s57, %s59
    %p66 = scmp.eq.s32.totalorder %s14, 1
    %p67 = por %p65, %p66
    %p68 = scmp.ne.s32.totalorder %s59, %s60
    %p69 = scmp.eq.s32.totalorder %s14, 0
    %p70 = por %p68, %p69
    %p71 = scmp.ne.s32.totalorder %s59, %s60
    %p72 = scmp.eq.s32.totalorder %s15, 1
    %p73 = por %p71, %p72
    %p75 = scmp.ne.s32.totalorder %s60, %s74
    %p76 = scmp.eq.s32.totalorder %s15, 0
    %p77 = por %p75, %p76
    %s79 = sadd.s32 %s78, 1
    %p82 = scmp.eq.s32.totalorder %s9, 1
    %p83 = scmp.ne.s32.totalorder %s78, %s80
    %p84 = scmp.eq.s32.totalorder %s9, 0
    %p85 = por %p83, %p84
    %p86 = scmp.ne.s32.totalorder %s78, %s80
    %p87 = scmp.eq.s32.totalorder %s14, 1
    %p88 = por %p86, %p87
    %p89 = scmp.ne.s32.totalorder %s80, %s81
    %p90 = scmp.eq.s32.totalorder %s14, 0
    %p91 = por %p89, %p90
    %p92 = scmp.ne.s32.totalorder %s80, %s81
    %p93 = scmp.eq.s32.totalorder %s15, 1
    %p94 = por %p92, %p93
    %p96 = scmp.ne.s32.totalorder %s81, %s95
    %p97 = scmp.eq.s32.totalorder %s15, 0
    %p98 = por %p96, %p97
    %s99 = ssub.s32 %s16, %s28
    %s100 = ssub.s32 %s17, %s24
    %s101 = sor.u32 %s99, %s100
    %p102 = scmp.eq.s32.totalorder %s101, 0
    %s104 = sadd.s32 %s103, 1
    %s105 = scalar_select %p102, %s103, %s104
    %p108 = pneg %p102
    %p109 = scmp.eq.s32.totalorder %s9, 1
    %p110 = por %p108, %p109
    %p111 = scmp.ne.s32.totalorder %s103, %s106
    %p112 = scmp.eq.s32.totalorder %s9, 0
    %p113 = por %p111, %p112
    %p114 = scmp.ne.s32.totalorder %s103, %s106
    %p115 = scmp.eq.s32.totalorder %s14, 1
    %p116 = por %p114, %p115
    %p117 = scmp.ne.s32.totalorder %s106, %s107
    %p118 = scmp.eq.s32.totalorder %s14, 0
    %p119 = por %p117, %p118
    %p120 = scmp.ne.s32.totalorder %s106, %s107
    %p121 = scmp.eq.s32.totalorder %s15, 1
    %p122 = por %p120, %p121
    %p124 = scmp.ne.s32.totalorder %s107, %s123
    %p125 = scmp.eq.s32.totalorder %s15, 0
    %p126 = por %p124, %p125
    %p127 = scmp.le.s32.totalorder 1, %s9
    %p128 = scmp.lt.s32.totalorder %s9, 3
    %p129 = pnand %p127, %p128
    %p130 = pneg %p129
    // Predicated region
    $region9: #{transformer_forward.15} parent=5 // pred_check
      _
    $region10: #{transformer_forward.15} parent=5 // pred_check_branch
      %132 = sbr.rel (%p129) target = $region12
    $region11: #{transformer_forward.15} parent=5 // pred_region
      %s133 = ssub.s32 %s9, 1
      // Predicated region
      $region13: #{transformer_forward.15} parent=11 // pred_check
        %p134 = pneg %p70
      $region14: #{transformer_forward.15} parent=11 // pred_check_branch
        %136 = sbr.rel (%p134) target = $region16
      $region15: #{transformer_forward.15} parent=11 // pred_region
        _
      $region16: #{transformer_forward.15} parent=11 // pred_fallthru
        _
      // Predicated region
      $region17: #{transformer_forward.15} parent=11 // pred_check
        %p137 = pneg %p91
      $region18: #{transformer_forward.15} parent=11 // pred_check_branch
        %139 = sbr.rel (%p137) target = $region20
      $region19: #{transformer_forward.15} parent=11 // pred_region
        _
      $region20: #{transformer_forward.15} parent=11 // pred_fallthru
        _
    $region12: #{transformer_forward.15} parent=5 // pred_fallthru
      _
    %p140 = scmp.lt.s32.totalorder %s9, 2
    // Predicated region
    $region21: #{transformer_forward.15} parent=5 // pred_check
      %p141 = pneg %p140
    $region22: #{transformer_forward.15} parent=5 // pred_check_branch
      %143 = sbr.rel (%p141) target = $region24
    $region23: #{transformer_forward.15} parent=5 // pred_region
      // Predicated region
      $region25: #{transformer_forward.15} parent=23 // pred_check
        %p144 = pneg %p43
      $region26: #{transformer_forward.15} parent=23 // pred_check_branch
        %146 = sbr.rel (%p144) target = $region28
      $region27: #{transformer_forward.15} parent=23 // pred_region
        %s147 = smul.u32 2, %s17
        %p148 = scmp.lt.s32.totalorder %s16, 1
        %s149 = scalar_select %p148, %s16, 1
        %p150 = scmp.lt.s32.totalorder %s147, 1
        %s151 = scalar_select %p150, %s147, 1
        %s152 = smul.addr %s149, 8
        %s153 = sadd.s32 %s151, %s152
        %s154 = smul.addr %s153, 8
        %s155 = scalar_lea.vmem %s0, %s154
        %s156 = smul.u32 2, %s17
      $region28: #{transformer_forward.15} parent=23 // pred_fallthru
        _
    $region24: #{transformer_forward.15} parent=5 // pred_fallthru
      _
    %p157 = scmp.le.s32.totalorder 1, %s9
    %p158 = scmp.lt.s32.totalorder %s9, 3
    %p159 = pnand %p157, %p158
    %p160 = pneg %p159
    // Predicated region
    $region29: #{transformer_forward.15} parent=5 // pred_check
      _
    $region30: #{transformer_forward.15} parent=5 // pred_check_branch
      %162 = sbr.rel (%p159) target = $region32
    $region31: #{transformer_forward.15} parent=5 // pred_region
      %s163 = ssub.s32 %s9, 1
      %s164 = smul.u32 2, %s19
      %p165 = scmp.lt.s32.totalorder %s18, 1
      %s166 = scalar_select %p165, %s18, 1
      %p167 = scmp.lt.s32.totalorder %s164, 1
      %s168 = scalar_select %p167, %s164, 1
      %s169 = smul.addr %s166, 8
      %s170 = sadd.s32 %s168, %s169
      %s171 = smul.addr %s170, 8
      %s172 = scalar_lea.vmem %s0, %s171
      %p173 = pneg %p49
      %p174 = pneg %p46
      %p175 = pneg %p70
      %p176 = pneg %p67
      %p177 = pneg %p91
      %p178 = pneg %p88
      %p179 = pneg %p119
      %p180 = pneg %p116
      %s181 = smul.u32 2, %s19
      %p182 = scmp.lt.s32.totalorder %s18, 1
      %s183 = scalar_select %p182, %s18, 1
      %p184 = scmp.lt.s32.totalorder %s181, 1
      %s185 = scalar_select %p184, %s181, 1
      %s186 = smul.addr %s183, 16
      %s187 = sadd.s32 %s185, %s186
      %s188 = smul.addr %s187, 8
      %s189 = scalar_lea.vmem %s3, %s188
      %s190 = smul.u32 2, %s19
      %p191 = scmp.lt.s32.totalorder %s18, 1
      %s192 = scalar_select %p191, %s18, 1
      %p193 = scmp.lt.s32.totalorder %s190, 1
      %s194 = scalar_select %p193, %s190, 1
      %s195 = smul.addr %s192, 8
      %s196 = sadd.s32 %s194, %s195
      %s197 = smul.addr %s196, 8
      %s198 = scalar_lea.vmem %s0, %s197
      %s199 = smul.u32 2, %s19
      %s200 = smul.u32 2, %s19
      %p201 = scmp.lt.s32.totalorder %s18, 1
      %s202 = scalar_select %p201, %s18, 1
      %p203 = scmp.lt.s32.totalorder %s200, 1
      %s204 = scalar_select %p203, %s200, 1
      %s205 = smul.addr %s202, 16
      %s206 = sadd.s32 %s204, %s205
      %s207 = smul.addr %s206, 8
      %s208 = scalar_lea.vmem %s3, %s207
      %s209 = smul.u32 2, %s19
      %v210 = vld [vmem:[%s198] sm:$0xff]
      %v211 = vld [vmem:[%s198 + $0x8] sm:$0xff]
      %v212 = vld [vmem:[%s198 + $0x10] sm:$0xff]
      %v213 = vld [vmem:[%s198 + $0x18] sm:$0xff]
      %v214 = vld [vmem:[%s198 + $0x20] sm:$0xff]
      %v215 = vld [vmem:[%s198 + $0x28] sm:$0xff]
      %v216 = vld [vmem:[%s198 + $0x30] sm:$0xff]
      %v217 = vld [vmem:[%s198 + $0x38] sm:$0xff]
      %v218 = vld [vmem:[%s1] sm:$0xff]
      %v219 = vld [vmem:[%s1 + $0x8] sm:$0xff]
      %v220 = vld [vmem:[%s1 + $0x10] sm:$0xff]
      %v221 = vld [vmem:[%s1 + $0x18] sm:$0xff]
      %v222 = vld [vmem:[%s1 + $0x20] sm:$0xff]
      %v223 = vld [vmem:[%s1 + $0x28] sm:$0xff]
      %v224 = vld [vmem:[%s1 + $0x30] sm:$0xff]
      %v225 = vld [vmem:[%s1 + $0x38] sm:$0xff]
      %v226 = vld [vmem:[%s2] sm:$0xff]
      %v227 = vld [vmem:[%s2 + $0x8] sm:$0xff]
      %v228 = vld [vmem:[%s2 + $0x10] sm:$0xff]
      %v229 = vld [vmem:[%s2 + $0x18] sm:$0xff]
      %v230 = vld [vmem:[%s2 + $0x20] sm:$0xff]
      %v231 = vld [vmem:[%s2 + $0x28] sm:$0xff]
      %v232 = vld [vmem:[%s2 + $0x30] sm:$0xff]
      %v233 = vld [vmem:[%s2 + $0x38] sm:$0xff]
      %235 = vset.pattern.permute.xlu0 0
      %236 = vperm.xlu0 %235, %v226
      %v237 = vpop.permute.xlu0 %236
      %240 = vset.pattern.permute.xlu0 0
      %241 = vperm.xlu0 %240, %v227
      %v242 = vpop.permute.xlu0 %241
      %245 = vset.pattern.permute.xlu0 0
      %246 = vperm.xlu0 %245, %v228
      %v247 = vpop.permute.xlu0 %246
      %250 = vset.pattern.permute.xlu0 0
      %251 = vperm.xlu0 %250, %v229
      %v252 = vpop.permute.xlu0 %251
      %255 = vset.pattern.permute.xlu0 0
      %256 = vperm.xlu0 %255, %v230
      %v257 = vpop.permute.xlu0 %256
      %260 = vset.pattern.permute.xlu0 0
      %261 = vperm.xlu0 %260, %v231
      %v262 = vpop.permute.xlu0 %261
      %265 = vset.pattern.permute.xlu0 0
      %266 = vperm.xlu0 %265, %v232
      %v267 = vpop.permute.xlu0 %266
      %270 = vset.pattern.permute.xlu0 0
      %271 = vperm.xlu0 %270, %v233
      %v272 = vpop.permute.xlu0 %271
      %vm274 = vcmask 261120
      %v276 = vsel %vm274, %v218, 0
      %v279 = vsel %vm274, %v219, 0
      %v282 = vsel %vm274, %v220, 0
      %v285 = vsel %vm274, %v221, 0
      %v288 = vsel %vm274, %v222, 0
      %v291 = vsel %vm274, %v223, 0
      %v294 = vsel %vm274, %v224, 0
      %v297 = vsel %vm274, %v225, 0
      %299 = vmatprep.subr.mxu0 %v211
      %300 = vmatpush1.msra.mxu0 %v210
      %301 = vmatprep.subr.mxu0 %v213
      %302 = vmatpush1.msra.mxu0 %v212
      %303 = vmatprep.subr.mxu0 %v215
      %304 = vmatpush1.msra.mxu0 %v214
      %305 = vmatprep.subr.mxu0 %v217
      %306 = vmatpush1.msra.mxu0 %v216
      %307 = vmatprep.subr.mxu0 0.0
      %308 = vmatpush1.msra.mxu0 0.0
      %309 = vmatprep.subr.mxu0 0.0
      %310 = vmatpush1.msra.mxu0 0.0
      %311 = vmatprep.subr.mxu0 0.0
      %312 = vmatpush1.msra.mxu0 0.0
      %313 = vmatprep.subr.mxu0 0.0
      %314 = vmatpush1.msra.mxu0 0.0
      %315 = vmatprep.subr.mxu0 0.0
      %316 = vmatpush1.msra.mxu0 0.0
      %317 = vmatprep.subr.mxu0 0.0
      %318 = vmatpush1.msra.mxu0 0.0
      %319 = vmatprep.subr.mxu0 0.0
      %320 = vmatpush1.msra.mxu0 0.0
      %321 = vmatprep.subr.mxu0 0.0
      %322 = vmatpush1.msra.mxu0 0.0
      %323 = vmatprep.subr.mxu0 0.0
      %324 = vmatpush1.msra.mxu0 0.0
      %325 = vmatprep.subr.mxu0 0.0
      %326 = vmatpush1.msra.mxu0 0.0
      %327 = vmatprep.subr.mxu0 0.0
      %328 = vmatpush1.msra.mxu0 0.0
      %329 = vmatprep.subr.mxu0 0.0
      %330 = vmatpush1.msra.mxu0 0.0
      %331 = vmatprep.subr.mxu0 0.0
      %332 = vmatpush1.msra.mxu0 0.0
      %333 = vmatprep.subr.mxu0 0.0
      %334 = vmatpush1.msra.mxu0 0.0
      %335 = vmatprep.subr.mxu0 0.0
      %336 = vmatpush1.msra.mxu0 0.0
      %337 = vmatprep.subr.mxu0 0.0
      %338 = vmatpush1.msra.mxu0 0.0
      %339 = vmatprep.subr.mxu0 0.0
      %340 = vmatpush1.msra.mxu0 0.0
      %341 = vmatprep.subr.mxu0 0.0
      %342 = vmatpush1.msra.mxu0 0.0
      %343 = vmatprep.subr.mxu0 0.0
      %344 = vmatpush1.msra.mxu0 0.0
      %345 = vmatprep.subr.mxu0 0.0
      %346 = vmatpush1.msra.mxu0 0.0
      %347 = vmatprep.subr.mxu0 0.0
      %348 = vmatpush1.msra.mxu0 0.0
      %349 = vmatprep.subr.mxu0 0.0
      %350 = vmatpush1.msra.mxu0 0.0
      %351 = vmatprep.subr.mxu0 0.0
      %352 = vmatpush1.msra.mxu0 0.0
      %353 = vmatprep.subr.mxu0 0.0
      %354 = vmatpush1.msra.mxu0 0.0
      %355 = vmatprep.subr.mxu0 0.0
      %356 = vmatpush1.msra.mxu0 0.0
      %357 = vmatprep.subr.mxu0 0.0
      %358 = vmatpush1.msra.mxu0 0.0
      %359 = vmatprep.subr.mxu0 0.0
      %360 = vmatpush1.msra.mxu0 0.0
      %361 = vmatprep.subr.mxu0 0.0
      %362 = vmatpush1.msra.mxu0 0.0
      %363 = vmatprep.mubr.f32.mxu0 0.0
      %364 = vmatmul.mubr.f32.gmra.mrb[0].mxu0 %v276
      %v365 = vpop.f32.mrb[0].mxu0
      %v366 = vadd.f32 %v237, %v365
      %v367 = vpop.f32.mrb[0].mxu0
      %v368 = vadd.f32 %v237, %v367
      %369 = vmatprep.mubr.f32.mxu0 0.0
      %370 = vmatmul.mubr.f32.gmra.mrb[0].mxu0 %v279
      %v371 = vpop.f32.mrb[0].mxu0
      %v372 = vadd.f32 %v242, %v371
      %v373 = vpop.f32.mrb[0].mxu0
      %v374 = vadd.f32 %v242, %v373
      %375 = vmatprep.mubr.f32.mxu0 0.0
      %376 = vmatmul.mubr.f32.gmra.mrb[0].mxu0 %v282
      %v377 = vpop.f32.mrb[0].mxu0
      %v378 = vadd.f32 %v247, %v377
      %v379 = vpop.f32.mrb[0].mxu0
      %v380 = vadd.f32 %v247, %v379
      %381 = vmatprep.mubr.f32.mxu0 0.0
      %382 = vmatmul.mubr.f32.gmra.mrb[0].mxu0 %v285
      %v383 = vpop.f32.mrb[0].mxu0
      %v384 = vadd.f32 %v252, %v383
      %v385 = vpop.f32.mrb[0].mxu0
      %v386 = vadd.f32 %v252, %v385
      %387 = vmatprep.mubr.f32.mxu0 0.0
      %388 = vmatmul.mubr.f32.gmra.mrb[0].mxu0 %v288
      %v389 = vpop.f32.mrb[0].mxu0
      %v390 = vadd.f32 %v257, %v389
      %v391 = vpop.f32.mrb[0].mxu0
      %v392 = vadd.f32 %v257, %v391
      %393 = vmatprep.mubr.f32.mxu0 0.0
      %394 = vmatmul.mubr.f32.gmra.mrb[0].mxu0 %v291
      %v395 = vpop.f32.mrb[0].mxu0
      %v396 = vadd.f32 %v262, %v395
      %v397 = vpop.f32.mrb[0].mxu0
      %v398 = vadd.f32 %v262, %v397
      %399 = vmatprep.mubr.f32.mxu0 0.0
      %400 = vmatmul.mubr.f32.gmra.mrb[0].mxu0 %v294
      %v401 = vpop.f32.mrb[0].mxu0
      %v402 = vadd.f32 %v267, %v401
      %v403 = vpop.f32.mrb[0].mxu0
      %v404 = vadd.f32 %v267, %v403
      %405 = vmatprep.mubr.f32.mxu0 0.0
      %406 = vmatmul.mubr.f32.gmra.mrb[0].mxu0 %v297
      %v407 = vpop.f32.mrb[0].mxu0
      %v408 = vadd.f32 %v272, %v407
      %v409 = vpop.f32.mrb[0].mxu0
      %v410 = vadd.f32 %v272, %v409
      %411 = vdwg.mxu0
      %412 = vst [vmem:[%s208] sm:$0xff] %v366
      %413 = vst [vmem:[%s208 + $0x8] sm:$0xff] %v368
      %414 = vst [vmem:[%s208 + $0x10] sm:$0xff] %v372
      %415 = vst [vmem:[%s208 + $0x18] sm:$0xff] %v374
      %416 = vst [vmem:[%s208 + $0x20] sm:$0xff] %v378
      %417 = vst [vmem:[%s208 + $0x28] sm:$0xff] %v380
      %418 = vst [vmem:[%s208 + $0x30] sm:$0xff] %v384
      %419 = vst [vmem:[%s208 + $0x38] sm:$0xff] %v386
      %420 = vst [vmem:[%s208 + $0x40] sm:$0xff] %v390
      %421 = vst [vmem:[%s208 + $0x48] sm:$0xff] %v392
      %422 = vst [vmem:[%s208 + $0x50] sm:$0xff] %v396
      %423 = vst [vmem:[%s208 + $0x58] sm:$0xff] %v398
      %424 = vst [vmem:[%s208 + $0x60] sm:$0xff] %v402
      %425 = vst [vmem:[%s208 + $0x68] sm:$0xff] %v404
      %426 = vst [vmem:[%s208 + $0x70] sm:$0xff] %v408
      %427 = vst [vmem:[%s208 + $0x78] sm:$0xff] %v410
      %s428 = smul.u32 2, %s19
      %p429 = scmp.lt.s32.totalorder %s18, 1
      %s430 = scalar_select %p429, %s18, 1
      %p431 = scmp.lt.s32.totalorder %s428, 1
      %s432 = scalar_select %p431, %s428, 1
      %s433 = smul.addr %s430, 16
      %s434 = sadd.s32 %s432, %s433
      %s435 = smul.addr %s434, 8
      %s436 = scalar_lea.vmem %s3, %s435
      // Predicated region
      $region33: #{transformer_forward.15} parent=31 // pred_check
        %p437 = pneg %p116
      $region34: #{transformer_forward.15} parent=31 // pred_check_branch
        %439 = sbr.rel (%p437) target = $region36
      $region35: #{transformer_forward.15} parent=31 // pred_region
        %s440 = smul.u32 2, %s19
      $region36: #{transformer_forward.15} parent=31 // pred_fallthru
        _
    $region32: #{transformer_forward.15} parent=5 // pred_fallthru
      _
    %p441 = scmp.le.s32.totalorder 2, %s9
    // Predicated region
    $region37: #{transformer_forward.15} parent=5 // pred_check
      %p442 = pneg %p441
    $region38: #{transformer_forward.15} parent=5 // pred_check_branch
      %444 = sbr.rel (%p442) target = $region40
    $region39: #{transformer_forward.15} parent=5 // pred_region
      %s445 = ssub.s32 %s9, 2
      // Predicated region
      $region41: #{transformer_forward.15} parent=39 // pred_check
        %p446 = pneg %p122
      $region42: #{transformer_forward.15} parent=39 // pred_check_branch
        %448 = sbr.rel (%p446) target = $region44
      $region43: #{transformer_forward.15} parent=39 // pred_region
        %s449 = smul.u32 2, %s21
        %p450 = scmp.lt.s32.totalorder %s20, 1
        %s451 = scalar_select %p450, %s20, 1
        %p452 = scmp.lt.s32.totalorder %s449, 1
        %s453 = scalar_select %p452, %s449, 1
        %s454 = smul.addr %s451, 16
        %s455 = sadd.s32 %s453, %s454
        %s456 = smul.addr %s455, 8
        %s457 = scalar_lea.vmem %s3, %s456
      $region44: #{transformer_forward.15} parent=39 // pred_fallthru
        _
    $region40: #{transformer_forward.15} parent=5 // pred_fallthru
      _
  $region6: #{transformer_forward.15} parent=0 // loop_footer
    %s13 = sadd.s32 1, %s9
  $region7: #{transformer_forward.15} parent=0 // loop_footer_branch
    %8 = sbr.rel target = $region3
  $region8: #{transformer_forward.15} parent=0 // loop_exit
    _

// kernel: transformer_forward.16
$region0: #{transformer_forward.16}
  #allocation0 [shape = 'u32[]', space=smem, size = 0x4, offset = 0x4, fixed_abs, tag = 'smem constant byte address 0x4 - core index']
  #allocation1 [shape = 'u32[144,128]{1,0:T(1,128)}', space=vmem, size = 0x12000, scoped, tag = 'internal scratch']
  %s0 = inlined_call_operand.vmem [shape: f32[2,32,64], index: 0, kind: input, shape index: {}]
  %s1 = inlined_call_operand.vmem [shape: f32[128,32], index: 1, kind: input, shape index: {}]
  %s2 = inlined_call_operand.vmem [shape: f32[128,1], index: 2, kind: input, shape index: {}]
  %s3 = inlined_call_operand.vmem [shape: f32[2,128,64], index: 3, kind: output, shape index: {}]
  %s4 = sld [smem:[#allocation0]]
  $region45: #{transformer_forward.16} parent=0
    _
  %s6 = ssub.s32 1, %s4
  %s7 = scalar_select 0, %s6, %s4
  loop: start=0, step=1, limit=4
  $region2: #{transformer_forward.16} parent=0 // loop_pre_header
    _
  $region3: #{transformer_forward.16} parent=0 // loop_header
    %s9 = sphi 0, %s13
    %p10 = scmp.ge.s32.totalorder %s9, 4
    %s16 = sphi 0, %s28
    %s17 = sphi 0, %s24
    %s18 = sphi 0, %s16
    %s19 = sphi 0, %s17
    %s20 = sphi 0, %s18
    %s21 = sphi 0, %s19
    %s33 = sphi 0, %s35
    %s36 = sphi 0, %s33
    %s37 = sphi 0, %s36
    %s53 = sphi 0, %s37
    %s57 = sphi 0, %s57
    %s59 = sphi 0, %s57
    %s60 = sphi 0, %s59
    %s74 = sphi 0, %s60
    %s78 = sphi 0, %s78
    %s80 = sphi 0, %s78
    %s81 = sphi 0, %s80
    %s95 = sphi 0, %s81
    %s103 = sphi 0, %s105
    %s106 = sphi 0, %s103
    %s107 = sphi 0, %s106
    %s123 = sphi 0, %s107
  $region4: #{transformer_forward.16} parent=0 // loop_header_branch
    %12 = sbr.rel (%p10) target = $region8
  $region5: #{transformer_forward.16} parent=0 // loop_body
    %s14 = ssub.s32 %s9, 1
    %s15 = ssub.s32 %s9, 2
    %s22 = sadd.s32 1, %s17
    %p23 = scmp.ge.s32.totalorder %s22, 1
    %s24 = scalar_select %p23, 0, %s22
    %s25 = sadd.s32 1, %s16
    %s26 = scalar_select %p23, %s25, %s16
    %p27 = scmp.ge.s32.totalorder %s26, 2
    %s28 = scalar_select %p27, 0, %s26
    %s29 = ssub.s32 %s16, %s28
    %s30 = ssub.s32 %s17, %s24
    %s31 = sor.u32 %s29, %s30
    %p32 = scmp.eq.s32.totalorder %s31, 0
    %s34 = sadd.s32 %s33, 1
    %s35 = scalar_select %p32, %s33, %s34
    %p38 = pneg %p32
    %p39 = scmp.eq.s32.totalorder %s9, 1
    %p40 = por %p38, %p39
    %p41 = scmp.ne.s32.totalorder %s33, %s36
    %p42 = scmp.eq.s32.totalorder %s9, 0
    %p43 = por %p41, %p42
    %p44 = scmp.ne.s32.totalorder %s33, %s36
    %p45 = scmp.eq.s32.totalorder %s14, 1
    %p46 = por %p44, %p45
    %p47 = scmp.ne.s32.totalorder %s36, %s37
    %p48 = scmp.eq.s32.totalorder %s14, 0
    %p49 = por %p47, %p48
    %p50 = scmp.ne.s32.totalorder %s36, %s37
    %p51 = scmp.eq.s32.totalorder %s15, 1
    %p52 = por %p50, %p51
    %p54 = scmp.ne.s32.totalorder %s37, %s53
    %p55 = scmp.eq.s32.totalorder %s15, 0
    %p56 = por %p54, %p55
    %s58 = sadd.s32 %s57, 1
    %p61 = scmp.eq.s32.totalorder %s9, 1
    %p62 = scmp.ne.s32.totalorder %s57, %s59
    %p63 = scmp.eq.s32.totalorder %s9, 0
    %p64 = por %p62, %p63
    %p65 = scmp.ne.s32.totalorder %s57, %s59
    %p66 = scmp.eq.s32.totalorder %s14, 1
    %p67 = por %p65, %p66
    %p68 = scmp.ne.s32.totalorder %s59, %s60
    %p69 = scmp.eq.s32.totalorder %s14, 0
    %p70 = por %p68, %p69
    %p71 = scmp.ne.s32.totalorder %s59, %s60
    %p72 = scmp.eq.s32.totalorder %s15, 1
    %p73 = por %p71, %p72
    %p75 = scmp.ne.s32.totalorder %s60, %s74
    %p76 = scmp.eq.s32.totalorder %s15, 0
    %p77 = por %p75, %p76
    %s79 = sadd.s32 %s78, 1
    %p82 = scmp.eq.s32.totalorder %s9, 1
    %p83 = scmp.ne.s32.totalorder %s78, %s80
    %p84 = scmp.eq.s32.totalorder %s9, 0
    %p85 = por %p83, %p84
    %p86 = scmp.ne.s32.totalorder %s78, %s80
    %p87 = scmp.eq.s32.totalorder %s14, 1
    %p88 = por %p86, %p87
    %p89 = scmp.ne.s32.totalorder %s80, %s81
    %p90 = scmp.eq.s32.totalorder %s14, 0
    %p91 = por %p89, %p90
    %p92 = scmp.ne.s32.totalorder %s80, %s81
    %p93 = scmp.eq.s32.totalorder %s15, 1
    %p94 = por %p92, %p93
    %p96 = scmp.ne.s32.totalorder %s81, %s95
    %p97 = scmp.eq.s32.totalorder %s15, 0
    %p98 = por %p96, %p97
    %s99 = ssub.s32 %s16, %s28
    %s100 = ssub.s32 %s17, %s24
    %s101 = sor.u32 %s99, %s100
    %p102 = scmp.eq.s32.totalorder %s101, 0
    %s104 = sadd.s32 %s103, 1
    %s105 = scalar_select %p102, %s103, %s104
    %p108 = pneg %p102
    %p109 = scmp.eq.s32.totalorder %s9, 1
    %p110 = por %p108, %p109
    %p111 = scmp.ne.s32.totalorder %s103, %s106
    %p112 = scmp.eq.s32.totalorder %s9, 0
    %p113 = por %p111, %p112
    %p114 = scmp.ne.s32.totalorder %s103, %s106
    %p115 = scmp.eq.s32.totalorder %s14, 1
    %p116 = por %p114, %p115
    %p117 = scmp.ne.s32.totalorder %s106, %s107
    %p118 = scmp.eq.s32.totalorder %s14, 0
    %p119 = por %p117, %p118
    %p120 = scmp.ne.s32.totalorder %s106, %s107
    %p121 = scmp.eq.s32.totalorder %s15, 1
    %p122 = por %p120, %p121
    %p124 = scmp.ne.s32.totalorder %s107, %s123
    %p125 = scmp.eq.s32.totalorder %s15, 0
    %p126 = por %p124, %p125
    %p127 = scmp.le.s32.totalorder 1, %s9
    %p128 = scmp.lt.s32.totalorder %s9, 3
    %p129 = pnand %p127, %p128
    %p130 = pneg %p129
    // Predicated region
    $region9: #{transformer_forward.16} parent=5 // pred_check
      _
    $region10: #{transformer_forward.16} parent=5 // pred_check_branch
      %132 = sbr.rel (%p129) target = $region12
    $region11: #{transformer_forward.16} parent=5 // pred_region
      %s133 = ssub.s32 %s9, 1
      // Predicated region
      $region13: #{transformer_forward.16} parent=11 // pred_check
        %p134 = pneg %p70
      $region14: #{transformer_forward.16} parent=11 // pred_check_branch
        %136 = sbr.rel (%p134) target = $region16
      $region15: #{transformer_forward.16} parent=11 // pred_region
        _
      $region16: #{transformer_forward.16} parent=11 // pred_fallthru
        _
      // Predicated region
      $region17: #{transformer_forward.16} parent=11 // pred_check
        %p137 = pneg %p91
      $region18: #{transformer_forward.16} parent=11 // pred_check_branch
        %139 = sbr.rel (%p137) target = $region20
      $region19: #{transformer_forward.16} parent=11 // pred_region
        _
      $region20: #{transformer_forward.16} parent=11 // pred_fallthru
        _
    $region12: #{transformer_forward.16} parent=5 // pred_fallthru
      _
    %p140 = scmp.lt.s32.totalorder %s9, 2
    // Predicated region
    $region21: #{transformer_forward.16} parent=5 // pred_check
      %p141 = pneg %p140
    $region22: #{transformer_forward.16} parent=5 // pred_check_branch
      %143 = sbr.rel (%p141) target = $region24
    $region23: #{transformer_forward.16} parent=5 // pred_region
      // Predicated region
      $region25: #{transformer_forward.16} parent=23 // pred_check
        %p144 = pneg %p43
      $region26: #{transformer_forward.16} parent=23 // pred_check_branch
        %146 = sbr.rel (%p144) target = $region28
      $region27: #{transformer_forward.16} parent=23 // pred_region
        %p147 = scmp.lt.s32.totalorder %s16, 1
        %s148 = scalar_select %p147, %s16, 1
        %p149 = scmp.lt.s32.totalorder %s17, 0
        %s150 = scalar_select %p149, %s17, 0
        %s151 = smul.addr %s148, 4
        %s152 = sadd.s32 %s150, %s151
        %s153 = smul.addr %s152, 8
        %s154 = scalar_lea.vmem %s0, %s153
      $region28: #{transformer_forward.16} parent=23 // pred_fallthru
        _
    $region24: #{transformer_forward.16} parent=5 // pred_fallthru
      _
    %p155 = scmp.le.s32.totalorder 1, %s9
    %p156 = scmp.lt.s32.totalorder %s9, 3
    %p157 = pnand %p155, %p156
    %p158 = pneg %p157
    // Predicated region
    $region29: #{transformer_forward.16} parent=5 // pred_check
      _
    $region30: #{transformer_forward.16} parent=5 // pred_check_branch
      %160 = sbr.rel (%p157) target = $region32
    $region31: #{transformer_forward.16} parent=5 // pred_region
      %s161 = ssub.s32 %s9, 1
      %p162 = scmp.lt.s32.totalorder %s18, 1
      %s163 = scalar_select %p162, %s18, 1
      %p164 = scmp.lt.s32.totalorder %s19, 0
      %s165 = scalar_select %p164, %s19, 0
      %s166 = smul.addr %s163, 4
      %s167 = sadd.s32 %s165, %s166
      %s168 = smul.addr %s167, 8
      %s169 = scalar_lea.vmem %s0, %s168
      %p170 = pneg %p49
      %p171 = pneg %p46
      %p172 = pneg %p70
      %p173 = pneg %p67
      %p174 = pneg %p91
      %p175 = pneg %p88
      %p176 = pneg %p119
      %p177 = pneg %p116
      %p178 = scmp.lt.s32.totalorder %s18, 1
      %s179 = scalar_select %p178, %s18, 1
      %p180 = scmp.lt.s32.totalorder %s19, 0
      %s181 = scalar_select %p180, %s19, 0
      %s182 = smul.addr %s179, 16
      %s183 = sadd.s32 %s181, %s182
      %s184 = smul.addr %s183, 8
      %s185 = scalar_lea.vmem %s3, %s184
      %p186 = scmp.lt.s32.totalorder %s18, 1
      %s187 = scalar_select %p186, %s18, 1
      %p188 = scmp.lt.s32.totalorder %s19, 0
      %s189 = scalar_select %p188, %s19, 0
      %s190 = smul.addr %s187, 4
      %s191 = sadd.s32 %s189, %s190
      %s192 = smul.addr %s191, 8
      %s193 = scalar_lea.vmem %s0, %s192
      %p194 = scmp.lt.s32.totalorder %s18, 1
      %s195 = scalar_select %p194, %s18, 1
      %p196 = scmp.lt.s32.totalorder %s19, 0
      %s197 = scalar_select %p196, %s19, 0
      %s198 = smul.addr %s195, 16
      %s199 = sadd.s32 %s197, %s198
      %s200 = smul.addr %s199, 8
      %s201 = scalar_lea.vmem %s3, %s200
      %v202 = vld [vmem:[%s193] sm:$0xff]
      %v203 = vld [vmem:[%s193 + $0x8] sm:$0xff]
      %v204 = vld [vmem:[%s193 + $0x10] sm:$0xff]
      %v205 = vld [vmem:[%s193 + $0x18] sm:$0xff]
      %v206 = vld [vmem:[%s1] sm:$0xff]
      %v207 = vld [vmem:[%s1 + $0x8] sm:$0xff]
      %v208 = vld [vmem:[%s1 + $0x10] sm:$0xff]
      %v209 = vld [vmem:[%s1 + $0x18] sm:$0xff]
      %v210 = vld [vmem:[%s1 + $0x20] sm:$0xff]
      %v211 = vld [vmem:[%s1 + $0x28] sm:$0xff]
      %v212 = vld [vmem:[%s1 + $0x30] sm:$0xff]
      %v213 = vld [vmem:[%s1 + $0x38] sm:$0xff]
      %v214 = vld [vmem:[%s1 + $0x40] sm:$0xff]
      %v215 = vld [vmem:[%s1 + $0x48] sm:$0xff]
      %v216 = vld [vmem:[%s1 + $0x50] sm:$0xff]
      %v217 = vld [vmem:[%s1 + $0x58] sm:$0xff]
      %v218 = vld [vmem:[%s1 + $0x60] sm:$0xff]
      %v219 = vld [vmem:[%s1 + $0x68] sm:$0xff]
      %v220 = vld [vmem:[%s1 + $0x70] sm:$0xff]
      %v221 = vld [vmem:[%s1 + $0x78] sm:$0xff]
      %v222 = vld [vmem:[%s2] sm:$0xff]
      %v223 = vld [vmem:[%s2 + $0x8] sm:$0xff]
      %v224 = vld [vmem:[%s2 + $0x10] sm:$0xff]
      %v225 = vld [vmem:[%s2 + $0x18] sm:$0xff]
      %v226 = vld [vmem:[%s2 + $0x20] sm:$0xff]
      %v227 = vld [vmem:[%s2 + $0x28] sm:$0xff]
      %v228 = vld [vmem:[%s2 + $0x30] sm:$0xff]
      %v229 = vld [vmem:[%s2 + $0x38] sm:$0xff]
      %v230 = vld [vmem:[%s2 + $0x40] sm:$0xff]
      %v231 = vld [vmem:[%s2 + $0x48] sm:$0xff]
      %v232 = vld [vmem:[%s2 + $0x50] sm:$0xff]
      %v233 = vld [vmem:[%s2 + $0x58] sm:$0xff]
      %v234 = vld [vmem:[%s2 + $0x60] sm:$0xff]
      %v235 = vld [vmem:[%s2 + $0x68] sm:$0xff]
      %v236 = vld [vmem:[%s2 + $0x70] sm:$0xff]
      %v237 = vld [vmem:[%s2 + $0x78] sm:$0xff]
      %239 = vset.pattern.permute.xlu0 0
      %240 = vperm.xlu0 %239, %v222
      %v241 = vpop.permute.xlu0 %240
      %244 = vset.pattern.permute.xlu0 0
      %245 = vperm.xlu0 %244, %v223
      %v246 = vpop.permute.xlu0 %245
      %249 = vset.pattern.permute.xlu0 0
      %250 = vperm.xlu0 %249, %v224
      %v251 = vpop.permute.xlu0 %250
      %254 = vset.pattern.permute.xlu0 0
      %255 = vperm.xlu0 %254, %v225
      %v256 = vpop.permute.xlu0 %255
      %259 = vset.pattern.permute.xlu0 0
      %260 = vperm.xlu0 %259, %v226
      %v261 = vpop.permute.xlu0 %260
      %264 = vset.pattern.permute.xlu0 0
      %265 = vperm.xlu0 %264, %v227
      %v266 = vpop.permute.xlu0 %265
      %269 = vset.pattern.permute.xlu0 0
      %270 = vperm.xlu0 %269, %v228
      %v271 = vpop.permute.xlu0 %270
      %274 = vset.pattern.permute.xlu0 0
      %275 = vperm.xlu0 %274, %v229
      %v276 = vpop.permute.xlu0 %275
      %279 = vset.pattern.permute.xlu0 0
      %280 = vperm.xlu0 %279, %v230
      %v281 = vpop.permute.xlu0 %280
      %284 = vset.pattern.permute.xlu0 0
      %285 = vperm.xlu0 %284, %v231
      %v286 = vpop.permute.xlu0 %285
      %289 = vset.pattern.permute.xlu0 0
      %290 = vperm.xlu0 %289, %v232
      %v291 = vpop.permute.xlu0 %290
      %294 = vset.pattern.permute.xlu0 0
      %295 = vperm.xlu0 %294, %v233
      %v296 = vpop.permute.xlu0 %295
      %299 = vset.pattern.permute.xlu0 0
      %300 = vperm.xlu0 %299, %v234
      %v301 = vpop.permute.xlu0 %300
      %304 = vset.pattern.permute.xlu0 0
      %305 = vperm.xlu0 %304, %v235
      %v306 = vpop.permute.xlu0 %305
      %309 = vset.pattern.permute.xlu0 0
      %310 = vperm.xlu0 %309, %v236
      %v311 = vpop.permute.xlu0 %310
      %314 = vset.pattern.permute.xlu0 0
      %315 = vperm.xlu0 %314, %v237
      %v316 = vpop.permute.xlu0 %315
      %vm318 = vcmask 261120
      %v320 = vsel %vm318, %v206, 0
      %v323 = vsel %vm318, %v207, 0
      %v326 = vsel %vm318, %v208, 0
      %v329 = vsel %vm318, %v209, 0
      %v332 = vsel %vm318, %v210, 0
      %v335 = vsel %vm318, %v211, 0
      %v338 = vsel %vm318, %v212, 0
      %v341 = vsel %vm318, %v213, 0
      %v344 = vsel %vm318, %v214, 0
      %v347 = vsel %vm318, %v215, 0
      %v350 = vsel %vm318, %v216, 0
      %v353 = vsel %vm318, %v217, 0
      %v356 = vsel %vm318, %v218, 0
      %v359 = vsel %vm318, %v219, 0
      %v362 = vsel %vm318, %v220, 0
      %v365 = vsel %vm318, %v221, 0
      %367 = vmatprep.subr.mxu0 0.0
      %368 = vmatpush1.msra.mxu0 %v202
      %369 = vmatprep.subr.mxu0 0.0
      %370 = vmatpush1.msra.mxu0 %v203
      %371 = vmatprep.subr.mxu0 0.0
      %372 = vmatpush1.msra.mxu0 %v204
      %373 = vmatprep.subr.mxu0 0.0
      %374 = vmatpush1.msra.mxu0 %v205
      %375 = vmatprep.subr.mxu0 0.0
      %376 = vmatpush1.msra.mxu0 0.0
      %377 = vmatprep.subr.mxu0 0.0
      %378 = vmatpush1.msra.mxu0 0.0
      %379 = vmatprep.subr.mxu0 0.0
      %380 = vmatpush1.msra.mxu0 0.0
      %381 = vmatprep.subr.mxu0 0.0
      %382 = vmatpush1.msra.mxu0 0.0
      %383 = vmatprep.subr.mxu0 0.0
      %384 = vmatpush1.msra.mxu0 0.0
      %385 = vmatprep.subr.mxu0 0.0
      %386 = vmatpush1.msra.mxu0 0.0
      %387 = vmatprep.subr.mxu0 0.0
      %388 = vmatpush1.msra.mxu0 0.0
      %389 = vmatprep.subr.mxu0 0.0
      %390 = vmatpush1.msra.mxu0 0.0
      %391 = vmatprep.subr.mxu0 0.0
      %392 = vmatpush1.msra.mxu0 0.0
      %393 = vmatprep.subr.mxu0 0.0
      %394 = vmatpush1.msra.mxu0 0.0
      %395 = vmatprep.subr.mxu0 0.0
      %396 = vmatpush1.msra.mxu0 0.0
      %397 = vmatprep.subr.mxu0 0.0
      %398 = vmatpush1.msra.mxu0 0.0
      %399 = vmatprep.subr.mxu0 0.0
      %400 = vmatpush1.msra.mxu0 0.0
      %401 = vmatprep.subr.mxu0 0.0
      %402 = vmatpush1.msra.mxu0 0.0
      %403 = vmatprep.subr.mxu0 0.0
      %404 = vmatpush1.msra.mxu0 0.0
      %405 = vmatprep.subr.mxu0 0.0
      %406 = vmatpush1.msra.mxu0 0.0
      %407 = vmatprep.subr.mxu0 0.0
      %408 = vmatpush1.msra.mxu0 0.0
      %409 = vmatprep.subr.mxu0 0.0
      %410 = vmatpush1.msra.mxu0 0.0
      %411 = vmatprep.subr.mxu0 0.0
      %412 = vmatpush1.msra.mxu0 0.0
      %413 = vmatprep.subr.mxu0 0.0
      %414 = vmatpush1.msra.mxu0 0.0
      %415 = vmatprep.subr.mxu0 0.0
      %416 = vmatpush1.msra.mxu0 0.0
      %417 = vmatprep.subr.mxu0 0.0
      %418 = vmatpush1.msra.mxu0 0.0
      %419 = vmatprep.subr.mxu0 0.0
      %420 = vmatpush1.msra.mxu0 0.0
      %421 = vmatprep.subr.mxu0 0.0
      %422 = vmatpush1.msra.mxu0 0.0
      %423 = vmatprep.subr.mxu0 0.0
      %424 = vmatpush1.msra.mxu0 0.0
      %425 = vmatprep.subr.mxu0 0.0
      %426 = vmatpush1.msra.mxu0 0.0
      %427 = vmatprep.subr.mxu0 0.0
      %428 = vmatpush1.msra.mxu0 0.0
      %429 = vmatprep.subr.mxu0 0.0
      %430 = vmatpush1.msra.mxu0 0.0
      %431 = vmatprep.mubr.f32.mxu0 0.0
      %432 = vmatmul.mubr.f32.gmra.mrb[0].mxu0 %v320
      %v433 = vpop.f32.mrb[0].mxu0
      %v434 = vadd.f32 %v241, %v433
      %v435 = vpop.f32.mrb[0].mxu0
      %436 = vmatprep.mubr.f32.mxu0 0.0
      %437 = vmatmul.mubr.f32.gmra.mrb[0].mxu0 %v323
      %v438 = vpop.f32.mrb[0].mxu0
      %v439 = vadd.f32 %v246, %v438
      %v440 = vpop.f32.mrb[0].mxu0
      %441 = vmatprep.mubr.f32.mxu0 0.0
      %442 = vmatmul.mubr.f32.gmra.mrb[0].mxu0 %v326
      %v443 = vpop.f32.mrb[0].mxu0
      %v444 = vadd.f32 %v251, %v443
      %v445 = vpop.f32.mrb[0].mxu0
      %446 = vmatprep.mubr.f32.mxu0 0.0
      %447 = vmatmul.mubr.f32.gmra.mrb[0].mxu0 %v329
      %v448 = vpop.f32.mrb[0].mxu0
      %v449 = vadd.f32 %v256, %v448
      %v450 = vpop.f32.mrb[0].mxu0
      %451 = vmatprep.mubr.f32.mxu0 0.0
      %452 = vmatmul.mubr.f32.gmra.mrb[0].mxu0 %v332
      %v453 = vpop.f32.mrb[0].mxu0
      %v454 = vadd.f32 %v261, %v453
      %v455 = vpop.f32.mrb[0].mxu0
      %456 = vmatprep.mubr.f32.mxu0 0.0
      %457 = vmatmul.mubr.f32.gmra.mrb[0].mxu0 %v335
      %v458 = vpop.f32.mrb[0].mxu0
      %v459 = vadd.f32 %v266, %v458
      %v460 = vpop.f32.mrb[0].mxu0
      %461 = vmatprep.mubr.f32.mxu0 0.0
      %462 = vmatmul.mubr.f32.gmra.mrb[0].mxu0 %v338
      %v463 = vpop.f32.mrb[0].mxu0
      %v464 = vadd.f32 %v271, %v463
      %v465 = vpop.f32.mrb[0].mxu0
      %466 = vmatprep.mubr.f32.mxu0 0.0
      %467 = vmatmul.mubr.f32.gmra.mrb[0].mxu0 %v341
      %v468 = vpop.f32.mrb[0].mxu0
      %v469 = vadd.f32 %v276, %v468
      %v470 = vpop.f32.mrb[0].mxu0
      %471 = vmatprep.mubr.f32.mxu0 0.0
      %472 = vmatmul.mubr.f32.gmra.mrb[0].mxu0 %v344
      %v473 = vpop.f32.mrb[0].mxu0
      %v474 = vadd.f32 %v281, %v473
      %v475 = vpop.f32.mrb[0].mxu0
      %476 = vmatprep.mubr.f32.mxu0 0.0
      %477 = vmatmul.mubr.f32.gmra.mrb[0].mxu0 %v347
      %v478 = vpop.f32.mrb[0].mxu0
      %v479 = vadd.f32 %v286, %v478
      %v480 = vpop.f32.mrb[0].mxu0
      %481 = vmatprep.mubr.f32.mxu0 0.0
      %482 = vmatmul.mubr.f32.gmra.mrb[0].mxu0 %v350
      %v483 = vpop.f32.mrb[0].mxu0
      %v484 = vadd.f32 %v291, %v483
      %v485 = vpop.f32.mrb[0].mxu0
      %486 = vmatprep.mubr.f32.mxu0 0.0
      %487 = vmatmul.mubr.f32.gmra.mrb[0].mxu0 %v353
      %v488 = vpop.f32.mrb[0].mxu0
      %v489 = vadd.f32 %v296, %v488
      %v490 = vpop.f32.mrb[0].mxu0
      %491 = vmatprep.mubr.f32.mxu0 0.0
      %492 = vmatmul.mubr.f32.gmra.mrb[0].mxu0 %v356
      %v493 = vpop.f32.mrb[0].mxu0
      %v494 = vadd.f32 %v301, %v493
      %v495 = vpop.f32.mrb[0].mxu0
      %496 = vmatprep.mubr.f32.mxu0 0.0
      %497 = vmatmul.mubr.f32.gmra.mrb[0].mxu0 %v359
      %v498 = vpop.f32.mrb[0].mxu0
      %v499 = vadd.f32 %v306, %v498
      %v500 = vpop.f32.mrb[0].mxu0
      %501 = vmatprep.mubr.f32.mxu0 0.0
      %502 = vmatmul.mubr.f32.gmra.mrb[0].mxu0 %v362
      %v503 = vpop.f32.mrb[0].mxu0
      %v504 = vadd.f32 %v311, %v503
      %v505 = vpop.f32.mrb[0].mxu0
      %506 = vmatprep.mubr.f32.mxu0 0.0
      %507 = vmatmul.mubr.f32.gmra.mrb[0].mxu0 %v365
      %v508 = vpop.f32.mrb[0].mxu0
      %v509 = vadd.f32 %v316, %v508
      %v510 = vpop.f32.mrb[0].mxu0
      %511 = vdwg.mxu0
      %vm512 = vcmask 523264
      %513 = vst.msk [vmem:[%s201] sm:$0xff] %vm512, %v434
      %514 = vst.msk [vmem:[%s201 + $0x8] sm:$0xff] %vm512, %v439
      %515 = vst.msk [vmem:[%s201 + $0x10] sm:$0xff] %vm512, %v444
      %516 = vst.msk [vmem:[%s201 + $0x18] sm:$0xff] %vm512, %v449
      %517 = vst.msk [vmem:[%s201 + $0x20] sm:$0xff] %vm512, %v454
      %518 = vst.msk [vmem:[%s201 + $0x28] sm:$0xff] %vm512, %v459
      %519 = vst.msk [vmem:[%s201 + $0x30] sm:$0xff] %vm512, %v464
      %520 = vst.msk [vmem:[%s201 + $0x38] sm:$0xff] %vm512, %v469
      %521 = vst.msk [vmem:[%s201 + $0x40] sm:$0xff] %vm512, %v474
      %522 = vst.msk [vmem:[%s201 + $0x48] sm:$0xff] %vm512, %v479
      %523 = vst.msk [vmem:[%s201 + $0x50] sm:$0xff] %vm512, %v484
      %524 = vst.msk [vmem:[%s201 + $0x58] sm:$0xff] %vm512, %v489
      %525 = vst.msk [vmem:[%s201 + $0x60] sm:$0xff] %vm512, %v494
      %526 = vst.msk [vmem:[%s201 + $0x68] sm:$0xff] %vm512, %v499
      %527 = vst.msk [vmem:[%s201 + $0x70] sm:$0xff] %vm512, %v504
      %528 = vst.msk [vmem:[%s201 + $0x78] sm:$0xff] %vm512, %v509
      %p529 = scmp.lt.s32.totalorder %s18, 1
      %s530 = scalar_select %p529, %s18, 1
      %p531 = scmp.lt.s32.totalorder %s19, 0
      %s532 = scalar_select %p531, %s19, 0
      %s533 = smul.addr %s530, 16
      %s534 = sadd.s32 %s532, %s533
      %s535 = smul.addr %s534, 8
      %s536 = scalar_lea.vmem %s3, %s535
      // Predicated region
      $region33: #{transformer_forward.16} parent=31 // pred_check
        %p537 = pneg %p116
      $region34: #{transformer_forward.16} parent=31 // pred_check_branch
        %539 = sbr.rel (%p537) target = $region36
      $region35: #{transformer_forward.16} parent=31 // pred_region
        _
      $region36: #{transformer_forward.16} parent=31 // pred_fallthru
        _
    $region32: #{transformer_forward.16} parent=5 // pred_fallthru
      _
    %p540 = scmp.le.s32.totalorder 2, %s9
    // Predicated region
    $region37: #{transformer_forward.16} parent=5 // pred_check
      %p541 = pneg %p540
    $region38: #{transformer_forward.16} parent=5 // pred_check_branch
      %543 = sbr.rel (%p541) target = $region40
    $region39: #{transformer_forward.16} parent=5 // pred_region
      %s544 = ssub.s32 %s9, 2
      // Predicated region
      $region41: #{transformer_forward.16} parent=39 // pred_check
        %p545 = pneg %p122
      $region42: #{transformer_forward.16} parent=39 // pred_check_branch
        %547 = sbr.rel (%p545) target = $region44
      $region43: #{transformer_forward.16} parent=39 // pred_region
        %p548 = scmp.lt.s32.totalorder %s20, 1
        %s549 = scalar_select %p548, %s20, 1
        %p550 = scmp.lt.s32.totalorder %s21, 0
        %s551 = scalar_select %p550, %s21, 0
        %s552 = smul.addr %s549, 16
        %s553 = sadd.s32 %s551, %s552
        %s554 = smul.addr %s553, 8
        %s555 = scalar_lea.vmem %s3, %s554
      $region44: #{transformer_forward.16} parent=39 // pred_fallthru
        _
    $region40: #{transformer_forward.16} parent=5 // pred_fallthru
      _
  $region6: #{transformer_forward.16} parent=0 // loop_footer
    %s13 = sadd.s32 1, %s9
  $region7: #{transformer_forward.16} parent=0 // loop_footer_branch
    %8 = sbr.rel target = $region3
  $region8: #{transformer_forward.16} parent=0 // loop_exit
    _

// kernel: transformer_forward.17
$region0: #{transformer_forward.17}
  #allocation0 [shape = 'u32[]', space=smem, size = 0x4, offset = 0x4, fixed_abs, tag = 'smem constant byte address 0x4 - core index']
  #allocation1 [shape = 'u32[144,128]{1,0:T(1,128)}', space=vmem, size = 0x12000, scoped, tag = 'internal scratch']
  %s0 = inlined_call_operand.vmem [shape: f32[4,32,256], index: 0, kind: input, shape index: {}]
  %s1 = inlined_call_operand.vmem [shape: f32[4,32,64], index: 1, kind: input, shape index: {}]
  %s2 = inlined_call_operand.vmem [shape: f32[4,32,64], index: 2, kind: input, shape index: {}]
  %s3 = inlined_call_operand.vmem [shape: f32[4,32,256], index: 3, kind: output, shape index: {}]
  %s4 = sld [smem:[#allocation0]]
  $region45: #{transformer_forward.17} parent=0
    _
  %s6 = ssub.s32 1, %s4
  %s7 = scalar_select 0, %s6, %s4
  loop: start=0, step=1, limit=6
  $region2: #{transformer_forward.17} parent=0 // loop_pre_header
    _
  $region3: #{transformer_forward.17} parent=0 // loop_header
    %s9 = sphi 0, %s13
    %p10 = scmp.ge.s32.totalorder %s9, 6
    %s16 = sphi 0, %s28
    %s17 = sphi 0, %s24
    %s18 = sphi 0, %s16
    %s19 = sphi 0, %s17
    %s20 = sphi 0, %s18
    %s21 = sphi 0, %s19
    %s33 = sphi 0, %s35
    %s36 = sphi 0, %s33
    %s37 = sphi 0, %s36
    %s53 = sphi 0, %s37
    %s59 = sphi 0, %s61
    %s62 = sphi 0, %s59
    %s63 = sphi 0, %s62
    %s79 = sphi 0, %s63
    %s85 = sphi 0, %s87
    %s88 = sphi 0, %s85
    %s89 = sphi 0, %s88
    %s105 = sphi 0, %s89
    %s113 = sphi 0, %s115
    %s116 = sphi 0, %s113
    %s117 = sphi 0, %s116
    %s133 = sphi 0, %s117
  $region4: #{transformer_forward.17} parent=0 // loop_header_branch
    %12 = sbr.rel (%p10) target = $region8
  $region5: #{transformer_forward.17} parent=0 // loop_body
    %s14 = ssub.s32 %s9, 1
    %s15 = ssub.s32 %s9, 2
    %s22 = sadd.s32 1, %s17
    %p23 = scmp.ge.s32.totalorder %s22, 1
    %s24 = scalar_select %p23, 0, %s22
    %s25 = sadd.s32 1, %s16
    %s26 = scalar_select %p23, %s25, %s16
    %p27 = scmp.ge.s32.totalorder %s26, 4
    %s28 = scalar_select %p27, 0, %s26
    %s29 = ssub.s32 %s16, %s28
    %s30 = ssub.s32 %s17, %s24
    %s31 = sor.u32 %s29, %s30
    %p32 = scmp.eq.s32.totalorder %s31, 0
    %s34 = sadd.s32 %s33, 1
    %s35 = scalar_select %p32, %s33, %s34
    %p38 = pneg %p32
    %p39 = scmp.eq.s32.totalorder %s9, 3
    %p40 = por %p38, %p39
    %p41 = scmp.ne.s32.totalorder %s33, %s36
    %p42 = scmp.eq.s32.totalorder %s9, 0
    %p43 = por %p41, %p42
    %p44 = scmp.ne.s32.totalorder %s33, %s36
    %p45 = scmp.eq.s32.totalorder %s14, 3
    %p46 = por %p44, %p45
    %p47 = scmp.ne.s32.totalorder %s36, %s37
    %p48 = scmp.eq.s32.totalorder %s14, 0
    %p49 = por %p47, %p48
    %p50 = scmp.ne.s32.totalorder %s36, %s37
    %p51 = scmp.eq.s32.totalorder %s15, 3
    %p52 = por %p50, %p51
    %p54 = scmp.ne.s32.totalorder %s37, %s53
    %p55 = scmp.eq.s32.totalorder %s15, 0
    %p56 = por %p54, %p55
    %s57 = ssub.s32 %s16, %s28
    %p58 = scmp.eq.s32.totalorder %s57, 0
    %s60 = sadd.s32 %s59, 1
    %s61 = scalar_select %p58, %s59, %s60
    %p64 = pneg %p58
    %p65 = scmp.eq.s32.totalorder %s9, 3
    %p66 = por %p64, %p65
    %p67 = scmp.ne.s32.totalorder %s59, %s62
    %p68 = scmp.eq.s32.totalorder %s9, 0
    %p69 = por %p67, %p68
    %p70 = scmp.ne.s32.totalorder %s59, %s62
    %p71 = scmp.eq.s32.totalorder %s14, 3
    %p72 = por %p70, %p71
    %p73 = scmp.ne.s32.totalorder %s62, %s63
    %p74 = scmp.eq.s32.totalorder %s14, 0
    %p75 = por %p73, %p74
    %p76 = scmp.ne.s32.totalorder %s62, %s63
    %p77 = scmp.eq.s32.totalorder %s15, 3
    %p78 = por %p76, %p77
    %p80 = scmp.ne.s32.totalorder %s63, %s79
    %p81 = scmp.eq.s32.totalorder %s15, 0
    %p82 = por %p80, %p81
    %s83 = ssub.s32 %s16, %s28
    %p84 = scmp.eq.s32.totalorder %s83, 0
    %s86 = sadd.s32 %s85, 1
    %s87 = scalar_select %p84, %s85, %s86
    %p90 = pneg %p84
    %p91 = scmp.eq.s32.totalorder %s9, 3
    %p92 = por %p90, %p91
    %p93 = scmp.ne.s32.totalorder %s85, %s88
    %p94 = scmp.eq.s32.totalorder %s9, 0
    %p95 = por %p93, %p94
    %p96 = scmp.ne.s32.totalorder %s85, %s88
    %p97 = scmp.eq.s32.totalorder %s14, 3
    %p98 = por %p96, %p97
    %p99 = scmp.ne.s32.totalorder %s88, %s89
    %p100 = scmp.eq.s32.totalorder %s14, 0
    %p101 = por %p99, %p100
    %p102 = scmp.ne.s32.totalorder %s88, %s89
    %p103 = scmp.eq.s32.totalorder %s15, 3
    %p104 = por %p102, %p103
    %p106 = scmp.ne.s32.totalorder %s89, %s105
    %p107 = scmp.eq.s32.totalorder %s15, 0
    %p108 = por %p106, %p107
    %s109 = ssub.s32 %s16, %s28
    %s110 = ssub.s32 %s17, %s24
    %s111 = sor.u32 %s109, %s110
    %p112 = scmp.eq.s32.totalorder %s111, 0
    %s114 = sadd.s32 %s113, 1
    %s115 = scalar_select %p112, %s113, %s114
    %p118 = pneg %p112
    %p119 = scmp.eq.s32.totalorder %s9, 3
    %p120 = por %p118, %p119
    %p121 = scmp.ne.s32.totalorder %s113, %s116
    %p122 = scmp.eq.s32.totalorder %s9, 0
    %p123 = por %p121, %p122
    %p124 = scmp.ne.s32.totalorder %s113, %s116
    %p125 = scmp.eq.s32.totalorder %s14, 3
    %p126 = por %p124, %p125
    %p127 = scmp.ne.s32.totalorder %s116, %s117
    %p128 = scmp.eq.s32.totalorder %s14, 0
    %p129 = por %p127, %p128
    %p130 = scmp.ne.s32.totalorder %s116, %s117
    %p131 = scmp.eq.s32.totalorder %s15, 3
    %p132 = por %p130, %p131
    %p134 = scmp.ne.s32.totalorder %s117, %s133
    %p135 = scmp.eq.s32.totalorder %s15, 0
    %p136 = por %p134, %p135
    %p137 = scmp.le.s32.totalorder 1, %s9
    %p138 = scmp.lt.s32.totalorder %s9, 5
    %p139 = pnand %p137, %p138
    %p140 = pneg %p139
    // Predicated region
    $region9: #{transformer_forward.17} parent=5 // pred_check
      _
    $region10: #{transformer_forward.17} parent=5 // pred_check_branch
      %142 = sbr.rel (%p139) target = $region12
    $region11: #{transformer_forward.17} parent=5 // pred_region
      %s143 = ssub.s32 %s9, 1
    $region12: #{transformer_forward.17} parent=5 // pred_fallthru
      _
    %p144 = scmp.lt.s32.totalorder %s9, 4
    // Predicated region
    $region13: #{transformer_forward.17} parent=5 // pred_check
      %p145 = pneg %p144
    $region14: #{transformer_forward.17} parent=5 // pred_check_branch
      %147 = sbr.rel (%p145) target = $region16
    $region15: #{transformer_forward.17} parent=5 // pred_region
      // Predicated region
      $region17: #{transformer_forward.17} parent=15 // pred_check
        %p148 = pneg %p43
      $region18: #{transformer_forward.17} parent=15 // pred_check_branch
        %150 = sbr.rel (%p148) target = $region20
      $region19: #{transformer_forward.17} parent=15 // pred_region
        %s151 = smul.u32 2, %s17
        %p152 = scmp.lt.s32.totalorder %s16, 3
        %s153 = scalar_select %p152, %s16, 3
        %p154 = scmp.lt.s32.totalorder %s151, 1
        %s155 = scalar_select %p154, %s151, 1
        %s156 = smul.addr %s153, 8
        %s157 = sadd.s32 %s155, %s156
        %s158 = smul.addr %s157, 8
        %s159 = scalar_lea.vmem %s0, %s158
        %s160 = smul.u32 2, %s17
      $region20: #{transformer_forward.17} parent=15 // pred_fallthru
        _
      // Predicated region
      $region21: #{transformer_forward.17} parent=15 // pred_check
        %p161 = pneg %p69
      $region22: #{transformer_forward.17} parent=15 // pred_check_branch
        %163 = sbr.rel (%p161) target = $region24
      $region23: #{transformer_forward.17} parent=15 // pred_region
        %p164 = scmp.lt.s32.totalorder %s16, 3
        %s165 = scalar_select %p164, %s16, 3
        %s166 = smul.addr %s165, 4
        %s167 = smul.addr %s166, 8
        %s168 = scalar_lea.vmem %s1, %s167
      $region24: #{transformer_forward.17} parent=15 // pred_fallthru
        _
      // Predicated region
      $region25: #{transformer_forward.17} parent=15 // pred_check
        %p169 = pneg %p95
      $region26: #{transformer_forward.17} parent=15 // pred_check_branch
        %171 = sbr.rel (%p169) target = $region28
      $region27: #{transformer_forward.17} parent=15 // pred_region
        %p172 = scmp.lt.s32.totalorder %s16, 3
        %s173 = scalar_select %p172, %s16, 3
        %s174 = smul.addr %s173, 4
        %s175 = smul.addr %s174, 8
        %s176 = scalar_lea.vmem %s2, %s175
      $region28: #{transformer_forward.17} parent=15 // pred_fallthru
        _
    $region16: #{transformer_forward.17} parent=5 // pred_fallthru
      _
    %p177 = scmp.le.s32.totalorder 1, %s9
    %p178 = scmp.lt.s32.totalorder %s9, 5
    %p179 = pnand %p177, %p178
    %p180 = pneg %p179
    // Predicated region
    $region29: #{transformer_forward.17} parent=5 // pred_check
      _
    $region30: #{transformer_forward.17} parent=5 // pred_check_branch
      %182 = sbr.rel (%p179) target = $region32
    $region31: #{transformer_forward.17} parent=5 // pred_region
      %s183 = ssub.s32 %s9, 1
      %s184 = smul.u32 2, %s19
      %p185 = scmp.lt.s32.totalorder %s18, 3
      %s186 = scalar_select %p185, %s18, 3
      %p187 = scmp.lt.s32.totalorder %s184, 1
      %s188 = scalar_select %p187, %s184, 1
      %s189 = smul.addr %s186, 8
      %s190 = sadd.s32 %s188, %s189
      %s191 = smul.addr %s190, 8
      %s192 = scalar_lea.vmem %s0, %s191
      %p193 = pneg %p49
      %p194 = pneg %p46
      %p195 = scmp.lt.s32.totalorder %s18, 3
      %s196 = scalar_select %p195, %s18, 3
      %s197 = smul.addr %s196, 4
      %s198 = smul.addr %s197, 8
      %s199 = scalar_lea.vmem %s1, %s198
      %p200 = pneg %p75
      %p201 = pneg %p72
      %p202 = scmp.lt.s32.totalorder %s18, 3
      %s203 = scalar_select %p202, %s18, 3
      %s204 = smul.addr %s203, 4
      %s205 = smul.addr %s204, 8
      %s206 = scalar_lea.vmem %s2, %s205
      %p207 = pneg %p101
      %p208 = pneg %p98
      %p209 = pneg %p129
      %p210 = pneg %p126
      %s211 = smul.u32 2, %s19
      %p212 = scmp.lt.s32.totalorder %s18, 3
      %s213 = scalar_select %p212, %s18, 3
      %p214 = scmp.lt.s32.totalorder %s211, 1
      %s215 = scalar_select %p214, %s211, 1
      %s216 = smul.addr %s213, 8
      %s217 = sadd.s32 %s215, %s216
      %s218 = smul.addr %s217, 8
      %s219 = scalar_lea.vmem %s3, %s218
      %s220 = smul.u32 2, %s19
      %p221 = scmp.lt.s32.totalorder %s18, 3
      %s222 = scalar_select %p221, %s18, 3
      %p223 = scmp.lt.s32.totalorder %s220, 1
      %s224 = scalar_select %p223, %s220, 1
      %s225 = smul.addr %s222, 8
      %s226 = sadd.s32 %s224, %s225
      %s227 = smul.addr %s226, 8
      %s228 = scalar_lea.vmem %s0, %s227
      %s229 = smul.u32 2, %s19
      %p230 = scmp.lt.s32.totalorder %s18, 3
      %s231 = scalar_select %p230, %s18, 3
      %s232 = smul.addr %s231, 4
      %s233 = smul.addr %s232, 8
      %s234 = scalar_lea.vmem %s1, %s233
      %p235 = scmp.lt.s32.totalorder %s18, 3
      %s236 = scalar_select %p235, %s18, 3
      %s237 = smul.addr %s236, 4
      %s238 = smul.addr %s237, 8
      %s239 = scalar_lea.vmem %s2, %s238
      %s240 = smul.u32 2, %s19
      %p241 = scmp.lt.s32.totalorder %s18, 3
      %s242 = scalar_select %p241, %s18, 3
      %p243 = scmp.lt.s32.totalorder %s240, 1
      %s244 = scalar_select %p243, %s240, 1
      %s245 = smul.addr %s242, 8
      %s246 = sadd.s32 %s244, %s245
      %s247 = smul.addr %s246, 8
      %s248 = scalar_lea.vmem %s3, %s247
      %s249 = smul.u32 2, %s19
      %v250 = vld [vmem:[%s228] sm:$0xff]
      %v251 = vld [vmem:[%s228 + $0x8] sm:$0xff]
      %v252 = vld [vmem:[%s228 + $0x10] sm:$0xff]
      %v253 = vld [vmem:[%s228 + $0x18] sm:$0xff]
      %v254 = vld [vmem:[%s228 + $0x20] sm:$0xff]
      %v255 = vld [vmem:[%s228 + $0x28] sm:$0xff]
      %v256 = vld [vmem:[%s228 + $0x30] sm:$0xff]
      %v257 = vld [vmem:[%s228 + $0x38] sm:$0xff]
      %v258 = vld [vmem:[%s234] sm:$0xff]
      %v259 = vld [vmem:[%s234 + $0x8] sm:$0xff]
      %v260 = vld [vmem:[%s234 + $0x10] sm:$0xff]
      %v261 = vld [vmem:[%s234 + $0x18] sm:$0xff]
      %v262 = vld [vmem:[%s239] sm:$0xff]
      %v263 = vld [vmem:[%s239 + $0x8] sm:$0xff]
      %v264 = vld [vmem:[%s239 + $0x10] sm:$0xff]
      %v265 = vld [vmem:[%s239 + $0x18] sm:$0xff]
      %266 = vxpose.xlu0.b32.start [1/16] %v250, 128
      %267 = vxpose.xlu0.b32.cont [2/16] %v252, 128
      %268 = vxpose.xlu0.b32.cont [3/16] %v254, 128
      %269 = vxpose.xlu0.b32.cont [4/16] %v256, 128
      %270 = vxpose.xlu0.b32.cont [5/16] 0.0, 128
      %271 = vxpose.xlu0.b32.cont [6/16] 0.0, 128
      %272 = vxpose.xlu0.b32.cont [7/16] 0.0, 128
      %273 = vxpose.xlu0.b32.cont [8/16] 0.0, 128
      %274 = vxpose.xlu0.b32.cont [9/16] 0.0, 128
      %275 = vxpose.xlu0.b32.cont [10/16] 0.0, 128
      %276 = vxpose.xlu0.b32.cont [11/16] 0.0, 128
      %277 = vxpose.xlu0.b32.cont [12/16] 0.0, 128
      %278 = vxpose.xlu0.b32.cont [13/16] 0.0, 128
      %279 = vxpose.xlu0.b32.cont [14/16] 0.0, 128
      %280 = vxpose.xlu0.b32.cont [15/16] 0.0, 128
      %281 = vxpose.xlu0.b32.end [16/16] 0.0, 128
      %v282 = vpop.trf.xlu0
      %v283 = vpop.trf.xlu0
      %v284 = vpop.trf.xlu0
      %v285 = vpop.trf.xlu0
      %v286 = vpop.trf.xlu0
      %v287 = vpop.trf.xlu0
      %v288 = vpop.trf.xlu0
      %v289 = vpop.trf.xlu0
      %v290 = vpop.trf.xlu0
      %v291 = vpop.trf.xlu0
      %v292 = vpop.trf.xlu0
      %v293 = vpop.trf.xlu0
      %v294 = vpop.trf.xlu0
      %v295 = vpop.trf.xlu0
      %v296 = vpop.trf.xlu0
      %v297 = vpop.trf.xlu0
      %298 = vxpose.xlu0.b32.start [1/16] %v251, 128
      %299 = vxpose.xlu0.b32.cont [2/16] %v253, 128
      %300 = vxpose.xlu0.b32.cont [3/16] %v255, 128
      %301 = vxpose.xlu0.b32.cont [4/16] %v257, 128
      %302 = vxpose.xlu0.b32.cont [5/16] 0.0, 128
      %303 = vxpose.xlu0.b32.cont [6/16] 0.0, 128
      %304 = vxpose.xlu0.b32.cont [7/16] 0.0, 128
      %305 = vxpose.xlu0.b32.cont [8/16] 0.0, 128
      %306 = vxpose.xlu0.b32.cont [9/16] 0.0, 128
      %307 = vxpose.xlu0.b32.cont [10/16] 0.0, 128
      %308 = vxpose.xlu0.b32.cont [11/16] 0.0, 128
      %309 = vxpose.xlu0.b32.cont [12/16] 0.0, 128
      %310 = vxpose.xlu0.b32.cont [13/16] 0.0, 128
      %311 = vxpose.xlu0.b32.cont [14/16] 0.0, 128
      %312 = vxpose.xlu0.b32.cont [15/16] 0.0, 128
      %313 = vxpose.xlu0.b32.end [16/16] 0.0, 128
      %v314 = vpop.trf.xlu0
      %v315 = vpop.trf.xlu0
      %v316 = vpop.trf.xlu0
      %v317 = vpop.trf.xlu0
      %v318 = vpop.trf.xlu0
      %v319 = vpop.trf.xlu0
      %v320 = vpop.trf.xlu0
      %v321 = vpop.trf.xlu0
      %v322 = vpop.trf.xlu0
      %v323 = vpop.trf.xlu0
      %v324 = vpop.trf.xlu0
      %v325 = vpop.trf.xlu0
      %v326 = vpop.trf.xlu0
      %v327 = vpop.trf.xlu0
      %v328 = vpop.trf.xlu0
      %v329 = vpop.trf.xlu0
      %vm330 = vcmask 261120
      %v332 = vsel %vm330, %v282, 0
      %v335 = vsel %vm330, %v283, 0
      %v338 = vsel %vm330, %v284, 0
      %v341 = vsel %vm330, %v285, 0
      %v344 = vsel %vm330, %v286, 0
      %v347 = vsel %vm330, %v287, 0
      %v350 = vsel %vm330, %v288, 0
      %v353 = vsel %vm330, %v289, 0
      %v356 = vsel %vm330, %v290, 0
      %v359 = vsel %vm330, %v291, 0
      %v362 = vsel %vm330, %v292, 0
      %v365 = vsel %vm330, %v293, 0
      %v368 = vsel %vm330, %v294, 0
      %v371 = vsel %vm330, %v295, 0
      %v374 = vsel %vm330, %v296, 0
      %v377 = vsel %vm330, %v297, 0
      %v380 = vsel %vm330, %v314, 0
      %v383 = vsel %vm330, %v315, 0
      %v386 = vsel %vm330, %v316, 0
      %v389 = vsel %vm330, %v317, 0
      %v392 = vsel %vm330, %v318, 0
      %v395 = vsel %vm330, %v319, 0
      %v398 = vsel %vm330, %v320, 0
      %v401 = vsel %vm330, %v321, 0
      %v404 = vsel %vm330, %v322, 0
      %v407 = vsel %vm330, %v323, 0
      %v410 = vsel %vm330, %v324, 0
      %v413 = vsel %vm330, %v325, 0
      %v416 = vsel %vm330, %v326, 0
      %v419 = vsel %vm330, %v327, 0
      %v422 = vsel %vm330, %v328, 0
      %v425 = vsel %vm330, %v329, 0
      %427 = vmatprep.subr.mxu0 0.0
      %428 = vmatpush1.msra.mxu0 %v258
      %429 = vmatprep.subr.mxu0 0.0
      %430 = vmatpush1.msra.mxu0 %v259
      %431 = vmatprep.subr.mxu0 0.0
      %432 = vmatpush1.msra.mxu0 %v260
      %433 = vmatprep.subr.mxu0 0.0
      %434 = vmatpush1.msra.mxu0 %v261
      %435 = vmatprep.subr.mxu0 0.0
      %436 = vmatpush1.msra.mxu0 0.0
      %437 = vmatprep.subr.mxu0 0.0
      %438 = vmatpush1.msra.mxu0 0.0
      %439 = vmatprep.subr.mxu0 0.0
      %440 = vmatpush1.msra.mxu0 0.0
      %441 = vmatprep.subr.mxu0 0.0
      %442 = vmatpush1.msra.mxu0 0.0
      %443 = vmatprep.subr.mxu0 0.0
      %444 = vmatpush1.msra.mxu0 0.0
      %445 = vmatprep.subr.mxu0 0.0
      %446 = vmatpush1.msra.mxu0 0.0
      %447 = vmatprep.subr.mxu0 0.0
      %448 = vmatpush1.msra.mxu0 0.0
      %449 = vmatprep.subr.mxu0 0.0
      %450 = vmatpush1.msra.mxu0 0.0
      %451 = vmatprep.subr.mxu0 0.0
      %452 = vmatpush1.msra.mxu0 0.0
      %453 = vmatprep.subr.mxu0 0.0
      %454 = vmatpush1.msra.mxu0 0.0
      %455 = vmatprep.subr.mxu0 0.0
      %456 = vmatpush1.msra.mxu0 0.0
      %457 = vmatprep.subr.mxu0 0.0
      %458 = vmatpush1.msra.mxu0 0.0
      %459 = vmatprep.subr.mxu0 0.0
      %460 = vmatpush1.msra.mxu0 0.0
      %461 = vmatprep.subr.mxu0 0.0
      %462 = vmatpush1.msra.mxu0 0.0
      %463 = vmatprep.subr.mxu0 0.0
      %464 = vmatpush1.msra.mxu0 0.0
      %465 = vmatprep.subr.mxu0 0.0
      %466 = vmatpush1.msra.mxu0 0.0
      %467 = vmatprep.subr.mxu0 0.0
      %468 = vmatpush1.msra.mxu0 0.0
      %469 = vmatprep.subr.mxu0 0.0
      %470 = vmatpush1.msra.mxu0 0.0
      %471 = vmatprep.subr.mxu0 0.0
      %472 = vmatpush1.msra.mxu0 0.0
      %473 = vmatprep.subr.mxu0 0.0
      %474 = vmatpush1.msra.mxu0 0.0
      %475 = vmatprep.subr.mxu0 0.0
      %476 = vmatpush1.msra.mxu0 0.0
      %477 = vmatprep.subr.mxu0 0.0
      %478 = vmatpush1.msra.mxu0 0.0
      %479 = vmatprep.subr.mxu0 0.0
      %480 = vmatpush1.msra.mxu0 0.0
      %481 = vmatprep.subr.mxu0 0.0
      %482 = vmatpush1.msra.mxu0 0.0
      %483 = vmatprep.subr.mxu0 0.0
      %484 = vmatpush1.msra.mxu0 0.0
      %485 = vmatprep.subr.mxu0 0.0
      %486 = vmatpush1.msra.mxu0 0.0
      %487 = vmatprep.subr.mxu0 0.0
      %488 = vmatpush1.msra.mxu0 0.0
      %489 = vmatprep.subr.mxu0 0.0
      %490 = vmatpush1.msra.mxu0 0.0
      %491 = vmatprep.mubr.f32.mxu0 0.0
      %492 = vmatmul.mubr.f32.gmra.mrb[0].mxu0 %v332
      %v493 = vpop.f32.mrb[0].mxu0
      %v494 = vadd.f32 0.0, %v493
      %v495 = vpop.f32.mrb[0].mxu0
      %496 = vmatprep.mubr.f32.mxu0 0.0
      %497 = vmatmul.mubr.f32.gmra.mrb[0].mxu0 %v335
      %v498 = vpop.f32.mrb[0].mxu0
      %v499 = vadd.f32 0.0, %v498
      %v500 = vpop.f32.mrb[0].mxu0
      %501 = vmatprep.mubr.f32.mxu0 0.0
      %502 = vmatmul.mubr.f32.gmra.mrb[0].mxu0 %v338
      %v503 = vpop.f32.mrb[0].mxu0
      %v504 = vadd.f32 0.0, %v503
      %v505 = vpop.f32.mrb[0].mxu0
      %506 = vmatprep.mubr.f32.mxu0 0.0
      %507 = vmatmul.mubr.f32.gmra.mrb[0].mxu0 %v341
      %v508 = vpop.f32.mrb[0].mxu0
      %v509 = vadd.f32 0.0, %v508
      %v510 = vpop.f32.mrb[0].mxu0
      %511 = vmatprep.mubr.f32.mxu0 0.0
      %512 = vmatmul.mubr.f32.gmra.mrb[0].mxu0 %v344
      %v513 = vpop.f32.mrb[0].mxu0
      %v514 = vadd.f32 0.0, %v513
      %v515 = vpop.f32.mrb[0].mxu0
      %516 = vmatprep.mubr.f32.mxu0 0.0
      %517 = vmatmul.mubr.f32.gmra.mrb[0].mxu0 %v347
      %v518 = vpop.f32.mrb[0].mxu0
      %v519 = vadd.f32 0.0, %v518
      %v520 = vpop.f32.mrb[0].mxu0
      %521 = vmatprep.mubr.f32.mxu0 0.0
      %522 = vmatmul.mubr.f32.gmra.mrb[0].mxu0 %v350
      %v523 = vpop.f32.mrb[0].mxu0
      %v524 = vadd.f32 0.0, %v523
      %v525 = vpop.f32.mrb[0].mxu0
      %526 = vmatprep.mubr.f32.mxu0 0.0
      %527 = vmatmul.mubr.f32.gmra.mrb[0].mxu0 %v353
      %v528 = vpop.f32.mrb[0].mxu0
      %v529 = vadd.f32 0.0, %v528
      %v530 = vpop.f32.mrb[0].mxu0
      %531 = vmatprep.mubr.f32.mxu0 0.0
      %532 = vmatmul.mubr.f32.gmra.mrb[0].mxu0 %v356
      %v533 = vpop.f32.mrb[0].mxu0
      %v534 = vadd.f32 0.0, %v533
      %v535 = vpop.f32.mrb[0].mxu0
      %536 = vmatprep.mubr.f32.mxu0 0.0
      %537 = vmatmul.mubr.f32.gmra.mrb[0].mxu0 %v359
      %v538 = vpop.f32.mrb[0].mxu0
      %v539 = vadd.f32 0.0, %v538
      %v540 = vpop.f32.mrb[0].mxu0
      %541 = vmatprep.mubr.f32.mxu0 0.0
      %542 = vmatmul.mubr.f32.gmra.mrb[0].mxu0 %v362
      %v543 = vpop.f32.mrb[0].mxu0
      %v544 = vadd.f32 0.0, %v543
      %v545 = vpop.f32.mrb[0].mxu0
      %546 = vmatprep.mubr.f32.mxu0 0.0
      %547 = vmatmul.mubr.f32.gmra.mrb[0].mxu0 %v365
      %v548 = vpop.f32.mrb[0].mxu0
      %v549 = vadd.f32 0.0, %v548
      %v550 = vpop.f32.mrb[0].mxu0
      %551 = vmatprep.mubr.f32.mxu0 0.0
      %552 = vmatmul.mubr.f32.gmra.mrb[0].mxu0 %v368
      %v553 = vpop.f32.mrb[0].mxu0
      %v554 = vadd.f32 0.0, %v553
      %v555 = vpop.f32.mrb[0].mxu0
      %556 = vmatprep.mubr.f32.mxu0 0.0
      %557 = vmatmul.mubr.f32.gmra.mrb[0].mxu0 %v371
      %v558 = vpop.f32.mrb[0].mxu0
      %v559 = vadd.f32 0.0, %v558
      %v560 = vpop.f32.mrb[0].mxu0
      %561 = vmatprep.mubr.f32.mxu0 0.0
      %562 = vmatmul.mubr.f32.gmra.mrb[0].mxu0 %v374
      %v563 = vpop.f32.mrb[0].mxu0
      %v564 = vadd.f32 0.0, %v563
      %v565 = vpop.f32.mrb[0].mxu0
      %566 = vmatprep.mubr.f32.mxu0 0.0
      %567 = vmatmul.mubr.f32.gmra.mrb[0].mxu0 %v377
      %v568 = vpop.f32.mrb[0].mxu0
      %v569 = vadd.f32 0.0, %v568
      %v570 = vpop.f32.mrb[0].mxu0
      %571 = vmatprep.mubr.f32.mxu0 0.0
      %572 = vmatmul.mubr.f32.gmra.mrb[0].mxu0 %v380
      %v573 = vpop.f32.mrb[0].mxu0
      %v574 = vadd.f32 0.0, %v573
      %v575 = vpop.f32.mrb[0].mxu0
      %576 = vmatprep.mubr.f32.mxu0 0.0
      %577 = vmatmul.mubr.f32.gmra.mrb[0].mxu0 %v383
      %v578 = vpop.f32.mrb[0].mxu0
      %v579 = vadd.f32 0.0, %v578
      %v580 = vpop.f32.mrb[0].mxu0
      %581 = vmatprep.mubr.f32.mxu0 0.0
      %582 = vmatmul.mubr.f32.gmra.mrb[0].mxu0 %v386
      %v583 = vpop.f32.mrb[0].mxu0
      %v584 = vadd.f32 0.0, %v583
      %v585 = vpop.f32.mrb[0].mxu0
      %586 = vmatprep.mubr.f32.mxu0 0.0
      %587 = vmatmul.mubr.f32.gmra.mrb[0].mxu0 %v389
      %v588 = vpop.f32.mrb[0].mxu0
      %v589 = vadd.f32 0.0, %v588
      %v590 = vpop.f32.mrb[0].mxu0
      %591 = vmatprep.mubr.f32.mxu0 0.0
      %592 = vmatmul.mubr.f32.gmra.mrb[0].mxu0 %v392
      %v593 = vpop.f32.mrb[0].mxu0
      %v594 = vadd.f32 0.0, %v593
      %v595 = vpop.f32.mrb[0].mxu0
      %596 = vmatprep.mubr.f32.mxu0 0.0
      %597 = vmatmul.mubr.f32.gmra.mrb[0].mxu0 %v395
      %v598 = vpop.f32.mrb[0].mxu0
      %v599 = vadd.f32 0.0, %v598
      %v600 = vpop.f32.mrb[0].mxu0
      %601 = vmatprep.mubr.f32.mxu0 0.0
      %602 = vmatmul.mubr.f32.gmra.mrb[0].mxu0 %v398
      %v603 = vpop.f32.mrb[0].mxu0
      %v604 = vadd.f32 0.0, %v603
      %v605 = vpop.f32.mrb[0].mxu0
      %606 = vmatprep.mubr.f32.mxu0 0.0
      %607 = vmatmul.mubr.f32.gmra.mrb[0].mxu0 %v401
      %v608 = vpop.f32.mrb[0].mxu0
      %v609 = vadd.f32 0.0, %v608
      %v610 = vpop.f32.mrb[0].mxu0
      %611 = vmatprep.mubr.f32.mxu0 0.0
      %612 = vmatmul.mubr.f32.gmra.mrb[0].mxu0 %v404
      %v613 = vpop.f32.mrb[0].mxu0
      %v614 = vadd.f32 0.0, %v613
      %v615 = vpop.f32.mrb[0].mxu0
      %616 = vmatprep.mubr.f32.mxu0 0.0
      %617 = vmatmul.mubr.f32.gmra.mrb[0].mxu0 %v407
      %v618 = vpop.f32.mrb[0].mxu0
      %v619 = vadd.f32 0.0, %v618
      %v620 = vpop.f32.mrb[0].mxu0
      %621 = vmatprep.mubr.f32.mxu0 0.0
      %622 = vmatmul.mubr.f32.gmra.mrb[0].mxu0 %v410
      %v623 = vpop.f32.mrb[0].mxu0
      %v624 = vadd.f32 0.0, %v623
      %v625 = vpop.f32.mrb[0].mxu0
      %626 = vmatprep.mubr.f32.mxu0 0.0
      %627 = vmatmul.mubr.f32.gmra.mrb[0].mxu0 %v413
      %v628 = vpop.f32.mrb[0].mxu0
      %v629 = vadd.f32 0.0, %v628
      %v630 = vpop.f32.mrb[0].mxu0
      %631 = vmatprep.mubr.f32.mxu0 0.0
      %632 = vmatmul.mubr.f32.gmra.mrb[0].mxu0 %v416
      %v633 = vpop.f32.mrb[0].mxu0
      %v634 = vadd.f32 0.0, %v633
      %v635 = vpop.f32.mrb[0].mxu0
      %636 = vmatprep.mubr.f32.mxu0 0.0
      %637 = vmatmul.mubr.f32.gmra.mrb[0].mxu0 %v419
      %v638 = vpop.f32.mrb[0].mxu0
      %v639 = vadd.f32 0.0, %v638
      %v640 = vpop.f32.mrb[0].mxu0
      %641 = vmatprep.mubr.f32.mxu0 0.0
      %642 = vmatmul.mubr.f32.gmra.mrb[0].mxu0 %v422
      %v643 = vpop.f32.mrb[0].mxu0
      %v644 = vadd.f32 0.0, %v643
      %v645 = vpop.f32.mrb[0].mxu0
      %646 = vmatprep.mubr.f32.mxu0 0.0
      %647 = vmatmul.mubr.f32.gmra.mrb[0].mxu0 %v425
      %v648 = vpop.f32.mrb[0].mxu0
      %v649 = vadd.f32 0.0, %v648
      %v650 = vpop.f32.mrb[0].mxu0
      %651 = vdwg.mxu0
      %vm652 = vcmask 523264
      %v653 = vsel %vm652, %v494, -inf
      %654 = vmax.xlane.f32.xlu0 %v653
      %v655 = vpop.xlane.xlu0 %654
      %v656 = vsel %vm652, %v499, -inf
      %657 = vmax.xlane.f32.xlu0 %v656
      %v658 = vpop.xlane.xlu0 %657
      %v659 = vsel %vm652, %v504, -inf
      %660 = vmax.xlane.f32.xlu0 %v659
      %v661 = vpop.xlane.xlu0 %660
      %v662 = vsel %vm652, %v509, -inf
      %663 = vmax.xlane.f32.xlu0 %v662
      %v664 = vpop.xlane.xlu0 %663
      %v665 = vsel %vm652, %v514, -inf
      %666 = vmax.xlane.f32.xlu0 %v665
      %v667 = vpop.xlane.xlu0 %666
      %v668 = vsel %vm652, %v519, -inf
      %669 = vmax.xlane.f32.xlu0 %v668
      %v670 = vpop.xlane.xlu0 %669
      %v671 = vsel %vm652, %v524, -inf
      %672 = vmax.xlane.f32.xlu0 %v671
      %v673 = vpop.xlane.xlu0 %672
      %v674 = vsel %vm652, %v529, -inf
      %675 = vmax.xlane.f32.xlu0 %v674
      %v676 = vpop.xlane.xlu0 %675
      %v677 = vsel %vm652, %v534, -inf
      %678 = vmax.xlane.f32.xlu0 %v677
      %v679 = vpop.xlane.xlu0 %678
      %v680 = vsel %vm652, %v539, -inf
      %681 = vmax.xlane.f32.xlu0 %v680
      %v682 = vpop.xlane.xlu0 %681
      %v683 = vsel %vm652, %v544, -inf
      %684 = vmax.xlane.f32.xlu0 %v683
      %v685 = vpop.xlane.xlu0 %684
      %v686 = vsel %vm652, %v549, -inf
      %687 = vmax.xlane.f32.xlu0 %v686
      %v688 = vpop.xlane.xlu0 %687
      %v689 = vsel %vm652, %v554, -inf
      %690 = vmax.xlane.f32.xlu0 %v689
      %v691 = vpop.xlane.xlu0 %690
      %v692 = vsel %vm652, %v559, -inf
      %693 = vmax.xlane.f32.xlu0 %v692
      %v694 = vpop.xlane.xlu0 %693
      %v695 = vsel %vm652, %v564, -inf
      %696 = vmax.xlane.f32.xlu0 %v695
      %v697 = vpop.xlane.xlu0 %696
      %v698 = vsel %vm652, %v569, -inf
      %699 = vmax.xlane.f32.xlu0 %v698
      %v700 = vpop.xlane.xlu0 %699
      %v701 = vsel %vm652, %v574, -inf
      %702 = vmax.xlane.f32.xlu0 %v701
      %v703 = vpop.xlane.xlu0 %702
      %v704 = vsel %vm652, %v579, -inf
      %705 = vmax.xlane.f32.xlu0 %v704
      %v706 = vpop.xlane.xlu0 %705
      %v707 = vsel %vm652, %v584, -inf
      %708 = vmax.xlane.f32.xlu0 %v707
      %v709 = vpop.xlane.xlu0 %708
      %v710 = vsel %vm652, %v589, -inf
      %711 = vmax.xlane.f32.xlu0 %v710
      %v712 = vpop.xlane.xlu0 %711
      %v713 = vsel %vm652, %v594, -inf
      %714 = vmax.xlane.f32.xlu0 %v713
      %v715 = vpop.xlane.xlu0 %714
      %v716 = vsel %vm652, %v599, -inf
      %717 = vmax.xlane.f32.xlu0 %v716
      %v718 = vpop.xlane.xlu0 %717
      %v719 = vsel %vm652, %v604, -inf
      %720 = vmax.xlane.f32.xlu0 %v719
      %v721 = vpop.xlane.xlu0 %720
      %v722 = vsel %vm652, %v609, -inf
      %723 = vmax.xlane.f32.xlu0 %v722
      %v724 = vpop.xlane.xlu0 %723
      %v725 = vsel %vm652, %v614, -inf
      %726 = vmax.xlane.f32.xlu0 %v725
      %v727 = vpop.xlane.xlu0 %726
      %v728 = vsel %vm652, %v619, -inf
      %729 = vmax.xlane.f32.xlu0 %v728
      %v730 = vpop.xlane.xlu0 %729
      %v731 = vsel %vm652, %v624, -inf
      %732 = vmax.xlane.f32.xlu0 %v731
      %v733 = vpop.xlane.xlu0 %732
      %v734 = vsel %vm652, %v629, -inf
      %735 = vmax.xlane.f32.xlu0 %v734
      %v736 = vpop.xlane.xlu0 %735
      %v737 = vsel %vm652, %v634, -inf
      %738 = vmax.xlane.f32.xlu0 %v737
      %v739 = vpop.xlane.xlu0 %738
      %v740 = vsel %vm652, %v639, -inf
      %741 = vmax.xlane.f32.xlu0 %v740
      %v742 = vpop.xlane.xlu0 %741
      %v743 = vsel %vm652, %v644, -inf
      %744 = vmax.xlane.f32.xlu0 %v743
      %v745 = vpop.xlane.xlu0 %744
      %v746 = vsel %vm652, %v649, -inf
      %747 = vmax.xlane.f32.xlu0 %v746
      %v748 = vpop.xlane.xlu0 %747
      %v749 = vsub.f32 %v494, %v655
      %v750 = vsub.f32 %v499, %v658
      %v751 = vsub.f32 %v504, %v661
      %v752 = vsub.f32 %v509, %v664
      %v753 = vsub.f32 %v514, %v667
      %v754 = vsub.f32 %v519, %v670
      %v755 = vsub.f32 %v524, %v673
      %v756 = vsub.f32 %v529, %v676
      %v757 = vsub.f32 %v534, %v679
      %v758 = vsub.f32 %v539, %v682
      %v759 = vsub.f32 %v544, %v685
      %v760 = vsub.f32 %v549, %v688
      %v761 = vsub.f32 %v554, %v691
      %v762 = vsub.f32 %v559, %v694
      %v763 = vsub.f32 %v564, %v697
      %v764 = vsub.f32 %v569, %v700
      %v765 = vsub.f32 %v574, %v703
      %v766 = vsub.f32 %v579, %v706
      %v767 = vsub.f32 %v584, %v709
      %v768 = vsub.f32 %v589, %v712
      %v769 = vsub.f32 %v594, %v715
      %v770 = vsub.f32 %v599, %v718
      %v771 = vsub.f32 %v604, %v721
      %v772 = vsub.f32 %v609, %v724
      %v773 = vsub.f32 %v614, %v727
      %v774 = vsub.f32 %v619, %v730
      %v775 = vsub.f32 %v624, %v733
      %v776 = vsub.f32 %v629, %v736
      %v777 = vsub.f32 %v634, %v739
      %v778 = vsub.f32 %v639, %v742
      %v779 = vsub.f32 %v644, %v745
      %v780 = vsub.f32 %v649, %v748
      %v781 = vmul.f32 %v749, 1.442695
      %v782 = vpow.pop %v781
      %v783 = vmul.f32 %v750, 1.442695
      %v784 = vpow.pop %v783
      %v785 = vmul.f32 %v751, 1.442695
      %v786 = vpow.pop %v785
      %v787 = vmul.f32 %v752, 1.442695
      %v788 = vpow.pop %v787
      %v789 = vmul.f32 %v753, 1.442695
      %v790 = vpow.pop %v789
      %v791 = vmul.f32 %v754, 1.442695
      %v792 = vpow.pop %v791
      %v793 = vmul.f32 %v755, 1.442695
      %v794 = vpow.pop %v793
      %v795 = vmul.f32 %v756, 1.442695
      %v796 = vpow.pop %v795
      %v797 = vmul.f32 %v757, 1.442695
      %v798 = vpow.pop %v797
      %v799 = vmul.f32 %v758, 1.442695
      %v800 = vpow.pop %v799
      %v801 = vmul.f32 %v759, 1.442695
      %v802 = vpow.pop %v801
      %v803 = vmul.f32 %v760, 1.442695
      %v804 = vpow.pop %v803
      %v805 = vmul.f32 %v761, 1.442695
      %v806 = vpow.pop %v805
      %v807 = vmul.f32 %v762, 1.442695
      %v808 = vpow.pop %v807
      %v809 = vmul.f32 %v763, 1.442695
      %v810 = vpow.pop %v809
      %v811 = vmul.f32 %v764, 1.442695
      %v812 = vpow.pop %v811
      %v813 = vmul.f32 %v765, 1.442695
      %v814 = vpow.pop %v813
      %v815 = vmul.f32 %v766, 1.442695
      %v816 = vpow.pop %v815
      %v817 = vmul.f32 %v767, 1.442695
      %v818 = vpow.pop %v817
      %v819 = vmul.f32 %v768, 1.442695
      %v820 = vpow.pop %v819
      %v821 = vmul.f32 %v769, 1.442695
      %v822 = vpow.pop %v821
      %v823 = vmul.f32 %v770, 1.442695
      %v824 = vpow.pop %v823
      %v825 = vmul.f32 %v771, 1.442695
      %v826 = vpow.pop %v825
      %v827 = vmul.f32 %v772, 1.442695
      %v828 = vpow.pop %v827
      %v829 = vmul.f32 %v773, 1.442695
      %v830 = vpow.pop %v829
      %v831 = vmul.f32 %v774, 1.442695
      %v832 = vpow.pop %v831
      %v833 = vmul.f32 %v775, 1.442695
      %v834 = vpow.pop %v833
      %v835 = vmul.f32 %v776, 1.442695
      %v836 = vpow.pop %v835
      %v837 = vmul.f32 %v777, 1.442695
      %v838 = vpow.pop %v837
      %v839 = vmul.f32 %v778, 1.442695
      %v840 = vpow.pop %v839
      %v841 = vmul.f32 %v779, 1.442695
      %v842 = vpow.pop %v841
      %v843 = vmul.f32 %v780, 1.442695
      %v844 = vpow.pop %v843
      %v845 = vsel %vm652, %v782, 0.0
      %846 = vadd.xlane.f32.xlu0 %v845
      %v847 = vpop.xlane.xlu0 %846
      %v848 = vsel %vm652, %v784, 0.0
      %849 = vadd.xlane.f32.xlu0 %v848
      %v850 = vpop.xlane.xlu0 %849
      %v851 = vsel %vm652, %v786, 0.0
      %852 = vadd.xlane.f32.xlu0 %v851
      %v853 = vpop.xlane.xlu0 %852
      %v854 = vsel %vm652, %v788, 0.0
      %855 = vadd.xlane.f32.xlu0 %v854
      %v856 = vpop.xlane.xlu0 %855
      %v857 = vsel %vm652, %v790, 0.0
      %858 = vadd.xlane.f32.xlu0 %v857
      %v859 = vpop.xlane.xlu0 %858
      %v860 = vsel %vm652, %v792, 0.0
      %861 = vadd.xlane.f32.xlu0 %v860
      %v862 = vpop.xlane.xlu0 %861
      %v863 = vsel %vm652, %v794, 0.0
      %864 = vadd.xlane.f32.xlu0 %v863
      %v865 = vpop.xlane.xlu0 %864
      %v866 = vsel %vm652, %v796, 0.0
      %867 = vadd.xlane.f32.xlu0 %v866
      %v868 = vpop.xlane.xlu0 %867
      %v869 = vsel %vm652, %v798, 0.0
      %870 = vadd.xlane.f32.xlu0 %v869
      %v871 = vpop.xlane.xlu0 %870
      %v872 = vsel %vm652, %v800, 0.0
      %873 = vadd.xlane.f32.xlu0 %v872
      %v874 = vpop.xlane.xlu0 %873
      %v875 = vsel %vm652, %v802, 0.0
      %876 = vadd.xlane.f32.xlu0 %v875
      %v877 = vpop.xlane.xlu0 %876
      %v878 = vsel %vm652, %v804, 0.0
      %879 = vadd.xlane.f32.xlu0 %v878
      %v880 = vpop.xlane.xlu0 %879
      %v881 = vsel %vm652, %v806, 0.0
      %882 = vadd.xlane.f32.xlu0 %v881
      %v883 = vpop.xlane.xlu0 %882
      %v884 = vsel %vm652, %v808, 0.0
      %885 = vadd.xlane.f32.xlu0 %v884
      %v886 = vpop.xlane.xlu0 %885
      %v887 = vsel %vm652, %v810, 0.0
      %888 = vadd.xlane.f32.xlu0 %v887
      %v889 = vpop.xlane.xlu0 %888
      %v890 = vsel %vm652, %v812, 0.0
      %891 = vadd.xlane.f32.xlu0 %v890
      %v892 = vpop.xlane.xlu0 %891
      %v893 = vsel %vm652, %v814, 0.0
      %894 = vadd.xlane.f32.xlu0 %v893
      %v895 = vpop.xlane.xlu0 %894
      %v896 = vsel %vm652, %v816, 0.0
      %897 = vadd.xlane.f32.xlu0 %v896
      %v898 = vpop.xlane.xlu0 %897
      %v899 = vsel %vm652, %v818, 0.0
      %900 = vadd.xlane.f32.xlu0 %v899
      %v901 = vpop.xlane.xlu0 %900
      %v902 = vsel %vm652, %v820, 0.0
      %903 = vadd.xlane.f32.xlu0 %v902
      %v904 = vpop.xlane.xlu0 %903
      %v905 = vsel %vm652, %v822, 0.0
      %906 = vadd.xlane.f32.xlu0 %v905
      %v907 = vpop.xlane.xlu0 %906
      %v908 = vsel %vm652, %v824, 0.0
      %909 = vadd.xlane.f32.xlu0 %v908
      %v910 = vpop.xlane.xlu0 %909
      %v911 = vsel %vm652, %v826, 0.0
      %912 = vadd.xlane.f32.xlu0 %v911
      %v913 = vpop.xlane.xlu0 %912
      %v914 = vsel %vm652, %v828, 0.0
      %915 = vadd.xlane.f32.xlu0 %v914
      %v916 = vpop.xlane.xlu0 %915
      %v917 = vsel %vm652, %v830, 0.0
      %918 = vadd.xlane.f32.xlu0 %v917
      %v919 = vpop.xlane.xlu0 %918
      %v920 = vsel %vm652, %v832, 0.0
      %921 = vadd.xlane.f32.xlu0 %v920
      %v922 = vpop.xlane.xlu0 %921
      %v923 = vsel %vm652, %v834, 0.0
      %924 = vadd.xlane.f32.xlu0 %v923
      %v925 = vpop.xlane.xlu0 %924
      %v926 = vsel %vm652, %v836, 0.0
      %927 = vadd.xlane.f32.xlu0 %v926
      %v928 = vpop.xlane.xlu0 %927
      %v929 = vsel %vm652, %v838, 0.0
      %930 = vadd.xlane.f32.xlu0 %v929
      %v931 = vpop.xlane.xlu0 %930
      %v932 = vsel %vm652, %v840, 0.0
      %933 = vadd.xlane.f32.xlu0 %v932
      %v934 = vpop.xlane.xlu0 %933
      %v935 = vsel %vm652, %v842, 0.0
      %936 = vadd.xlane.f32.xlu0 %v935
      %v937 = vpop.xlane.xlu0 %936
      %v938 = vsel %vm652, %v844, 0.0
      %939 = vadd.xlane.f32.xlu0 %v938
      %v940 = vpop.xlane.xlu0 %939
      %v941 = vrcp.pop %v847
      %v942 = vrcp.pop %v850
      %v943 = vrcp.pop %v853
      %v944 = vrcp.pop %v856
      %v945 = vrcp.pop %v859
      %v946 = vrcp.pop %v862
      %v947 = vrcp.pop %v865
      %v948 = vrcp.pop %v868
      %v949 = vrcp.pop %v871
      %v950 = vrcp.pop %v874
      %v951 = vrcp.pop %v877
      %v952 = vrcp.pop %v880
      %v953 = vrcp.pop %v883
      %v954 = vrcp.pop %v886
      %v955 = vrcp.pop %v889
      %v956 = vrcp.pop %v892
      %v957 = vrcp.pop %v895
      %v958 = vrcp.pop %v898
      %v959 = vrcp.pop %v901
      %v960 = vrcp.pop %v904
      %v961 = vrcp.pop %v907
      %v962 = vrcp.pop %v910
      %v963 = vrcp.pop %v913
      %v964 = vrcp.pop %v916
      %v965 = vrcp.pop %v919
      %v966 = vrcp.pop %v922
      %v967 = vrcp.pop %v925
      %v968 = vrcp.pop %v928
      %v969 = vrcp.pop %v931
      %v970 = vrcp.pop %v934
      %v971 = vrcp.pop %v937
      %v972 = vrcp.pop %v940
      %v973 = vmul.f32 %v782, %v941
      %v974 = vmul.f32 %v784, %v942
      %v975 = vmul.f32 %v786, %v943
      %v976 = vmul.f32 %v788, %v944
      %v977 = vmul.f32 %v790, %v945
      %v978 = vmul.f32 %v792, %v946
      %v979 = vmul.f32 %v794, %v947
      %v980 = vmul.f32 %v796, %v948
      %v981 = vmul.f32 %v798, %v949
      %v982 = vmul.f32 %v800, %v950
      %v983 = vmul.f32 %v802, %v951
      %v984 = vmul.f32 %v804, %v952
      %v985 = vmul.f32 %v806, %v953
      %v986 = vmul.f32 %v808, %v954
      %v987 = vmul.f32 %v810, %v955
      %v988 = vmul.f32 %v812, %v956
      %v989 = vmul.f32 %v814, %v957
      %v990 = vmul.f32 %v816, %v958
      %v991 = vmul.f32 %v818, %v959
      %v992 = vmul.f32 %v820, %v960
      %v993 = vmul.f32 %v822, %v961
      %v994 = vmul.f32 %v824, %v962
      %v995 = vmul.f32 %v826, %v963
      %v996 = vmul.f32 %v828, %v964
      %v997 = vmul.f32 %v830, %v965
      %v998 = vmul.f32 %v832, %v966
      %v999 = vmul.f32 %v834, %v967
      %v1000 = vmul.f32 %v836, %v968
      %v1001 = vmul.f32 %v838, %v969
      %v1002 = vmul.f32 %v840, %v970
      %v1003 = vmul.f32 %v842, %v971
      %v1004 = vmul.f32 %v844, %v972
      %v1006 = vsel %vm652, %v262, 0
      %v1009 = vsel %vm652, %v263, 0
      %v1012 = vsel %vm652, %v264, 0
      %v1015 = vsel %vm652, %v265, 0
      %v1018 = vsel %vm652, %v973, 0
      %v1021 = vsel %vm652, %v974, 0
      %v1024 = vsel %vm652, %v975, 0
      %v1027 = vsel %vm652, %v976, 0
      %v1030 = vsel %vm652, %v977, 0
      %v1033 = vsel %vm652, %v978, 0
      %v1036 = vsel %vm652, %v979, 0
      %v1039 = vsel %vm652, %v980, 0
      %v1042 = vsel %vm652, %v981, 0
      %v1045 = vsel %vm652, %v982, 0
      %v1048 = vsel %vm652, %v983, 0
      %v1051 = vsel %vm652, %v984, 0
      %v1054 = vsel %vm652, %v985, 0
      %v1057 = vsel %vm652, %v986, 0
      %v1060 = vsel %vm652, %v987, 0
      %v1063 = vsel %vm652, %v988, 0
      %v1066 = vsel %vm652, %v989, 0
      %v1069 = vsel %vm652, %v990, 0
      %v1072 = vsel %vm652, %v991, 0
      %v1075 = vsel %vm652, %v992, 0
      %v1078 = vsel %vm652, %v993, 0
      %v1081 = vsel %vm652, %v994, 0
      %v1084 = vsel %vm652, %v995, 0
      %v1087 = vsel %vm652, %v996, 0
      %v1090 = vsel %vm652, %v997, 0
      %v1093 = vsel %vm652, %v998, 0
      %v1096 = vsel %vm652, %v999, 0
      %v1099 = vsel %vm652, %v1000, 0
      %v1102 = vsel %vm652, %v1001, 0
      %v1105 = vsel %vm652, %v1002, 0
      %v1108 = vsel %vm652, %v1003, 0
      %v1111 = vsel %vm652, %v1004, 0
      %1113 = vmatprep.subr.mxu0 0.0
      %1114 = vmatpush1.xpose.msra.mxu0 %v1018
      %1115 = vmatprep.subr.mxu0 0.0
      %1116 = vmatpush1.xpose.msra.mxu0 %v1021
      %1117 = vmatprep.subr.mxu0 0.0
      %1118 = vmatpush1.xpose.msra.mxu0 %v1024
      %1119 = vmatprep.subr.mxu0 0.0
      %1120 = vmatpush1.xpose.msra.mxu0 %v1027
      %1121 = vmatprep.subr.mxu0 0.0
      %1122 = vmatpush1.xpose.msra.mxu0 %v1030
      %1123 = vmatprep.subr.mxu0 0.0
      %1124 = vmatpush1.xpose.msra.mxu0 %v1033
      %1125 = vmatprep.subr.mxu0 0.0
      %1126 = vmatpush1.xpose.msra.mxu0 %v1036
      %1127 = vmatprep.subr.mxu0 0.0
      %1128 = vmatpush1.xpose.msra.mxu0 %v1039
      %1129 = vmatprep.subr.mxu0 0.0
      %1130 = vmatpush1.xpose.msra.mxu0 %v1042
      %1131 = vmatprep.subr.mxu0 0.0
      %1132 = vmatpush1.xpose.msra.mxu0 %v1045
      %1133 = vmatprep.subr.mxu0 0.0
      %1134 = vmatpush1.xpose.msra.mxu0 %v1048
      %1135 = vmatprep.subr.mxu0 0.0
      %1136 = vmatpush1.xpose.msra.mxu0 %v1051
      %1137 = vmatprep.subr.mxu0 0.0
      %1138 = vmatpush1.xpose.msra.mxu0 %v1054
      %1139 = vmatprep.subr.mxu0 0.0
      %1140 = vmatpush1.xpose.msra.mxu0 %v1057
      %1141 = vmatprep.subr.mxu0 0.0
      %1142 = vmatpush1.xpose.msra.mxu0 %v1060
      %1143 = vmatprep.subr.mxu0 0.0
      %1144 = vmatpush1.xpose.msra.mxu0 %v1063
      %1145 = vmatprep.subr.mxu0 0.0
      %1146 = vmatpush1.xpose.msra.mxu0 %v1066
      %1147 = vmatprep.subr.mxu0 0.0
      %1148 = vmatpush1.xpose.msra.mxu0 %v1069
      %1149 = vmatprep.subr.mxu0 0.0
      %1150 = vmatpush1.xpose.msra.mxu0 %v1072
      %1151 = vmatprep.subr.mxu0 0.0
      %1152 = vmatpush1.xpose.msra.mxu0 %v1075
      %1153 = vmatprep.subr.mxu0 0.0
      %1154 = vmatpush1.xpose.msra.mxu0 %v1078
      %1155 = vmatprep.subr.mxu0 0.0
      %1156 = vmatpush1.xpose.msra.mxu0 %v1081
      %1157 = vmatprep.subr.mxu0 0.0
      %1158 = vmatpush1.xpose.msra.mxu0 %v1084
      %1159 = vmatprep.subr.mxu0 0.0
      %1160 = vmatpush1.xpose.msra.mxu0 %v1087
      %1161 = vmatprep.subr.mxu0 0.0
      %1162 = vmatpush1.xpose.msra.mxu0 %v1090
      %1163 = vmatprep.subr.mxu0 0.0
      %1164 = vmatpush1.xpose.msra.mxu0 %v1093
      %1165 = vmatprep.subr.mxu0 0.0
      %1166 = vmatpush1.xpose.msra.mxu0 %v1096
      %1167 = vmatprep.subr.mxu0 0.0
      %1168 = vmatpush1.xpose.msra.mxu0 %v1099
      %1169 = vmatprep.subr.mxu0 0.0
      %1170 = vmatpush1.xpose.msra.mxu0 %v1102
      %1171 = vmatprep.subr.mxu0 0.0
      %1172 = vmatpush1.xpose.msra.mxu0 %v1105
      %1173 = vmatprep.subr.mxu0 0.0
      %1174 = vmatpush1.xpose.msra.mxu0 %v1108
      %1175 = vmatprep.subr.mxu0 0.0
      %1176 = vmatpush1.xpose.msra.mxu0 %v1111
      %1177 = vmatprep.mubr.f32.mxu0 0.0
      %1178 = vmatmul.mubr.f32.gmra.mrb[0].mxu0 %v1006
      %v1179 = vpop.f32.mrb[0].mxu0
      %v1180 = vadd.f32 0.0, %v1179
      %v1181 = vpop.f32.mrb[0].mxu0
      %v1182 = vadd.f32 0.0, %v1181
      %1183 = vmatprep.mubr.f32.mxu0 0.0
      %1184 = vmatmul.mubr.f32.gmra.mrb[0].mxu0 %v1009
      %v1185 = vpop.f32.mrb[0].mxu0
      %v1186 = vadd.f32 0.0, %v1185
      %v1187 = vpop.f32.mrb[0].mxu0
      %v1188 = vadd.f32 0.0, %v1187
      %1189 = vmatprep.mubr.f32.mxu0 0.0
      %1190 = vmatmul.mubr.f32.gmra.mrb[0].mxu0 %v1012
      %v1191 = vpop.f32.mrb[0].mxu0
      %v1192 = vadd.f32 0.0, %v1191
      %v1193 = vpop.f32.mrb[0].mxu0
      %v1194 = vadd.f32 0.0, %v1193
      %1195 = vmatprep.mubr.f32.mxu0 0.0
      %1196 = vmatmul.mubr.f32.gmra.mrb[0].mxu0 %v1015
      %v1197 = vpop.f32.mrb[0].mxu0
      %v1198 = vadd.f32 0.0, %v1197
      %v1199 = vpop.f32.mrb[0].mxu0
      %v1200 = vadd.f32 0.0, %v1199
      %1201 = vdwg.mxu0
      %1202 = vst [vmem:[%s248] sm:$0xff] %v1180
      %1203 = vst [vmem:[%s248 + $0x8] sm:$0xff] %v1182
      %1204 = vst [vmem:[%s248 + $0x10] sm:$0xff] %v1186
      %1205 = vst [vmem:[%s248 + $0x18] sm:$0xff] %v1188
      %1206 = vst [vmem:[%s248 + $0x20] sm:$0xff] %v1192
      %1207 = vst [vmem:[%s248 + $0x28] sm:$0xff] %v1194
      %1208 = vst [vmem:[%s248 + $0x30] sm:$0xff] %v1198
      %1209 = vst [vmem:[%s248 + $0x38] sm:$0xff] %v1200
      %s1210 = smul.u32 2, %s19
      %p1211 = scmp.lt.s32.totalorder %s18, 3
      %s1212 = scalar_select %p1211, %s18, 3
      %p1213 = scmp.lt.s32.totalorder %s1210, 1
      %s1214 = scalar_select %p1213, %s1210, 1
      %s1215 = smul.addr %s1212, 8
      %s1216 = sadd.s32 %s1214, %s1215
      %s1217 = smul.addr %s1216, 8
      %s1218 = scalar_lea.vmem %s3, %s1217
      // Predicated region
      $region33: #{transformer_forward.17} parent=31 // pred_check
        %p1219 = pneg %p126
      $region34: #{transformer_forward.17} parent=31 // pred_check_branch
        %1221 = sbr.rel (%p1219) target = $region36
      $region35: #{transformer_forward.17} parent=31 // pred_region
        %s1222 = smul.u32 2, %s19
      $region36: #{transformer_forward.17} parent=31 // pred_fallthru
        _
    $region32: #{transformer_forward.17} parent=5 // pred_fallthru
      _
    %p1223 = scmp.le.s32.totalorder 2, %s9
    // Predicated region
    $region37: #{transformer_forward.17} parent=5 // pred_check
      %p1224 = pneg %p1223
    $region38: #{transformer_forward.17} parent=5 // pred_check_branch
      %1226 = sbr.rel (%p1224) target = $region40
    $region39: #{transformer_forward.17} parent=5 // pred_region
      %s1227 = ssub.s32 %s9, 2
      // Predicated region
      $region41: #{transformer_forward.17} parent=39 // pred_check
        %p1228 = pneg %p132
      $region42: #{transformer_forward.17} parent=39 // pred_check_branch
        %1230 = sbr.rel (%p1228) target = $region44
      $region43: #{transformer_forward.17} parent=39 // pred_region
        %s1231 = smul.u32 2, %s21
        %p1232 = scmp.lt.s32.totalorder %s20, 3
        %s1233 = scalar_select %p1232, %s20, 3
        %p1234 = scmp.lt.s32.totalorder %s1231, 1
        %s1235 = scalar_select %p1234, %s1231, 1
        %s1236 = smul.addr %s1233, 8
        %s1237 = sadd.s32 %s1235, %s1236
        %s1238 = smul.addr %s1237, 8
        %s1239 = scalar_lea.vmem %s3, %s1238
      $region44: #{transformer_forward.17} parent=39 // pred_fallthru
        _
    $region40: #{transformer_forward.17} parent=5 // pred_fallthru
      _
  $region6: #{transformer_forward.17} parent=0 // loop_footer
    %s13 = sadd.s32 1, %s9
  $region7: #{transformer_forward.17} parent=0 // loop_footer_branch
    %8 = sbr.rel target = $region3
  $region8: #{transformer_forward.17} parent=0 // loop_exit
    _

// kernel: transformer_forward.18
$region0: #{transformer_forward.18}
  #allocation0 [shape = 'u32[]', space=smem, size = 0x4, offset = 0x4, fixed_abs, tag = 'smem constant byte address 0x4 - core index']
  #allocation1 [shape = 'u32[144,128]{1,0:T(1,128)}', space=vmem, size = 0x12000, scoped, tag = 'internal scratch']
  %s0 = inlined_call_operand.vmem [shape: f32[2,64,256], index: 0, kind: input, shape index: {}]
  %s1 = inlined_call_operand.vmem [shape: f32[32,64], index: 1, kind: input, shape index: {}]
  %s2 = inlined_call_operand.vmem [shape: f32[32,1], index: 2, kind: input, shape index: {}]
  %s3 = inlined_call_operand.vmem [shape: f32[2,32,256], index: 3, kind: input, shape index: {}]
  %s4 = inlined_call_operand.vmem [shape: f32[2,32,256], index: 4, kind: output, shape index: {}]
  %s5 = sld [smem:[#allocation0]]
  $region49: #{transformer_forward.18} parent=0
    _
  %s7 = ssub.s32 1, %s5
  %s8 = scalar_select 0, %s7, %s5
  loop: start=0, step=1, limit=4
  $region2: #{transformer_forward.18} parent=0 // loop_pre_header
    _
  $region3: #{transformer_forward.18} parent=0 // loop_header
    %s10 = sphi 0, %s14
    %p11 = scmp.ge.s32.totalorder %s10, 4
    %s17 = sphi 0, %s29
    %s18 = sphi 0, %s25
    %s19 = sphi 0, %s17
    %s20 = sphi 0, %s18
    %s21 = sphi 0, %s19
    %s22 = sphi 0, %s20
    %s34 = sphi 0, %s36
    %s37 = sphi 0, %s34
    %s38 = sphi 0, %s37
    %s54 = sphi 0, %s38
    %s58 = sphi 0, %s58
    %s60 = sphi 0, %s58
    %s61 = sphi 0, %s60
    %s75 = sphi 0, %s61
    %s79 = sphi 0, %s79
    %s81 = sphi 0, %s79
    %s82 = sphi 0, %s81
    %s96 = sphi 0, %s82
    %s104 = sphi 0, %s106
    %s107 = sphi 0, %s104
    %s108 = sphi 0, %s107
    %s124 = sphi 0, %s108
    %s132 = sphi 0, %s134
    %s135 = sphi 0, %s132
    %s136 = sphi 0, %s135
    %s152 = sphi 0, %s136
  $region4: #{transformer_forward.18} parent=0 // loop_header_branch
    %13 = sbr.rel (%p11) target = $region8
  $region5: #{transformer_forward.18} parent=0 // loop_body
    %s15 = ssub.s32 %s10, 1
    %s16 = ssub.s32 %s10, 2
    %s23 = sadd.s32 1, %s18
    %p24 = scmp.ge.s32.totalorder %s23, 1
    %s25 = scalar_select %p24, 0, %s23
    %s26 = sadd.s32 1, %s17
    %s27 = scalar_select %p24, %s26, %s17
    %p28 = scmp.ge.s32.totalorder %s27, 2
    %s29 = scalar_select %p28, 0, %s27
    %s30 = ssub.s32 %s17, %s29
    %s31 = ssub.s32 %s18, %s25
    %s32 = sor.u32 %s30, %s31
    %p33 = scmp.eq.s32.totalorder %s32, 0
    %s35 = sadd.s32 %s34, 1
    %s36 = scalar_select %p33, %s34, %s35
    %p39 = pneg %p33
    %p40 = scmp.eq.s32.totalorder %s10, 1
    %p41 = por %p39, %p40
    %p42 = scmp.ne.s32.totalorder %s34, %s37
    %p43 = scmp.eq.s32.totalorder %s10, 0
    %p44 = por %p42, %p43
    %p45 = scmp.ne.s32.totalorder %s34, %s37
    %p46 = scmp.eq.s32.totalorder %s15, 1
    %p47 = por %p45, %p46
    %p48 = scmp.ne.s32.totalorder %s37, %s38
    %p49 = scmp.eq.s32.totalorder %s15, 0
    %p50 = por %p48, %p49
    %p51 = scmp.ne.s32.totalorder %s37, %s38
    %p52 = scmp.eq.s32.totalorder %s16, 1
    %p53 = por %p51, %p52
    %p55 = scmp.ne.s32.totalorder %s38, %s54
    %p56 = scmp.eq.s32.totalorder %s16, 0
    %p57 = por %p55, %p56
    %s59 = sadd.s32 %s58, 1
    %p62 = scmp.eq.s32.totalorder %s10, 1
    %p63 = scmp.ne.s32.totalorder %s58, %s60
    %p64 = scmp.eq.s32.totalorder %s10, 0
    %p65 = por %p63, %p64
    %p66 = scmp.ne.s32.totalorder %s58, %s60
    %p67 = scmp.eq.s32.totalorder %s15, 1
    %p68 = por %p66, %p67
    %p69 = scmp.ne.s32.totalorder %s60, %s61
    %p70 = scmp.eq.s32.totalorder %s15, 0
    %p71 = por %p69, %p70
    %p72 = scmp.ne.s32.totalorder %s60, %s61
    %p73 = scmp.eq.s32.totalorder %s16, 1
    %p74 = por %p72, %p73
    %p76 = scmp.ne.s32.totalorder %s61, %s75
    %p77 = scmp.eq.s32.totalorder %s16, 0
    %p78 = por %p76, %p77
    %s80 = sadd.s32 %s79, 1
    %p83 = scmp.eq.s32.totalorder %s10, 1
    %p84 = scmp.ne.s32.totalorder %s79, %s81
    %p85 = scmp.eq.s32.totalorder %s10, 0
    %p86 = por %p84, %p85
    %p87 = scmp.ne.s32.totalorder %s79, %s81
    %p88 = scmp.eq.s32.totalorder %s15, 1
    %p89 = por %p87, %p88
    %p90 = scmp.ne.s32.totalorder %s81, %s82
    %p91 = scmp.eq.s32.totalorder %s15, 0
    %p92 = por %p90, %p91
    %p93 = scmp.ne.s32.totalorder %s81, %s82
    %p94 = scmp.eq.s32.totalorder %s16, 1
    %p95 = por %p93, %p94
    %p97 = scmp.ne.s32.totalorder %s82, %s96
    %p98 = scmp.eq.s32.totalorder %s16, 0
    %p99 = por %p97, %p98
    %s100 = ssub.s32 %s17, %s29
    %s101 = ssub.s32 %s18, %s25
    %s102 = sor.u32 %s100, %s101
    %p103 = scmp.eq.s32.totalorder %s102, 0
    %s105 = sadd.s32 %s104, 1
    %s106 = scalar_select %p103, %s104, %s105
    %p109 = pneg %p103
    %p110 = scmp.eq.s32.totalorder %s10, 1
    %p111 = por %p109, %p110
    %p112 = scmp.ne.s32.totalorder %s104, %s107
    %p113 = scmp.eq.s32.totalorder %s10, 0
    %p114 = por %p112, %p113
    %p115 = scmp.ne.s32.totalorder %s104, %s107
    %p116 = scmp.eq.s32.totalorder %s15, 1
    %p117 = por %p115, %p116
    %p118 = scmp.ne.s32.totalorder %s107, %s108
    %p119 = scmp.eq.s32.totalorder %s15, 0
    %p120 = por %p118, %p119
    %p121 = scmp.ne.s32.totalorder %s107, %s108
    %p122 = scmp.eq.s32.totalorder %s16, 1
    %p123 = por %p121, %p122
    %p125 = scmp.ne.s32.totalorder %s108, %s124
    %p126 = scmp.eq.s32.totalorder %s16, 0
    %p127 = por %p125, %p126
    %s128 = ssub.s32 %s17, %s29
    %s129 = ssub.s32 %s18, %s25
    %s130 = sor.u32 %s128, %s129
    %p131 = scmp.eq.s32.totalorder %s130, 0
    %s133 = sadd.s32 %s132, 1
    %s134 = scalar_select %p131, %s132, %s133
    %p137 = pneg %p131
    %p138 = scmp.eq.s32.totalorder %s10, 1
    %p139 = por %p137, %p138
    %p140 = scmp.ne.s32.totalorder %s132, %s135
    %p141 = scmp.eq.s32.totalorder %s10, 0
    %p142 = por %p140, %p141
    %p143 = scmp.ne.s32.totalorder %s132, %s135
    %p144 = scmp.eq.s32.totalorder %s15, 1
    %p145 = por %p143, %p144
    %p146 = scmp.ne.s32.totalorder %s135, %s136
    %p147 = scmp.eq.s32.totalorder %s15, 0
    %p148 = por %p146, %p147
    %p149 = scmp.ne.s32.totalorder %s135, %s136
    %p150 = scmp.eq.s32.totalorder %s16, 1
    %p151 = por %p149, %p150
    %p153 = scmp.ne.s32.totalorder %s136, %s152
    %p154 = scmp.eq.s32.totalorder %s16, 0
    %p155 = por %p153, %p154
    %p156 = scmp.le.s32.totalorder 1, %s10
    %p157 = scmp.lt.s32.totalorder %s10, 3
    %p158 = pnand %p156, %p157
    %p159 = pneg %p158
    // Predicated region
    $region9: #{transformer_forward.18} parent=5 // pred_check
      _
    $region10: #{transformer_forward.18} parent=5 // pred_check_branch
      %161 = sbr.rel (%p158) target = $region12
    $region11: #{transformer_forward.18} parent=5 // pred_region
      %s162 = ssub.s32 %s10, 1
      // Predicated region
      $region13: #{transformer_forward.18} parent=11 // pred_check
        %p163 = pneg %p71
      $region14: #{transformer_forward.18} parent=11 // pred_check_branch
        %165 = sbr.rel (%p163) target = $region16
      $region15: #{transformer_forward.18} parent=11 // pred_region
        _
      $region16: #{transformer_forward.18} parent=11 // pred_fallthru
        _
      // Predicated region
      $region17: #{transformer_forward.18} parent=11 // pred_check
        %p166 = pneg %p92
      $region18: #{transformer_forward.18} parent=11 // pred_check_branch
        %168 = sbr.rel (%p166) target = $region20
      $region19: #{transformer_forward.18} parent=11 // pred_region
        _
      $region20: #{transformer_forward.18} parent=11 // pred_fallthru
        _
    $region12: #{transformer_forward.18} parent=5 // pred_fallthru
      _
    %p169 = scmp.lt.s32.totalorder %s10, 2
    // Predicated region
    $region21: #{transformer_forward.18} parent=5 // pred_check
      %p170 = pneg %p169
    $region22: #{transformer_forward.18} parent=5 // pred_check_branch
      %172 = sbr.rel (%p170) target = $region24
    $region23: #{transformer_forward.18} parent=5 // pred_region
      // Predicated region
      $region25: #{transformer_forward.18} parent=23 // pred_check
        %p173 = pneg %p44
      $region26: #{transformer_forward.18} parent=23 // pred_check_branch
        %175 = sbr.rel (%p173) target = $region28
      $region27: #{transformer_forward.18} parent=23 // pred_region
        %s176 = smul.u32 2, %s18
        %p177 = scmp.lt.s32.totalorder %s17, 1
        %s178 = scalar_select %p177, %s17, 1
        %p179 = scmp.lt.s32.totalorder %s176, 1
        %s180 = scalar_select %p179, %s176, 1
        %s181 = smul.addr %s178, 16
        %s182 = sadd.s32 %s180, %s181
        %s183 = smul.addr %s182, 8
        %s184 = scalar_lea.vmem %s0, %s183
        %s185 = smul.u32 2, %s18
      $region28: #{transformer_forward.18} parent=23 // pred_fallthru
        _
      // Predicated region
      $region29: #{transformer_forward.18} parent=23 // pred_check
        %p186 = pneg %p114
      $region30: #{transformer_forward.18} parent=23 // pred_check_branch
        %188 = sbr.rel (%p186) target = $region32
      $region31: #{transformer_forward.18} parent=23 // pred_region
        %s189 = smul.u32 2, %s18
        %p190 = scmp.lt.s32.totalorder %s17, 1
        %s191 = scalar_select %p190, %s17, 1
        %p192 = scmp.lt.s32.totalorder %s189, 1
        %s193 = scalar_select %p192, %s189, 1
        %s194 = smul.addr %s191, 8
        %s195 = sadd.s32 %s193, %s194
        %s196 = smul.addr %s195, 8
        %s197 = scalar_lea.vmem %s3, %s196
        %s198 = smul.u32 2, %s18
      $region32: #{transformer_forward.18} parent=23 // pred_fallthru
        _
    $region24: #{transformer_forward.18} parent=5 // pred_fallthru
      _
    %p199 = scmp.le.s32.totalorder 1, %s10
    %p200 = scmp.lt.s32.totalorder %s10, 3
    %p201 = pnand %p199, %p200
    %p202 = pneg %p201
    // Predicated region
    $region33: #{transformer_forward.18} parent=5 // pred_check
      _
    $region34: #{transformer_forward.18} parent=5 // pred_check_branch
      %204 = sbr.rel (%p201) target = $region36
    $region35: #{transformer_forward.18} parent=5 // pred_region
      %s205 = ssub.s32 %s10, 1
      %s206 = smul.u32 2, %s20
      %p207 = scmp.lt.s32.totalorder %s19, 1
      %s208 = scalar_select %p207, %s19, 1
      %p209 = scmp.lt.s32.totalorder %s206, 1
      %s210 = scalar_select %p209, %s206, 1
      %s211 = smul.addr %s208, 16
      %s212 = sadd.s32 %s210, %s211
      %s213 = smul.addr %s212, 8
      %s214 = scalar_lea.vmem %s0, %s213
      %p215 = pneg %p50
      %p216 = pneg %p47
      %p217 = pneg %p71
      %p218 = pneg %p68
      %p219 = pneg %p92
      %p220 = pneg %p89
      %s221 = smul.u32 2, %s20
      %p222 = scmp.lt.s32.totalorder %s19, 1
      %s223 = scalar_select %p222, %s19, 1
      %p224 = scmp.lt.s32.totalorder %s221, 1
      %s225 = scalar_select %p224, %s221, 1
      %s226 = smul.addr %s223, 8
      %s227 = sadd.s32 %s225, %s226
      %s228 = smul.addr %s227, 8
      %s229 = scalar_lea.vmem %s3, %s228
      %p230 = pneg %p120
      %p231 = pneg %p117
      %p232 = pneg %p148
      %p233 = pneg %p145
      %s234 = smul.u32 2, %s20
      %p235 = scmp.lt.s32.totalorder %s19, 1
      %s236 = scalar_select %p235, %s19, 1
      %p237 = scmp.lt.s32.totalorder %s234, 1
      %s238 = scalar_select %p237, %s234, 1
      %s239 = smul.addr %s236, 8
      %s240 = sadd.s32 %s238, %s239
      %s241 = smul.addr %s240, 8
      %s242 = scalar_lea.vmem %s4, %s241
      %s243 = smul.u32 2, %s20
      %p244 = scmp.lt.s32.totalorder %s19, 1
      %s245 = scalar_select %p244, %s19, 1
      %p246 = scmp.lt.s32.totalorder %s243, 1
      %s247 = scalar_select %p246, %s243, 1
      %s248 = smul.addr %s245, 16
      %s249 = sadd.s32 %s247, %s248
      %s250 = smul.addr %s249, 8
      %s251 = scalar_lea.vmem %s0, %s250
      %s252 = smul.u32 2, %s20
      %s253 = smul.u32 2, %s20
      %p254 = scmp.lt.s32.totalorder %s19, 1
      %s255 = scalar_select %p254, %s19, 1
      %p256 = scmp.lt.s32.totalorder %s253, 1
      %s257 = scalar_select %p256, %s253, 1
      %s258 = smul.addr %s255, 8
      %s259 = sadd.s32 %s257, %s258
      %s260 = smul.addr %s259, 8
      %s261 = scalar_lea.vmem %s3, %s260
      %s262 = smul.u32 2, %s20
      %s263 = smul.u32 2, %s20
      %p264 = scmp.lt.s32.totalorder %s19, 1
      %s265 = scalar_select %p264, %s19, 1
      %p266 = scmp.lt.s32.totalorder %s263, 1
      %s267 = scalar_select %p266, %s263, 1
      %s268 = smul.addr %s265, 8
      %s269 = sadd.s32 %s267, %s268
      %s270 = smul.addr %s269, 8
      %s271 = scalar_lea.vmem %s4, %s270
      %s272 = smul.u32 2, %s20
      %v273 = vld [vmem:[%s251] sm:$0xff]
      %v274 = vld [vmem:[%s251 + $0x8] sm:$0xff]
      %v275 = vld [vmem:[%s251 + $0x10] sm:$0xff]
      %v276 = vld [vmem:[%s251 + $0x18] sm:$0xff]
      %v277 = vld [vmem:[%s251 + $0x20] sm:$0xff]
      %v278 = vld [vmem:[%s251 + $0x28] sm:$0xff]
      %v279 = vld [vmem:[%s251 + $0x30] sm:$0xff]
      %v280 = vld [vmem:[%s251 + $0x38] sm:$0xff]
      %v281 = vld [vmem:[%s251 + $0x40] sm:$0xff]
      %v282 = vld [vmem:[%s251 + $0x48] sm:$0xff]
      %v283 = vld [vmem:[%s251 + $0x50] sm:$0xff]
      %v284 = vld [vmem:[%s251 + $0x58] sm:$0xff]
      %v285 = vld [vmem:[%s251 + $0x60] sm:$0xff]
      %v286 = vld [vmem:[%s251 + $0x68] sm:$0xff]
      %v287 = vld [vmem:[%s251 + $0x70] sm:$0xff]
      %v288 = vld [vmem:[%s251 + $0x78] sm:$0xff]
      %v289 = vld [vmem:[%s1] sm:$0xff]
      %v290 = vld [vmem:[%s1 + $0x8] sm:$0xff]
      %v291 = vld [vmem:[%s1 + $0x10] sm:$0xff]
      %v292 = vld [vmem:[%s1 + $0x18] sm:$0xff]
      %v293 = vld [vmem:[%s2] sm:$0xff]
      %v294 = vld [vmem:[%s2 + $0x8] sm:$0xff]
      %v295 = vld [vmem:[%s2 + $0x10] sm:$0xff]
      %v296 = vld [vmem:[%s2 + $0x18] sm:$0xff]
      %298 = vset.pattern.permute.xlu0 0
      %299 = vperm.xlu0 %298, %v293
      %v300 = vpop.permute.xlu0 %299
      %303 = vset.pattern.permute.xlu0 0
      %304 = vperm.xlu0 %303, %v294
      %v305 = vpop.permute.xlu0 %304
      %308 = vset.pattern.permute.xlu0 0
      %309 = vperm.xlu0 %308, %v295
      %v310 = vpop.permute.xlu0 %309
      %313 = vset.pattern.permute.xlu0 0
      %314 = vperm.xlu0 %313, %v296
      %v315 = vpop.permute.xlu0 %314
      %vm317 = vcmask 523264
      %v319 = vsel %vm317, %v289, 0
      %v322 = vsel %vm317, %v290, 0
      %v325 = vsel %vm317, %v291, 0
      %v328 = vsel %vm317, %v292, 0
      %330 = vmatprep.subr.mxu0 %v274
      %331 = vmatpush1.msra.mxu0 %v273
      %332 = vmatprep.subr.mxu0 %v276
      %333 = vmatpush1.msra.mxu0 %v275
      %334 = vmatprep.subr.mxu0 %v278
      %335 = vmatpush1.msra.mxu0 %v277
      %336 = vmatprep.subr.mxu0 %v280
      %337 = vmatpush1.msra.mxu0 %v279
      %338 = vmatprep.subr.mxu0 %v282
      %339 = vmatpush1.msra.mxu0 %v281
      %340 = vmatprep.subr.mxu0 %v284
      %341 = vmatpush1.msra.mxu0 %v283
      %342 = vmatprep.subr.mxu0 %v286
      %343 = vmatpush1.msra.mxu0 %v285
      %344 = vmatprep.subr.mxu0 %v288
      %345 = vmatpush1.msra.mxu0 %v287
      %346 = vmatprep.subr.mxu0 0.0
      %347 = vmatpush1.msra.mxu0 0.0
      %348 = vmatprep.subr.mxu0 0.0
      %349 = vmatpush1.msra.mxu0 0.0
      %350 = vmatprep.subr.mxu0 0.0
      %351 = vmatpush1.msra.mxu0 0.0
      %352 = vmatprep.subr.mxu0 0.0
      %353 = vmatpush1.msra.mxu0 0.0
      %354 = vmatprep.subr.mxu0 0.0
      %355 = vmatpush1.msra.mxu0 0.0
      %356 = vmatprep.subr.mxu0 0.0
      %357 = vmatpush1.msra.mxu0 0.0
      %358 = vmatprep.subr.mxu0 0.0
      %359 = vmatpush1.msra.mxu0 0.0
      %360 = vmatprep.subr.mxu0 0.0
      %361 = vmatpush1.msra.mxu0 0.0
      %362 = vmatprep.subr.mxu0 0.0
      %363 = vmatpush1.msra.mxu0 0.0
      %364 = vmatprep.subr.mxu0 0.0
      %365 = vmatpush1.msra.mxu0 0.0
      %366 = vmatprep.subr.mxu0 0.0
      %367 = vmatpush1.msra.mxu0 0.0
      %368 = vmatprep.subr.mxu0 0.0
      %369 = vmatpush1.msra.mxu0 0.0
      %370 = vmatprep.subr.mxu0 0.0
      %371 = vmatpush1.msra.mxu0 0.0
      %372 = vmatprep.subr.mxu0 0.0
      %373 = vmatpush1.msra.mxu0 0.0
      %374 = vmatprep.subr.mxu0 0.0
      %375 = vmatpush1.msra.mxu0 0.0
      %376 = vmatprep.subr.mxu0 0.0
      %377 = vmatpush1.msra.mxu0 0.0
      %378 = vmatprep.subr.mxu0 0.0
      %379 = vmatpush1.msra.mxu0 0.0
      %380 = vmatprep.subr.mxu0 0.0
      %381 = vmatpush1.msra.mxu0 0.0
      %382 = vmatprep.subr.mxu0 0.0
      %383 = vmatpush1.msra.mxu0 0.0
      %384 = vmatprep.subr.mxu0 0.0
      %385 = vmatpush1.msra.mxu0 0.0
      %386 = vmatprep.subr.mxu0 0.0
      %387 = vmatpush1.msra.mxu0 0.0
      %388 = vmatprep.subr.mxu0 0.0
      %389 = vmatpush1.msra.mxu0 0.0
      %390 = vmatprep.subr.mxu0 0.0
      %391 = vmatpush1.msra.mxu0 0.0
      %392 = vmatprep.subr.mxu0 0.0
      %393 = vmatpush1.msra.mxu0 0.0
      %394 = vmatprep.mubr.f32.mxu0 0.0
      %395 = vmatmul.mubr.f32.gmra.mrb[0].mxu0 %v319
      %v396 = vpop.f32.mrb[0].mxu0
      %v397 = vadd.f32 %v300, %v396
      %v398 = vpop.f32.mrb[0].mxu0
      %v399 = vadd.f32 %v300, %v398
      %400 = vmatprep.mubr.f32.mxu0 0.0
      %401 = vmatmul.mubr.f32.gmra.mrb[0].mxu0 %v322
      %v402 = vpop.f32.mrb[0].mxu0
      %v403 = vadd.f32 %v305, %v402
      %v404 = vpop.f32.mrb[0].mxu0
      %v405 = vadd.f32 %v305, %v404
      %406 = vmatprep.mubr.f32.mxu0 0.0
      %407 = vmatmul.mubr.f32.gmra.mrb[0].mxu0 %v325
      %v408 = vpop.f32.mrb[0].mxu0
      %v409 = vadd.f32 %v310, %v408
      %v410 = vpop.f32.mrb[0].mxu0
      %v411 = vadd.f32 %v310, %v410
      %412 = vmatprep.mubr.f32.mxu0 0.0
      %413 = vmatmul.mubr.f32.gmra.mrb[0].mxu0 %v328
      %v414 = vpop.f32.mrb[0].mxu0
      %v415 = vadd.f32 %v315, %v414
      %v416 = vpop.f32.mrb[0].mxu0
      %v417 = vadd.f32 %v315, %v416
      %418 = vdwg.mxu0
      %v419 = vld [vmem:[%s261] sm:$0xff]
      %v420 = vld [vmem:[%s261 + $0x8] sm:$0xff]
      %v421 = vld [vmem:[%s261 + $0x10] sm:$0xff]
      %v422 = vld [vmem:[%s261 + $0x18] sm:$0xff]
      %v423 = vld [vmem:[%s261 + $0x20] sm:$0xff]
      %v424 = vld [vmem:[%s261 + $0x28] sm:$0xff]
      %v425 = vld [vmem:[%s261 + $0x30] sm:$0xff]
      %v426 = vld [vmem:[%s261 + $0x38] sm:$0xff]
      %v427 = vadd.f32 %v397, %v419
      %v428 = vadd.f32 %v399, %v420
      %v429 = vadd.f32 %v403, %v421
      %v430 = vadd.f32 %v405, %v422
      %v431 = vadd.f32 %v409, %v423
      %v432 = vadd.f32 %v411, %v424
      %v433 = vadd.f32 %v415, %v425
      %v434 = vadd.f32 %v417, %v426
      %435 = vst [vmem:[%s271] sm:$0xff] %v427
      %436 = vst [vmem:[%s271 + $0x8] sm:$0xff] %v428
      %437 = vst [vmem:[%s271 + $0x10] sm:$0xff] %v429
      %438 = vst [vmem:[%s271 + $0x18] sm:$0xff] %v430
      %439 = vst [vmem:[%s271 + $0x20] sm:$0xff] %v431
      %440 = vst [vmem:[%s271 + $0x28] sm:$0xff] %v432
      %441 = vst [vmem:[%s271 + $0x30] sm:$0xff] %v433
      %442 = vst [vmem:[%s271 + $0x38] sm:$0xff] %v434
      %s443 = smul.u32 2, %s20
      %p444 = scmp.lt.s32.totalorder %s19, 1
      %s445 = scalar_select %p444, %s19, 1
      %p446 = scmp.lt.s32.totalorder %s443, 1
      %s447 = scalar_select %p446, %s443, 1
      %s448 = smul.addr %s445, 8
      %s449 = sadd.s32 %s447, %s448
      %s450 = smul.addr %s449, 8
      %s451 = scalar_lea.vmem %s4, %s450
      // Predicated region
      $region37: #{transformer_forward.18} parent=35 // pred_check
        %p452 = pneg %p145
      $region38: #{transformer_forward.18} parent=35 // pred_check_branch
        %454 = sbr.rel (%p452) target = $region40
      $region39: #{transformer_forward.18} parent=35 // pred_region
        %s455 = smul.u32 2, %s20
      $region40: #{transformer_forward.18} parent=35 // pred_fallthru
        _
    $region36: #{transformer_forward.18} parent=5 // pred_fallthru
      _
    %p456 = scmp.le.s32.totalorder 2, %s10
    // Predicated region
    $region41: #{transformer_forward.18} parent=5 // pred_check
      %p457 = pneg %p456
    $region42: #{transformer_forward.18} parent=5 // pred_check_branch
      %459 = sbr.rel (%p457) target = $region44
    $region43: #{transformer_forward.18} parent=5 // pred_region
      %s460 = ssub.s32 %s10, 2
      // Predicated region
      $region45: #{transformer_forward.18} parent=43 // pred_check
        %p461 = pneg %p151
      $region46: #{transformer_forward.18} parent=43 // pred_check_branch
        %463 = sbr.rel (%p461) target = $region48
      $region47: #{transformer_forward.18} parent=43 // pred_region
        %s464 = smul.u32 2, %s22
        %p465 = scmp.lt.s32.totalorder %s21, 1
        %s466 = scalar_select %p465, %s21, 1
        %p467 = scmp.lt.s32.totalorder %s464, 1
        %s468 = scalar_select %p467, %s464, 1
        %s469 = smul.addr %s466, 8
        %s470 = sadd.s32 %s468, %s469
        %s471 = smul.addr %s470, 8
        %s472 = scalar_lea.vmem %s4, %s471
      $region48: #{transformer_forward.18} parent=43 // pred_fallthru
        _
    $region44: #{transformer_forward.18} parent=5 // pred_fallthru
      _
  $region6: #{transformer_forward.18} parent=0 // loop_footer
    %s14 = sadd.s32 1, %s10
  $region7: #{transformer_forward.18} parent=0 // loop_footer_branch
    %9 = sbr.rel target = $region3
  $region8: #{transformer_forward.18} parent=0 // loop_exit
    _

// kernel: transformer_forward.19
$region0: #{transformer_forward.19}
  #allocation0 [shape = 'u32[]', space=smem, size = 0x4, offset = 0x4, fixed_abs, tag = 'smem constant byte address 0x4 - core index']
  #allocation1 [shape = 'u32[144,128]{1,0:T(1,128)}', space=vmem, size = 0x12000, scoped, tag = 'internal scratch']
  %s0 = inlined_call_operand.vmem [shape: f32[2,32,256], index: 0, kind: input, shape index: {}]
  %s1 = inlined_call_operand.vmem [shape: f32[64,32], index: 1, kind: input, shape index: {}]
  %s2 = inlined_call_operand.vmem [shape: f32[64,1], index: 2, kind: input, shape index: {}]
  %s3 = inlined_call_operand.vmem [shape: f32[2,64,256], index: 3, kind: output, shape index: {}]
  %s4 = sld [smem:[#allocation0]]
  $region45: #{transformer_forward.19} parent=0
    _
  %s6 = ssub.s32 1, %s4
  %s7 = scalar_select 0, %s6, %s4
  loop: start=0, step=1, limit=4
  $region2: #{transformer_forward.19} parent=0 // loop_pre_header
    _
  $region3: #{transformer_forward.19} parent=0 // loop_header
    %s9 = sphi 0, %s13
    %p10 = scmp.ge.s32.totalorder %s9, 4
    %s16 = sphi 0, %s28
    %s17 = sphi 0, %s24
    %s18 = sphi 0, %s16
    %s19 = sphi 0, %s17
    %s20 = sphi 0, %s18
    %s21 = sphi 0, %s19
    %s33 = sphi 0, %s35
    %s36 = sphi 0, %s33
    %s37 = sphi 0, %s36
    %s53 = sphi 0, %s37
    %s57 = sphi 0, %s57
    %s59 = sphi 0, %s57
    %s60 = sphi 0, %s59
    %s74 = sphi 0, %s60
    %s78 = sphi 0, %s78
    %s80 = sphi 0, %s78
    %s81 = sphi 0, %s80
    %s95 = sphi 0, %s81
    %s103 = sphi 0, %s105
    %s106 = sphi 0, %s103
    %s107 = sphi 0, %s106
    %s123 = sphi 0, %s107
  $region4: #{transformer_forward.19} parent=0 // loop_header_branch
    %12 = sbr.rel (%p10) target = $region8
  $region5: #{transformer_forward.19} parent=0 // loop_body
    %s14 = ssub.s32 %s9, 1
    %s15 = ssub.s32 %s9, 2
    %s22 = sadd.s32 1, %s17
    %p23 = scmp.ge.s32.totalorder %s22, 1
    %s24 = scalar_select %p23, 0, %s22
    %s25 = sadd.s32 1, %s16
    %s26 = scalar_select %p23, %s25, %s16
    %p27 = scmp.ge.s32.totalorder %s26, 2
    %s28 = scalar_select %p27, 0, %s26
    %s29 = ssub.s32 %s16, %s28
    %s30 = ssub.s32 %s17, %s24
    %s31 = sor.u32 %s29, %s30
    %p32 = scmp.eq.s32.totalorder %s31, 0
    %s34 = sadd.s32 %s33, 1
    %s35 = scalar_select %p32, %s33, %s34
    %p38 = pneg %p32
    %p39 = scmp.eq.s32.totalorder %s9, 1
    %p40 = por %p38, %p39
    %p41 = scmp.ne.s32.totalorder %s33, %s36
    %p42 = scmp.eq.s32.totalorder %s9, 0
    %p43 = por %p41, %p42
    %p44 = scmp.ne.s32.totalorder %s33, %s36
    %p45 = scmp.eq.s32.totalorder %s14, 1
    %p46 = por %p44, %p45
    %p47 = scmp.ne.s32.totalorder %s36, %s37
    %p48 = scmp.eq.s32.totalorder %s14, 0
    %p49 = por %p47, %p48
    %p50 = scmp.ne.s32.totalorder %s36, %s37
    %p51 = scmp.eq.s32.totalorder %s15, 1
    %p52 = por %p50, %p51
    %p54 = scmp.ne.s32.totalorder %s37, %s53
    %p55 = scmp.eq.s32.totalorder %s15, 0
    %p56 = por %p54, %p55
    %s58 = sadd.s32 %s57, 1
    %p61 = scmp.eq.s32.totalorder %s9, 1
    %p62 = scmp.ne.s32.totalorder %s57, %s59
    %p63 = scmp.eq.s32.totalorder %s9, 0
    %p64 = por %p62, %p63
    %p65 = scmp.ne.s32.totalorder %s57, %s59
    %p66 = scmp.eq.s32.totalorder %s14, 1
    %p67 = por %p65, %p66
    %p68 = scmp.ne.s32.totalorder %s59, %s60
    %p69 = scmp.eq.s32.totalorder %s14, 0
    %p70 = por %p68, %p69
    %p71 = scmp.ne.s32.totalorder %s59, %s60
    %p72 = scmp.eq.s32.totalorder %s15, 1
    %p73 = por %p71, %p72
    %p75 = scmp.ne.s32.totalorder %s60, %s74
    %p76 = scmp.eq.s32.totalorder %s15, 0
    %p77 = por %p75, %p76
    %s79 = sadd.s32 %s78, 1
    %p82 = scmp.eq.s32.totalorder %s9, 1
    %p83 = scmp.ne.s32.totalorder %s78, %s80
    %p84 = scmp.eq.s32.totalorder %s9, 0
    %p85 = por %p83, %p84
    %p86 = scmp.ne.s32.totalorder %s78, %s80
    %p87 = scmp.eq.s32.totalorder %s14, 1
    %p88 = por %p86, %p87
    %p89 = scmp.ne.s32.totalorder %s80, %s81
    %p90 = scmp.eq.s32.totalorder %s14, 0
    %p91 = por %p89, %p90
    %p92 = scmp.ne.s32.totalorder %s80, %s81
    %p93 = scmp.eq.s32.totalorder %s15, 1
    %p94 = por %p92, %p93
    %p96 = scmp.ne.s32.totalorder %s81, %s95
    %p97 = scmp.eq.s32.totalorder %s15, 0
    %p98 = por %p96, %p97
    %s99 = ssub.s32 %s16, %s28
    %s100 = ssub.s32 %s17, %s24
    %s101 = sor.u32 %s99, %s100
    %p102 = scmp.eq.s32.totalorder %s101, 0
    %s104 = sadd.s32 %s103, 1
    %s105 = scalar_select %p102, %s103, %s104
    %p108 = pneg %p102
    %p109 = scmp.eq.s32.totalorder %s9, 1
    %p110 = por %p108, %p109
    %p111 = scmp.ne.s32.totalorder %s103, %s106
    %p112 = scmp.eq.s32.totalorder %s9, 0
    %p113 = por %p111, %p112
    %p114 = scmp.ne.s32.totalorder %s103, %s106
    %p115 = scmp.eq.s32.totalorder %s14, 1
    %p116 = por %p114, %p115
    %p117 = scmp.ne.s32.totalorder %s106, %s107
    %p118 = scmp.eq.s32.totalorder %s14, 0
    %p119 = por %p117, %p118
    %p120 = scmp.ne.s32.totalorder %s106, %s107
    %p121 = scmp.eq.s32.totalorder %s15, 1
    %p122 = por %p120, %p121
    %p124 = scmp.ne.s32.totalorder %s107, %s123
    %p125 = scmp.eq.s32.totalorder %s15, 0
    %p126 = por %p124, %p125
    %p127 = scmp.le.s32.totalorder 1, %s9
    %p128 = scmp.lt.s32.totalorder %s9, 3
    %p129 = pnand %p127, %p128
    %p130 = pneg %p129
    // Predicated region
    $region9: #{transformer_forward.19} parent=5 // pred_check
      _
    $region10: #{transformer_forward.19} parent=5 // pred_check_branch
      %132 = sbr.rel (%p129) target = $region12
    $region11: #{transformer_forward.19} parent=5 // pred_region
      %s133 = ssub.s32 %s9, 1
      // Predicated region
      $region13: #{transformer_forward.19} parent=11 // pred_check
        %p134 = pneg %p70
      $region14: #{transformer_forward.19} parent=11 // pred_check_branch
        %136 = sbr.rel (%p134) target = $region16
      $region15: #{transformer_forward.19} parent=11 // pred_region
        _
      $region16: #{transformer_forward.19} parent=11 // pred_fallthru
        _
      // Predicated region
      $region17: #{transformer_forward.19} parent=11 // pred_check
        %p137 = pneg %p91
      $region18: #{transformer_forward.19} parent=11 // pred_check_branch
        %139 = sbr.rel (%p137) target = $region20
      $region19: #{transformer_forward.19} parent=11 // pred_region
        _
      $region20: #{transformer_forward.19} parent=11 // pred_fallthru
        _
    $region12: #{transformer_forward.19} parent=5 // pred_fallthru
      _
    %p140 = scmp.lt.s32.totalorder %s9, 2
    // Predicated region
    $region21: #{transformer_forward.19} parent=5 // pred_check
      %p141 = pneg %p140
    $region22: #{transformer_forward.19} parent=5 // pred_check_branch
      %143 = sbr.rel (%p141) target = $region24
    $region23: #{transformer_forward.19} parent=5 // pred_region
      // Predicated region
      $region25: #{transformer_forward.19} parent=23 // pred_check
        %p144 = pneg %p43
      $region26: #{transformer_forward.19} parent=23 // pred_check_branch
        %146 = sbr.rel (%p144) target = $region28
      $region27: #{transformer_forward.19} parent=23 // pred_region
        %s147 = smul.u32 2, %s17
        %p148 = scmp.lt.s32.totalorder %s16, 1
        %s149 = scalar_select %p148, %s16, 1
        %p150 = scmp.lt.s32.totalorder %s147, 1
        %s151 = scalar_select %p150, %s147, 1
        %s152 = smul.addr %s149, 8
        %s153 = sadd.s32 %s151, %s152
        %s154 = smul.addr %s153, 8
        %s155 = scalar_lea.vmem %s0, %s154
        %s156 = smul.u32 2, %s17
      $region28: #{transformer_forward.19} parent=23 // pred_fallthru
        _
    $region24: #{transformer_forward.19} parent=5 // pred_fallthru
      _
    %p157 = scmp.le.s32.totalorder 1, %s9
    %p158 = scmp.lt.s32.totalorder %s9, 3
    %p159 = pnand %p157, %p158
    %p160 = pneg %p159
    // Predicated region
    $region29: #{transformer_forward.19} parent=5 // pred_check
      _
    $region30: #{transformer_forward.19} parent=5 // pred_check_branch
      %162 = sbr.rel (%p159) target = $region32
    $region31: #{transformer_forward.19} parent=5 // pred_region
      %s163 = ssub.s32 %s9, 1
      %s164 = smul.u32 2, %s19
      %p165 = scmp.lt.s32.totalorder %s18, 1
      %s166 = scalar_select %p165, %s18, 1
      %p167 = scmp.lt.s32.totalorder %s164, 1
      %s168 = scalar_select %p167, %s164, 1
      %s169 = smul.addr %s166, 8
      %s170 = sadd.s32 %s168, %s169
      %s171 = smul.addr %s170, 8
      %s172 = scalar_lea.vmem %s0, %s171
      %p173 = pneg %p49
      %p174 = pneg %p46
      %p175 = pneg %p70
      %p176 = pneg %p67
      %p177 = pneg %p91
      %p178 = pneg %p88
      %p179 = pneg %p119
      %p180 = pneg %p116
      %s181 = smul.u32 2, %s19
      %p182 = scmp.lt.s32.totalorder %s18, 1
      %s183 = scalar_select %p182, %s18, 1
      %p184 = scmp.lt.s32.totalorder %s181, 1
      %s185 = scalar_select %p184, %s181, 1
      %s186 = smul.addr %s183, 16
      %s187 = sadd.s32 %s185, %s186
      %s188 = smul.addr %s187, 8
      %s189 = scalar_lea.vmem %s3, %s188
      %s190 = smul.u32 2, %s19
      %p191 = scmp.lt.s32.totalorder %s18, 1
      %s192 = scalar_select %p191, %s18, 1
      %p193 = scmp.lt.s32.totalorder %s190, 1
      %s194 = scalar_select %p193, %s190, 1
      %s195 = smul.addr %s192, 8
      %s196 = sadd.s32 %s194, %s195
      %s197 = smul.addr %s196, 8
      %s198 = scalar_lea.vmem %s0, %s197
      %s199 = smul.u32 2, %s19
      %s200 = smul.u32 2, %s19
      %p201 = scmp.lt.s32.totalorder %s18, 1
      %s202 = scalar_select %p201, %s18, 1
      %p203 = scmp.lt.s32.totalorder %s200, 1
      %s204 = scalar_select %p203, %s200, 1
      %s205 = smul.addr %s202, 16
      %s206 = sadd.s32 %s204, %s205
      %s207 = smul.addr %s206, 8
      %s208 = scalar_lea.vmem %s3, %s207
      %s209 = smul.u32 2, %s19
      %v210 = vld [vmem:[%s198] sm:$0xff]
      %v211 = vld [vmem:[%s198 + $0x8] sm:$0xff]
      %v212 = vld [vmem:[%s198 + $0x10] sm:$0xff]
      %v213 = vld [vmem:[%s198 + $0x18] sm:$0xff]
      %v214 = vld [vmem:[%s198 + $0x20] sm:$0xff]
      %v215 = vld [vmem:[%s198 + $0x28] sm:$0xff]
      %v216 = vld [vmem:[%s198 + $0x30] sm:$0xff]
      %v217 = vld [vmem:[%s198 + $0x38] sm:$0xff]
      %v218 = vadd.f32 %v210, %v212
      %v219 = vadd.f32 %v218, %v214
      %v220 = vadd.f32 %v219, %v216
      %v221 = vrot.slane %v220, 4
      %v222 = vadd.f32 %v220, %v221
      %v223 = vrot.slane %v222, 2
      %v224 = vadd.f32 %v222, %v223
      %v225 = vrot.slane %v224, 1
      %v226 = vadd.f32 %v224, %v225
      %v227 = vadd.f32 %v211, %v213
      %v228 = vadd.f32 %v227, %v215
      %v229 = vadd.f32 %v228, %v217
      %v230 = vrot.slane %v229, 4
      %v231 = vadd.f32 %v229, %v230
      %v232 = vrot.slane %v231, 2
      %v233 = vadd.f32 %v231, %v232
      %v234 = vrot.slane %v233, 1
      %v235 = vadd.f32 %v233, %v234
      %v236 = vrcp.pop 32.0
      %v237 = vmul.f32 %v226, %v236
      %v238 = vmul.f32 %v235, %v236
      %v239 = vsub.f32 %v210, %v237
      %v240 = vsub.f32 %v211, %v238
      %v241 = vsub.f32 %v212, %v237
      %v242 = vsub.f32 %v213, %v238
      %v243 = vsub.f32 %v214, %v237
      %v244 = vsub.f32 %v215, %v238
      %v245 = vsub.f32 %v216, %v237
      %v246 = vsub.f32 %v217, %v238
      %v247 = vmul.f32 %v239, %v239
      %v248 = vmul.f32 %v240, %v240
      %v249 = vmul.f32 %v241, %v241
      %v250 = vmul.f32 %v242, %v242
      %v251 = vmul.f32 %v243, %v243
      %v252 = vmul.f32 %v244, %v244
      %v253 = vmul.f32 %v245, %v245
      %v254 = vmul.f32 %v246, %v246
      %v255 = vadd.f32 %v247, %v249
      %v256 = vadd.f32 %v255, %v251
      %v257 = vadd.f32 %v256, %v253
      %v258 = vrot.slane %v257, 4
      %v259 = vadd.f32 %v257, %v258
      %v260 = vrot.slane %v259, 2
      %v261 = vadd.f32 %v259, %v260
      %v262 = vrot.slane %v261, 1
      %v263 = vadd.f32 %v261, %v262
      %v264 = vadd.f32 %v248, %v250
      %v265 = vadd.f32 %v264, %v252
      %v266 = vadd.f32 %v265, %v254
      %v267 = vrot.slane %v266, 4
      %v268 = vadd.f32 %v266, %v267
      %v269 = vrot.slane %v268, 2
      %v270 = vadd.f32 %v268, %v269
      %v271 = vrot.slane %v270, 1
      %v272 = vadd.f32 %v270, %v271
      %v273 = vmul.f32 %v263, %v236
      %v274 = vmul.f32 %v272, %v236
      %v275 = vadd.f32 %v273, 1e-05
      %v276 = vadd.f32 %v274, 1e-05
      %v277 = vrsqrt.pop %v275
      %v278 = vrsqrt.pop %v276
      %v279 = vmul.f32 %v239, %v277
      %v280 = vmul.f32 %v240, %v278
      %v281 = vmul.f32 %v241, %v277
      %v282 = vmul.f32 %v242, %v278
      %v283 = vmul.f32 %v243, %v277
      %v284 = vmul.f32 %v244, %v278
      %v285 = vmul.f32 %v245, %v277
      %v286 = vmul.f32 %v246, %v278
      %v287 = vld [vmem:[%s1] sm:$0xff]
      %v288 = vld [vmem:[%s1 + $0x8] sm:$0xff]
      %v289 = vld [vmem:[%s1 + $0x10] sm:$0xff]
      %v290 = vld [vmem:[%s1 + $0x18] sm:$0xff]
      %v291 = vld [vmem:[%s1 + $0x20] sm:$0xff]
      %v292 = vld [vmem:[%s1 + $0x28] sm:$0xff]
      %v293 = vld [vmem:[%s1 + $0x30] sm:$0xff]
      %v294 = vld [vmem:[%s1 + $0x38] sm:$0xff]
      %v295 = vld [vmem:[%s2] sm:$0xff]
      %v296 = vld [vmem:[%s2 + $0x8] sm:$0xff]
      %v297 = vld [vmem:[%s2 + $0x10] sm:$0xff]
      %v298 = vld [vmem:[%s2 + $0x18] sm:$0xff]
      %v299 = vld [vmem:[%s2 + $0x20] sm:$0xff]
      %v300 = vld [vmem:[%s2 + $0x28] sm:$0xff]
      %v301 = vld [vmem:[%s2 + $0x30] sm:$0xff]
      %v302 = vld [vmem:[%s2 + $0x38] sm:$0xff]
      %304 = vset.pattern.permute.xlu0 0
      %305 = vperm.xlu0 %304, %v295
      %v306 = vpop.permute.xlu0 %305
      %309 = vset.pattern.permute.xlu0 0
      %310 = vperm.xlu0 %309, %v296
      %v311 = vpop.permute.xlu0 %310
      %314 = vset.pattern.permute.xlu0 0
      %315 = vperm.xlu0 %314, %v297
      %v316 = vpop.permute.xlu0 %315
      %319 = vset.pattern.permute.xlu0 0
      %320 = vperm.xlu0 %319, %v298
      %v321 = vpop.permute.xlu0 %320
      %324 = vset.pattern.permute.xlu0 0
      %325 = vperm.xlu0 %324, %v299
      %v326 = vpop.permute.xlu0 %325
      %329 = vset.pattern.permute.xlu0 0
      %330 = vperm.xlu0 %329, %v300
      %v331 = vpop.permute.xlu0 %330
      %334 = vset.pattern.permute.xlu0 0
      %335 = vperm.xlu0 %334, %v301
      %v336 = vpop.permute.xlu0 %335
      %339 = vset.pattern.permute.xlu0 0
      %340 = vperm.xlu0 %339, %v302
      %v341 = vpop.permute.xlu0 %340
      %vm343 = vcmask 261120
      %v345 = vsel %vm343, %v287, 0
      %v348 = vsel %vm343, %v288, 0
      %v351 = vsel %vm343, %v289, 0
      %v354 = vsel %vm343, %v290, 0
      %v357 = vsel %vm343, %v291, 0
      %v360 = vsel %vm343, %v292, 0
      %v363 = vsel %vm343, %v293, 0
      %v366 = vsel %vm343, %v294, 0
      %368 = vmatprep.subr.mxu0 %v280
      %369 = vmatpush1.msra.mxu0 %v279
      %370 = vmatprep.subr.mxu0 %v282
      %371 = vmatpush1.msra.mxu0 %v281
      %372 = vmatprep.subr.mxu0 %v284
      %373 = vmatpush1.msra.mxu0 %v283
      %374 = vmatprep.subr.mxu0 %v286
      %375 = vmatpush1.msra.mxu0 %v285
      %376 = vmatprep.subr.mxu0 0.0
      %377 = vmatpush1.msra.mxu0 0.0
      %378 = vmatprep.subr.mxu0 0.0
      %379 = vmatpush1.msra.mxu0 0.0
      %380 = vmatprep.subr.mxu0 0.0
      %381 = vmatpush1.msra.mxu0 0.0
      %382 = vmatprep.subr.mxu0 0.0
      %383 = vmatpush1.msra.mxu0 0.0
      %384 = vmatprep.subr.mxu0 0.0
      %385 = vmatpush1.msra.mxu0 0.0
      %386 = vmatprep.subr.mxu0 0.0
      %387 = vmatpush1.msra.mxu0 0.0
      %388 = vmatprep.subr.mxu0 0.0
      %389 = vmatpush1.msra.mxu0 0.0
      %390 = vmatprep.subr.mxu0 0.0
      %391 = vmatpush1.msra.mxu0 0.0
      %392 = vmatprep.subr.mxu0 0.0
      %393 = vmatpush1.msra.mxu0 0.0
      %394 = vmatprep.subr.mxu0 0.0
      %395 = vmatpush1.msra.mxu0 0.0
      %396 = vmatprep.subr.mxu0 0.0
      %397 = vmatpush1.msra.mxu0 0.0
      %398 = vmatprep.subr.mxu0 0.0
      %399 = vmatpush1.msra.mxu0 0.0
      %400 = vmatprep.subr.mxu0 0.0
      %401 = vmatpush1.msra.mxu0 0.0
      %402 = vmatprep.subr.mxu0 0.0
      %403 = vmatpush1.msra.mxu0 0.0
      %404 = vmatprep.subr.mxu0 0.0
      %405 = vmatpush1.msra.mxu0 0.0
      %406 = vmatprep.subr.mxu0 0.0
      %407 = vmatpush1.msra.mxu0 0.0
      %408 = vmatprep.subr.mxu0 0.0
      %409 = vmatpush1.msra.mxu0 0.0
      %410 = vmatprep.subr.mxu0 0.0
      %411 = vmatpush1.msra.mxu0 0.0
      %412 = vmatprep.subr.mxu0 0.0
      %413 = vmatpush1.msra.mxu0 0.0
      %414 = vmatprep.subr.mxu0 0.0
      %415 = vmatpush1.msra.mxu0 0.0
      %416 = vmatprep.subr.mxu0 0.0
      %417 = vmatpush1.msra.mxu0 0.0
      %418 = vmatprep.subr.mxu0 0.0
      %419 = vmatpush1.msra.mxu0 0.0
      %420 = vmatprep.subr.mxu0 0.0
      %421 = vmatpush1.msra.mxu0 0.0
      %422 = vmatprep.subr.mxu0 0.0
      %423 = vmatpush1.msra.mxu0 0.0
      %424 = vmatprep.subr.mxu0 0.0
      %425 = vmatpush1.msra.mxu0 0.0
      %426 = vmatprep.subr.mxu0 0.0
      %427 = vmatpush1.msra.mxu0 0.0
      %428 = vmatprep.subr.mxu0 0.0
      %429 = vmatpush1.msra.mxu0 0.0
      %430 = vmatprep.subr.mxu0 0.0
      %431 = vmatpush1.msra.mxu0 0.0
      %432 = vmatprep.mubr.f32.mxu0 0.0
      %433 = vmatmul.mubr.f32.gmra.mrb[0].mxu0 %v345
      %v434 = vpop.f32.mrb[0].mxu0
      %v435 = vadd.f32 %v306, %v434
      %v436 = vpop.f32.mrb[0].mxu0
      %v437 = vadd.f32 %v306, %v436
      %438 = vmatprep.mubr.f32.mxu0 0.0
      %439 = vmatmul.mubr.f32.gmra.mrb[0].mxu0 %v348
      %v440 = vpop.f32.mrb[0].mxu0
      %v441 = vadd.f32 %v311, %v440
      %v442 = vpop.f32.mrb[0].mxu0
      %v443 = vadd.f32 %v311, %v442
      %444 = vmatprep.mubr.f32.mxu0 0.0
      %445 = vmatmul.mubr.f32.gmra.mrb[0].mxu0 %v351
      %v446 = vpop.f32.mrb[0].mxu0
      %v447 = vadd.f32 %v316, %v446
      %v448 = vpop.f32.mrb[0].mxu0
      %v449 = vadd.f32 %v316, %v448
      %450 = vmatprep.mubr.f32.mxu0 0.0
      %451 = vmatmul.mubr.f32.gmra.mrb[0].mxu0 %v354
      %v452 = vpop.f32.mrb[0].mxu0
      %v453 = vadd.f32 %v321, %v452
      %v454 = vpop.f32.mrb[0].mxu0
      %v455 = vadd.f32 %v321, %v454
      %456 = vmatprep.mubr.f32.mxu0 0.0
      %457 = vmatmul.mubr.f32.gmra.mrb[0].mxu0 %v357
      %v458 = vpop.f32.mrb[0].mxu0
      %v459 = vadd.f32 %v326, %v458
      %v460 = vpop.f32.mrb[0].mxu0
      %v461 = vadd.f32 %v326, %v460
      %462 = vmatprep.mubr.f32.mxu0 0.0
      %463 = vmatmul.mubr.f32.gmra.mrb[0].mxu0 %v360
      %v464 = vpop.f32.mrb[0].mxu0
      %v465 = vadd.f32 %v331, %v464
      %v466 = vpop.f32.mrb[0].mxu0
      %v467 = vadd.f32 %v331, %v466
      %468 = vmatprep.mubr.f32.mxu0 0.0
      %469 = vmatmul.mubr.f32.gmra.mrb[0].mxu0 %v363
      %v470 = vpop.f32.mrb[0].mxu0
      %v471 = vadd.f32 %v336, %v470
      %v472 = vpop.f32.mrb[0].mxu0
      %v473 = vadd.f32 %v336, %v472
      %474 = vmatprep.mubr.f32.mxu0 0.0
      %475 = vmatmul.mubr.f32.gmra.mrb[0].mxu0 %v366
      %v476 = vpop.f32.mrb[0].mxu0
      %v477 = vadd.f32 %v341, %v476
      %v478 = vpop.f32.mrb[0].mxu0
      %v479 = vadd.f32 %v341, %v478
      %480 = vdwg.mxu0
      %v481 = vmul.f32 %v435, 0.5
      %v482 = vmul.f32 %v437, 0.5
      %v483 = vmul.f32 %v441, 0.5
      %v484 = vmul.f32 %v443, 0.5
      %v485 = vmul.f32 %v447, 0.5
      %v486 = vmul.f32 %v449, 0.5
      %v487 = vmul.f32 %v453, 0.5
      %v488 = vmul.f32 %v455, 0.5
      %v489 = vmul.f32 %v459, 0.5
      %v490 = vmul.f32 %v461, 0.5
      %v491 = vmul.f32 %v465, 0.5
      %v492 = vmul.f32 %v467, 0.5
      %v493 = vmul.f32 %v471, 0.5
      %v494 = vmul.f32 %v473, 0.5
      %v495 = vmul.f32 %v477, 0.5
      %v496 = vmul.f32 %v479, 0.5
      %v497 = vmul.f32 %v435, 0.044715
      %v498 = vmul.f32 %v437, 0.044715
      %v499 = vmul.f32 %v441, 0.044715
      %v500 = vmul.f32 %v443, 0.044715
      %v501 = vmul.f32 %v447, 0.044715
      %v502 = vmul.f32 %v449, 0.044715
      %v503 = vmul.f32 %v453, 0.044715
      %v504 = vmul.f32 %v455, 0.044715
      %v505 = vmul.f32 %v459, 0.044715
      %v506 = vmul.f32 %v461, 0.044715
      %v507 = vmul.f32 %v465, 0.044715
      %v508 = vmul.f32 %v467, 0.044715
      %v509 = vmul.f32 %v471, 0.044715
      %v510 = vmul.f32 %v473, 0.044715
      %v511 = vmul.f32 %v477, 0.044715
      %v512 = vmul.f32 %v479, 0.044715
      %v513 = vmul.f32 %v497, %v435
      %v514 = vmul.f32 %v498, %v437
      %v515 = vmul.f32 %v499, %v441
      %v516 = vmul.f32 %v500, %v443
      %v517 = vmul.f32 %v501, %v447
      %v518 = vmul.f32 %v502, %v449
      %v519 = vmul.f32 %v503, %v453
      %v520 = vmul.f32 %v504, %v455
      %v521 = vmul.f32 %v505, %v459
      %v522 = vmul.f32 %v506, %v461
      %v523 = vmul.f32 %v507, %v465
      %v524 = vmul.f32 %v508, %v467
      %v525 = vmul.f32 %v509, %v471
      %v526 = vmul.f32 %v510, %v473
      %v527 = vmul.f32 %v511, %v477
      %v528 = vmul.f32 %v512, %v479
      %v529 = vmul.f32 %v513, %v435
      %v530 = vmul.f32 %v514, %v437
      %v531 = vmul.f32 %v515, %v441
      %v532 = vmul.f32 %v516, %v443
      %v533 = vmul.f32 %v517, %v447
      %v534 = vmul.f32 %v518, %v449
      %v535 = vmul.f32 %v519, %v453
      %v536 = vmul.f32 %v520, %v455
      %v537 = vmul.f32 %v521, %v459
      %v538 = vmul.f32 %v522, %v461
      %v539 = vmul.f32 %v523, %v465
      %v540 = vmul.f32 %v524, %v467
      %v541 = vmul.f32 %v525, %v471
      %v542 = vmul.f32 %v526, %v473
      %v543 = vmul.f32 %v527, %v477
      %v544 = vmul.f32 %v528, %v479
      %v545 = vadd.f32 %v435, %v529
      %v546 = vadd.f32 %v437, %v530
      %v547 = vadd.f32 %v441, %v531
      %v548 = vadd.f32 %v443, %v532
      %v549 = vadd.f32 %v447, %v533
      %v550 = vadd.f32 %v449, %v534
      %v551 = vadd.f32 %v453, %v535
      %v552 = vadd.f32 %v455, %v536
      %v553 = vadd.f32 %v459, %v537
      %v554 = vadd.f32 %v461, %v538
      %v555 = vadd.f32 %v465, %v539
      %v556 = vadd.f32 %v467, %v540
      %v557 = vadd.f32 %v471, %v541
      %v558 = vadd.f32 %v473, %v542
      %v559 = vadd.f32 %v477, %v543
      %v560 = vadd.f32 %v479, %v544
      %v561 = vmul.f32 %v545, 0.7978846
      %v562 = vmul.f32 %v546, 0.7978846
      %v563 = vmul.f32 %v547, 0.7978846
      %v564 = vmul.f32 %v548, 0.7978846
      %v565 = vmul.f32 %v549, 0.7978846
      %v566 = vmul.f32 %v550, 0.7978846
      %v567 = vmul.f32 %v551, 0.7978846
      %v568 = vmul.f32 %v552, 0.7978846
      %v569 = vmul.f32 %v553, 0.7978846
      %v570 = vmul.f32 %v554, 0.7978846
      %v571 = vmul.f32 %v555, 0.7978846
      %v572 = vmul.f32 %v556, 0.7978846
      %v573 = vmul.f32 %v557, 0.7978846
      %v574 = vmul.f32 %v558, 0.7978846
      %v575 = vmul.f32 %v559, 0.7978846
      %v576 = vmul.f32 %v560, 0.7978846
      %v577 = vtanh.pop %v561
      %v578 = vtanh.pop %v562
      %v579 = vtanh.pop %v563
      %v580 = vtanh.pop %v564
      %v581 = vtanh.pop %v565
      %v582 = vtanh.pop %v566
      %v583 = vtanh.pop %v567
      %v584 = vtanh.pop %v568
      %v585 = vtanh.pop %v569
      %v586 = vtanh.pop %v570
      %v587 = vtanh.pop %v571
      %v588 = vtanh.pop %v572
      %v589 = vtanh.pop %v573
      %v590 = vtanh.pop %v574
      %v591 = vtanh.pop %v575
      %v592 = vtanh.pop %v576
      %v593 = vadd.f32 %v577, 1.0
      %v594 = vadd.f32 %v578, 1.0
      %v595 = vadd.f32 %v579, 1.0
      %v596 = vadd.f32 %v580, 1.0
      %v597 = vadd.f32 %v581, 1.0
      %v598 = vadd.f32 %v582, 1.0
      %v599 = vadd.f32 %v583, 1.0
      %v600 = vadd.f32 %v584, 1.0
      %v601 = vadd.f32 %v585, 1.0
      %v602 = vadd.f32 %v586, 1.0
      %v603 = vadd.f32 %v587, 1.0
      %v604 = vadd.f32 %v588, 1.0
      %v605 = vadd.f32 %v589, 1.0
      %v606 = vadd.f32 %v590, 1.0
      %v607 = vadd.f32 %v591, 1.0
      %v608 = vadd.f32 %v592, 1.0
      %v609 = vmul.f32 %v481, %v593
      %v610 = vmul.f32 %v482, %v594
      %v611 = vmul.f32 %v483, %v595
      %v612 = vmul.f32 %v484, %v596
      %v613 = vmul.f32 %v485, %v597
      %v614 = vmul.f32 %v486, %v598
      %v615 = vmul.f32 %v487, %v599
      %v616 = vmul.f32 %v488, %v600
      %v617 = vmul.f32 %v489, %v601
      %v618 = vmul.f32 %v490, %v602
      %v619 = vmul.f32 %v491, %v603
      %v620 = vmul.f32 %v492, %v604
      %v621 = vmul.f32 %v493, %v605
      %v622 = vmul.f32 %v494, %v606
      %v623 = vmul.f32 %v495, %v607
      %v624 = vmul.f32 %v496, %v608
      %625 = vst [vmem:[%s208] sm:$0xff] %v609
      %626 = vst [vmem:[%s208 + $0x8] sm:$0xff] %v610
      %627 = vst [vmem:[%s208 + $0x10] sm:$0xff] %v611
      %628 = vst [vmem:[%s208 + $0x18] sm:$0xff] %v612
      %629 = vst [vmem:[%s208 + $0x20] sm:$0xff] %v613
      %630 = vst [vmem:[%s208 + $0x28] sm:$0xff] %v614
      %631 = vst [vmem:[%s208 + $0x30] sm:$0xff] %v615
      %632 = vst [vmem:[%s208 + $0x38] sm:$0xff] %v616
      %633 = vst [vmem:[%s208 + $0x40] sm:$0xff] %v617
      %634 = vst [vmem:[%s208 + $0x48] sm:$0xff] %v618
      %635 = vst [vmem:[%s208 + $0x50] sm:$0xff] %v619
      %636 = vst [vmem:[%s208 + $0x58] sm:$0xff] %v620
      %637 = vst [vmem:[%s208 + $0x60] sm:$0xff] %v621
      %638 = vst [vmem:[%s208 + $0x68] sm:$0xff] %v622
      %639 = vst [vmem:[%s208 + $0x70] sm:$0xff] %v623
      %640 = vst [vmem:[%s208 + $0x78] sm:$0xff] %v624
      %s641 = smul.u32 2, %s19
      %p642 = scmp.lt.s32.totalorder %s18, 1
      %s643 = scalar_select %p642, %s18, 1
      %p644 = scmp.lt.s32.totalorder %s641, 1
      %s645 = scalar_select %p644, %s641, 1
      %s646 = smul.addr %s643, 16
      %s647 = sadd.s32 %s645, %s646
      %s648 = smul.addr %s647, 8
      %s649 = scalar_lea.vmem %s3, %s648
      // Predicated region
      $region33: #{transformer_forward.19} parent=31 // pred_check
        %p650 = pneg %p116
      $region34: #{transformer_forward.19} parent=31 // pred_check_branch
        %652 = sbr.rel (%p650) target = $region36
      $region35: #{transformer_forward.19} parent=31 // pred_region
        %s653 = smul.u32 2, %s19
      $region36: #{transformer_forward.19} parent=31 // pred_fallthru
        _
    $region32: #{transformer_forward.19} parent=5 // pred_fallthru
      _
    %p654 = scmp.le.s32.totalorder 2, %s9
    // Predicated region
    $region37: #{transformer_forward.19} parent=5 // pred_check
      %p655 = pneg %p654
    $region38: #{transformer_forward.19} parent=5 // pred_check_branch
      %657 = sbr.rel (%p655) target = $region40
    $region39: #{transformer_forward.19} parent=5 // pred_region
      %s658 = ssub.s32 %s9, 2
      // Predicated region
      $region41: #{transformer_forward.19} parent=39 // pred_check
        %p659 = pneg %p122
      $region42: #{transformer_forward.19} parent=39 // pred_check_branch
        %661 = sbr.rel (%p659) target = $region44
      $region43: #{transformer_forward.19} parent=39 // pred_region
        %s662 = smul.u32 2, %s21
        %p663 = scmp.lt.s32.totalorder %s20, 1
        %s664 = scalar_select %p663, %s20, 1
        %p665 = scmp.lt.s32.totalorder %s662, 1
        %s666 = scalar_select %p665, %s662, 1
        %s667 = smul.addr %s664, 16
        %s668 = sadd.s32 %s666, %s667
        %s669 = smul.addr %s668, 8
        %s670 = scalar_lea.vmem %s3, %s669
      $region44: #{transformer_forward.19} parent=39 // pred_fallthru
        _
    $region40: #{transformer_forward.19} parent=5 // pred_fallthru
      _
  $region6: #{transformer_forward.19} parent=0 // loop_footer
    %s13 = sadd.s32 1, %s9
  $region7: #{transformer_forward.19} parent=0 // loop_footer_branch
    %8 = sbr.rel target = $region3
  $region8: #{transformer_forward.19} parent=0 // loop_exit
    _

</llo_original>
